<compile_context>
chip_gen: v5e
topology: v5e:2x2
jax: 0.10.0
libtpu: 0.0.40
codegen_flags: <defaults>
</compile_context>

<pallas_src>
import jax
import jax.numpy as jnp
from jax import lax
from jax.experimental import pallas as pl
from jax.experimental.pallas import tpu as pltpu

# ------------------------- small, module-consistent sizes -------------------
BATCH = 4
BATCH_PAD = 8                     # pad batch to one (8,128) sublane tile
SEQ_LEN = 8                       # length of conditioning sequence x
DIMS = 8                          # args.dims : per-timestep feature size of x
RNN_HIDDEN = DIMS * 4             # BiRNN hidden size (= 32); 4H = 128 lanes
COND_LABEL_SIZE = 16              # BiRNN xdim == flow cond_label_size
INPUT_SIZE = 8                    # flow input size (dim of y)
FLOW_HIDDEN = 32                  # flow hidden_size
N_HIDDEN = 1                      # flow n_hidden
N_BLOCKS = 2                      # flow n_blocks
N_LIN = N_HIDDEN + 2              # linears per coupling sub-net
BN_EPS = 1e-5

_H = RNN_HIDDEN
_A_LANES = 8 * _H                 # 256 : fused 2-direction gates [i|f|o|g]x[f|b]
_B_LANES = 4 * _H                 # 128

# ---- slab A row offsets (lane width 256) ----
_WA_WIH1 = 0                      # DIMS rows
_WA_WHH1 = DIMS                   # 2H rows (block-diag over directions)
_WA_ROWS = DIMS + 2 * _H

# ---- slab B row offsets (lane width 128), all multiples of 8 ----
_WB_WA2F = 0 * _H                 # 2H rows : layer-2 fwd i2h, fwd-input half
_WB_WB2F = 2 * _H                 # 2H rows : layer-2 fwd i2h, bwd-input half
_WB_WHH2F = 4 * _H                # H rows
_WB_WA2B = 5 * _H                 # 2H rows : layer-2 bwd i2h, fwd-input half
_WB_WB2B = 7 * _H                 # 2H rows : layer-2 bwd i2h, bwd-input half
_WB_FCWF = 9 * _H                 # H rows
_WB_FCWB = 10 * _H                # H rows
_WB_FLOW = 11 * _H                # flow blocks start here
_WB_BLOCK_ROWS = _B_LANES + INPUT_SIZE + (N_LIN - 1) * _B_LANES   # 392
_WB_ROWS = _WB_FLOW + N_BLOCKS * _WB_BLOCK_ROWS

# ---- constant-rows slab (lane width 256), one row per vector ----
_ROW_B1 = 0
_ROW_B2F = 1
_ROW_B2B = 2
_ROW_FCB = 3
_ROW_FLOW = 4
_ROWS_PER_BLOCK = 1 + (N_LIN - 1) + 6     # b0 + deeper biases + mask + 5 BN consts
_ROWS_USED = _ROW_FLOW + N_BLOCKS * _ROWS_PER_BLOCK
_ROWS_TOTAL = ((_ROWS_USED + 7) // 8) * 8

_VMEM = pl.BlockSpec(memory_space=pltpu.MemorySpace.VMEM)


# ============================ fused CNF kernel ===============================
def cnf_kernel(x_ref, y_ref, wa_ref, wb_ref, rows_ref, out_ref):
    T, B, H = SEQ_LEN, BATCH_PAD, RNN_HIDDEN
    H2, H4 = 2 * H, 4 * H
    C, I, FH = COND_LABEL_SIZE, INPUT_SIZE, FLOW_HIDDEN

    def dot(a, b):
        return jnp.dot(a, b, preferred_element_type=jnp.float32)

    # ---- static lane masks ----
    lane_a = lax.broadcasted_iota(jnp.int32, (B, _A_LANES), 1)
    fwd_lanes = (lane_a % H2) < H            # fwd-direction lanes of fused layout
    tanh_a = lane_a >= 3 * H2                # g-gate lanes ([i|f|o|g] groups of 2H)
    lane_b = lax.broadcasted_iota(jnp.int32, (B, H4), 1)
    tanh_b = lane_b >= 3 * H                 # g-gate lanes, single direction
    flow_tanh = lane_b < FH                  # s-net lanes of fused s|t hidden

    def lstm_act(gates, tanh_mask):
        # one full-vreg sigmoid + one full-vreg tanh (gates laid out [i|f|o|g])
        return jnp.where(tanh_mask, jnp.tanh(gates), jax.nn.sigmoid(gates))

    # ---------------- BiRNN layer 1: fused fwd+bwd recurrence ----------------
    x2 = x_ref[...]                                            # (T*B, D) time-major
    wih1 = wa_ref[_WA_WIH1:_WA_WIH1 + DIMS, :]                 # (D, 256)
    whh1 = wa_ref[_WA_WHH1:_WA_WHH1 + H2, :]                   # (2H, 256)
    gx1 = dot(x2, wih1) + rows_ref[_ROW_B1:_ROW_B1 + 1, :]     # (T*B, 256)

    hcat = jnp.zeros((B, H2), jnp.float32)                     # [h_fwd | h_bwd]
    ccat = jnp.zeros((B, H2), jnp.float32)
    hsteps = []                                                # step s: [o1f(s) | o1b(T-1-s)]
    for s in range(T):
        g_fwd = gx1[s * B:(s + 1) * B]
        g_bwd = gx1[(T - 1 - s) * B:(T - s) * B]
        gates = jnp.where(fwd_lanes, g_fwd, g_bwd) + dot(hcat, whh1)
        a = lstm_act(gates, tanh_a)
        i_g, f_g = a[:, 0:H2], a[:, H2:2 * H2]
        o_g, g_g = a[:, 2 * H2:3 * H2], a[:, 3 * H2:4 * H2]
        ccat = f_g * ccat + i_g * g_g
        hcat = o_g * jnp.tanh(ccat)
        hsteps.append(hcat)
    hsteps_all = jnp.concatenate(hsteps, axis=0)               # (T*B, 2H), step-major

    # ---------------- layer 2 forward: hoisted i2h, unrolled recurrence ------
    wa2f = wb_ref[_WB_WA2F:_WB_WA2F + H2, :]
    wb2f = wb_ref[_WB_WB2F:_WB_WB2F + H2, :]
    whh2f = wb_ref[_WB_WHH2F:_WB_WHH2F + H, :]
    gx2_f = dot(hsteps_all, wa2f) + rows_ref[_ROW_B2F:_ROW_B2F + 1, 0:H4]  # time s
    gx2_b = dot(hsteps_all, wb2f)                                          # time T-1-s

    h2 = jnp.zeros((B, H), jnp.float32)
    c2 = jnp.zeros((B, H), jnp.float32)
    for t in range(T):
        gates = (gx2_f[t * B:(t + 1) * B]
                 + gx2_b[(T - 1 - t) * B:(T - t) * B]
                 + dot(h2, whh2f))
        a = lstm_act(gates, tanh_b)
        i_g, f_g = a[:, 0:H], a[:, H:2 * H]
        o_g, g_g = a[:, 2 * H:3 * H], a[:, 3 * H:4 * H]
        c2 = f_g * c2 + i_g * g_g
        h2 = o_g * jnp.tanh(c2)
    h2f_last = h2

    # ---- layer 2 backward at the LAST timestep only: its first step from the
    #      zero initial state, so W_hh contributes nothing (valid because the
    #      fc consumes out[:, -1, :]). ----
    wa2b = wb_ref[_WB_WA2B:_WB_WA2B + H2, :]
    wb2b = wb_ref[_WB_WB2B:_WB_WB2B + H2, :]
    g2b = (dot(hsteps[T - 1], wa2b) + dot(hsteps[0], wb2b)
           + rows_ref[_ROW_B2B:_ROW_B2B + 1, 0:H4])
    a = lstm_act(g2b, tanh_b)
    c2b = a[:, 0:H] * a[:, 3 * H:4 * H]                        # c = f*0 + i*g
    h2b_last = a[:, 2 * H:3 * H] * jnp.tanh(c2b)

    # ---------------- fc : cond kept lane-padded to 128 (lanes C: exactly 0) -
    fcwf = wb_ref[_WB_FCWF:_WB_FCWF + H, :]
    fcwb = wb_ref[_WB_FCWB:_WB_FCWB + H, :]
    cond = (dot(h2f_last, fcwf) + dot(h2b_last, fcwb)
            + rows_ref[_ROW_FCB:_ROW_FCB + 1, 0:H4])           # (B, 128)

    # ---------------- RealNVP: n_blocks of [coupling -> BatchNorm] -----------
    z = y_ref[...]                                             # (B, I)
    log_det = jnp.zeros((B, I), jnp.float32)
    for blk in range(N_BLOCKS):
        wbase = _WB_FLOW + blk * _WB_BLOCK_ROWS
        rbase = _ROW_FLOW + blk * _ROWS_PER_BLOCK
        w0c = wb_ref[wbase:wbase + H4, :]                      # (128, 128)
        w0x = wb_ref[wbase + H4:wbase + H4 + I, :]             # (I, 128)
        mask = rows_ref[rbase + N_LIN + 0:rbase + N_LIN + 1, 0:I]
        rmean = rows_ref[rbase + N_LIN + 1:rbase + N_LIN + 2, 0:I]
        inv_std = rows_ref[rbase + N_LIN + 2:rbase + N_LIN + 3, 0:I]
        gamma = rows_ref[rbase + N_LIN + 3:rbase + N_LIN + 4, 0:I]
        beta = rows_ref[rbase + N_LIN + 4:rbase + N_LIN + 5, 0:I]
        ld_bn = rows_ref[rbase + N_LIN + 5:rbase + N_LIN + 6, 0:I]

        mz = z * mask
        # fused s|t nets: one matmul chain serves both; tanh/relu via lane mask
        st = dot(cond, w0c) + dot(mz, w0x) + rows_ref[rbase:rbase + 1, 0:H4]
        for li in range(N_LIN - 1):
            st = jnp.where(flow_tanh, jnp.tanh(st), jnp.maximum(st, 0.0))
            woff = wbase + H4 + I + li * H4
            st = (dot(st, wb_ref[woff:woff + H4, :])
                  + rows_ref[rbase + 1 + li:rbase + 2 + li, 0:H4])
        s = st[:, 0:I]                       # s-net output (B, I)
        t_shift = st[:, I:2 * I]             # t-net output (B, I)

        u = mz + (1.0 - mask) * (z - t_shift) * jnp.exp(-s)
        ld = -(1.0 - mask) * s               # coupling log|det du/dx|

        # BatchNorm with precomputed eval-mode constants (running statistics).
        # TODO(synk): training-mode BatchNorm (batch stats + its log-det) not implemented.
        z = gamma * (u - rmean) * inv_std + beta
        log_det = log_det + ld + ld_bn

    out_ref[...] = jnp.concatenate([z, log_det], axis=-1)


# ================================ wrapper ====================================
@jax.jit
def cnf_forward(y, x, wA, wB, rows):
    B, T, D = x.shape
    BP = BATCH_PAD
    # pad batch to one full sublane tile; pad rows are dead lanes already paid for
    xp = jnp.zeros((BP, T, D), jnp.float32).at[:B].set(x.astype(jnp.float32))
    yp = jnp.zeros((BP, INPUT_SIZE), jnp.float32).at[:B].set(y.astype(jnp.float32))
    # time-major flatten so one matmul covers every timestep's i2h contribution
    x2 = jnp.transpose(xp, (1, 0, 2)).reshape(T * BP, D)
    out = pl.pallas_call(
        cnf_kernel,
        out_shape=jax.ShapeDtypeStruct((BP, 2 * INPUT_SIZE), jnp.float32),
        in_specs=[_VMEM] * 5,
        out_specs=_VMEM,
    )(x2, yp, wA, wB, rows)
    # NOTE: grid-less single-TensorCore call; once many sequences are batched
    # per call, add a batch-tile grid with dimension_semantics=("parallel",)
    # so v7x's second TensorCore is used.
    return out[:B, :INPUT_SIZE], out[:B, INPUT_SIZE:]


# =========================== deterministic init ==============================
def init_raw_params(key):
    """Parameters in a PyTorch-like layout (LSTM: (4H, K) weights, two biases)."""
    keys = jax.random.split(key, 64)
    kit = iter(keys)

    def w(shape, scale=0.1):
        return (scale * jax.random.normal(next(kit), shape)).astype(jnp.float32)

    H, D, C, I, FH = RNN_HIDDEN, DIMS, COND_LABEL_SIZE, INPUT_SIZE, FLOW_HIDDEN

    def lstm_dir(in_dim):
        return dict(w_ih=w((4 * H, in_dim)), w_hh=w((4 * H, H)),
                    b_ih=w((4 * H,)), b_hh=w((4 * H,)))

    birnn = dict(l1f=lstm_dir(D), l1b=lstm_dir(D),
                 l2f=lstm_dir(2 * H), l2b=lstm_dir(2 * H),
                 fc_w=w((C, 2 * H)), fc_b=w((C,)))

    dims = [C + I] + [FH] * (N_HIDDEN + 1) + [I]
    flow = []
    for _ in range(N_BLOCKS):
        flow.append(dict(
            s_w=[w((dims[i + 1], dims[i])) for i in range(N_LIN)],
            s_b=[w((dims[i + 1],)) for i in range(N_LIN)],
            t_w=[w((dims[i + 1], dims[i])) for i in range(N_LIN)],
            t_b=[w((dims[i + 1],)) for i in range(N_LIN)],
            log_gamma=jnp.zeros((I,), jnp.float32),
            beta=jnp.zeros((I,), jnp.float32),
            running_mean=jnp.zeros((I,), jnp.float32),
            running_var=jnp.ones((I,), jnp.float32)))
    return dict(birnn=birnn, flow=flow)


def pack_params(raw):
    """Repack all parameters into 3 contiguous VMEM slabs (3 DMAs total)."""
    H, D, C, I, FH = RNN_HIDDEN, DIMS, COND_LABEL_SIZE, INPUT_SIZE, FLOW_HIDDEN
    H4 = 4 * H
    f32 = jnp.float32
    br = raw['birnn']

    def reorder(w):                       # [..., 4H] cols [i|f|g|o] -> [i|f|o|g]
        return jnp.concatenate([w[..., 0:H], w[..., H:2 * H],
                                w[..., 3 * H:4 * H], w[..., 2 * H:3 * H]], axis=-1)

    def i2h(p):
        return reorder(p['w_ih'].T)                            # (K, 4H)

    def h2h(p):
        return reorder(p['w_hh'].T)                            # (H, 4H)

    def bias(p):
        return reorder((p['b_ih'] + p['b_hh']).reshape(1, H4)) # fused single bias

    def interleave(wf, wb):               # (K,4H)+(K,4H) -> (K,8H), per-gate [fwd|bwd]
        cols = []
        for g in range(4):
            cols += [wf[:, g * H:(g + 1) * H], wb[:, g * H:(g + 1) * H]]
        return jnp.concatenate(cols, axis=1)

    zH = jnp.zeros((H, H4), f32)

    # --- slab A (256 lanes): fused layer-1 weights ---
    wih1 = interleave(i2h(br['l1f']), i2h(br['l1b']))                    # (D, 256)
    whh1 = jnp.concatenate([interleave(h2h(br['l1f']), zH),
                            interleave(zH, h2h(br['l1b']))], axis=0)     # (2H, 256)
    wA = jnp.concatenate([wih1, whh1], axis=0).astype(f32)

    # --- slab B (128 lanes), every matrix at an 8-row-aligned offset ---
    def pad_lanes(m):
        out = jnp.zeros((m.shape[0], H4), f32)
        return out.at[:, :m.shape[1]].set(m)

    w2f, w2b = i2h(br['l2f']), i2h(br['l2b'])                            # (2H, 4H)
    wb_mats = [
        jnp.concatenate([w2f[:H], zH], axis=0),     # acts on hsteps fwd half
        jnp.concatenate([zH, w2f[H:]], axis=0),     # acts on hsteps bwd half
        h2h(br['l2f']),
        jnp.concatenate([w2b[:H], zH], axis=0),
        jnp.concatenate([zH, w2b[H:]], axis=0),
        pad_lanes(br['fc_w'][:, :H].T),             # (H, C) -> (H, 128)
        pad_lanes(br['fc_w'][:, H:].T),
    ]

    # --- constant rows slab (256 lanes) ---
    def row(v):
        v = jnp.asarray(v, f32).reshape(1, -1)
        out = jnp.zeros((1, _A_LANES), f32)
        return out.at[:, :v.shape[1]].set(v)

    rows = [interleave(bias(br['l1f']), bias(br['l1b'])),                # b1 (1,256)
            row(bias(br['l2f'])), row(bias(br['l2b'])), row(br['fc_b'])]

    def block_diag(a, b):
        za = jnp.zeros((a.shape[0], b.shape[1]), f32)
        zb = jnp.zeros((b.shape[0], a.shape[1]), f32)
        return jnp.concatenate([jnp.concatenate([a, za], axis=1),
                                jnp.concatenate([zb, b], axis=1)], axis=0)

    mask = (jnp.arange(I) % 2).astype(f32)
    for blk in raw['flow']:
        s_w, s_b, t_w, t_b = blk['s_w'], blk['s_b'], blk['t_w'], blk['t_b']
        # first linear sees [cond | masked-x]; s|t fused on the output axis;
        # cond is lane-padded to 128 so its weight gets 128 (mostly zero) rows
        w0c = jnp.zeros((H4, H4), f32).at[:C, :2 * FH].set(
            jnp.concatenate([s_w[0][:, :C].T, t_w[0][:, :C].T], axis=1))
        w0x = pad_lanes(jnp.concatenate([s_w[0][:, C:].T, t_w[0][:, C:].T], axis=1))
        wb_mats += [w0c, w0x]
        for li in range(1, N_LIN):
            bd = block_diag(s_w[li].T, t_w[li].T)
            wb_mats.append(jnp.zeros((H4, H4), f32)
                           .at[:bd.shape[0], :bd.shape[1]].set(bd))
        rows += [row(jnp.concatenate([s_b[0], t_b[0]]))]
        rows += [row(jnp.concatenate([s_b[li], t_b[li]])) for li in range(1, N_LIN)]
        inv_std = 1.0 / jnp.sqrt(blk['running_var'] + BN_EPS)
        rows += [row(mask), row(blk['running_mean']), row(inv_std),
                 row(jnp.exp(blk['log_gamma'])), row(blk['beta']),
                 row(blk['log_gamma'] - 0.5 * jnp.log(blk['running_var'] + BN_EPS))]
        mask = 1.0 - mask

    wB = jnp.concatenate(wb_mats, axis=0).astype(f32)
    rows_slab = jnp.concatenate(
        rows + [jnp.zeros((_ROWS_TOTAL - len(rows), _A_LANES), f32)], axis=0)

    assert wA.shape == (_WA_ROWS, _A_LANES)
    assert wB.shape == (_WB_ROWS, _B_LANES)
    assert rows_slab.shape == (_ROWS_TOTAL, _A_LANES)
    return wA, wB, rows_slab


if __name__ == "__main__":
    key = jax.random.PRNGKey(0)
    ky, kx, kp = jax.random.split(key, 3)
    y = jax.random.normal(ky, (BATCH, INPUT_SIZE), dtype=jnp.float32)
    x = jax.random.normal(kx, (BATCH, SEQ_LEN, DIMS), dtype=jnp.float32)
    wA, wB, rows = pack_params(init_raw_params(kp))

    z, log_det = cnf_forward(y, x, wA, wB, rows)
    jax.block_until_ready((z, log_det))

    assert z.shape == (BATCH, INPUT_SIZE)
    assert log_det.shape == (BATCH, INPUT_SIZE)
    assert z.dtype == jnp.float32 and log_det.dtype == jnp.float32
    assert bool(jnp.all(jnp.isfinite(z))) and bool(jnp.all(jnp.isfinite(log_det)))
    print("KERNEL_OK")
</pallas_src>

<mosaic_0001>
module attributes {stable_mosaic.version = 11 : i64} {
  func.func @cnf_kernel(%arg0: memref<64x8xf32, #tpu.memory_space<vmem>>, %arg1: memref<8x8xf32, #tpu.memory_space<vmem>>, %arg2: memref<72x256xf32, #tpu.memory_space<vmem>>, %arg3: memref<1136x128xf32, #tpu.memory_space<vmem>>, %arg4: memref<24x256xf32, #tpu.memory_space<vmem>>, %arg5: memref<8x16xf32, #tpu.memory_space<vmem>>) attributes {dimension_semantics = [], scalar_prefetch = 0 : i64, scratch_operands = 0 : i64, tpu.core_type = #tpu.core_type<tc>} {
    %0 = tpu.iota {dimensions = array<i32: 1>} : vector<8x256xi32>
    %c64_i32 = arith.constant 64 : i32
    %c0_i32 = arith.constant 0 : i32
    %1 = arith.cmpi eq, %c64_i32, %c0_i32 : i32
    %c1_i32 = arith.constant 1 : i32
    %2 = arith.select %1, %c1_i32, %c64_i32 : i32
    %3 = vector.broadcast %2 : i32 to vector<8x256xi32>
    %4 = arith.remsi %0, %3 : vector<8x256xi32>
    %c0_i32_0 = arith.constant 0 : i32
    %5 = vector.broadcast %c0_i32_0 : i32 to vector<8x256xi32>
    %6 = arith.cmpi ne, %4, %5 : vector<8x256xi32>
    %c0_i32_1 = arith.constant 0 : i32
    %7 = vector.broadcast %c0_i32_1 : i32 to vector<8x256xi32>
    %8 = arith.cmpi slt, %4, %7 : vector<8x256xi32>
    %c0_i32_2 = arith.constant 0 : i32
    %9 = arith.cmpi slt, %2, %c0_i32_2 : i32
    %10 = vector.broadcast %9 : i1 to vector<8x256xi1>
    %11 = vector.broadcast %10 : vector<8x256xi1> to vector<8x256xi1>
    %12 = arith.xori %8, %11 : vector<8x256xi1>
    %13 = arith.andi %12, %6 : vector<8x256xi1>
    %14 = vector.broadcast %2 : i32 to vector<8x256xi32>
    %15 = arith.addi %4, %14 : vector<8x256xi32>
    %16 = arith.select %13, %15, %4 : vector<8x256xi1>, vector<8x256xi32>
    %c32_i32 = arith.constant 32 : i32
    %17 = vector.broadcast %c32_i32 : i32 to vector<8x256xi32>
    %18 = arith.cmpi slt, %16, %17 : vector<8x256xi32>
    %c192_i32 = arith.constant 192 : i32
    %19 = vector.broadcast %c192_i32 : i32 to vector<8x256xi32>
    %20 = arith.cmpi sge, %0, %19 : vector<8x256xi32>
    %21 = tpu.iota {dimensions = array<i32: 1>} : vector<8x128xi32>
    %c96_i32 = arith.constant 96 : i32
    %22 = vector.broadcast %c96_i32 : i32 to vector<8x128xi32>
    %23 = arith.cmpi sge, %21, %22 : vector<8x128xi32>
    %c32_i32_3 = arith.constant 32 : i32
    %24 = vector.broadcast %c32_i32_3 : i32 to vector<8x128xi32>
    %25 = arith.cmpi slt, %21, %24 : vector<8x128xi32>
    %c0 = arith.constant 0 : index
    %c0_4 = arith.constant 0 : index
    %26 = vector.load %arg0[%c0, %c0_4] : memref<64x8xf32, #tpu.memory_space<vmem>>, vector<64x8xf32>
    %c0_5 = arith.constant 0 : index
    %c0_6 = arith.constant 0 : index
    %27 = vector.load %arg2[%c0_5, %c0_6] : memref<72x256xf32, #tpu.memory_space<vmem>>, vector<8x256xf32>
    %c8 = arith.constant 8 : index
    %c0_7 = arith.constant 0 : index
    %28 = vector.load %arg2[%c8, %c0_7] : memref<72x256xf32, #tpu.memory_space<vmem>>, vector<64x256xf32>
    %cst = arith.constant dense<0.000000e+00> : vector<64x256xf32>
    %29 = tpu.matmul %26, %27, %cst {dimension_numbers = #tpu.dot_dimension_numbers<[1], [0], [0], [1], [0, 0, 1, 1], [], []>} : vector<64x8xf32>, vector<8x256xf32>, vector<64x256xf32> -> vector<64x256xf32>
    %c0_8 = arith.constant 0 : index
    %c0_9 = arith.constant 0 : index
    %30 = vector.load %arg4[%c0_8, %c0_9] : memref<24x256xf32, #tpu.memory_space<vmem>>, vector<1x256xf32>
    %31 = vector.broadcast %30 : vector<1x256xf32> to vector<64x256xf32>
    %32 = arith.addf %29, %31 : vector<64x256xf32>
    %cst_10 = arith.constant 0.000000e+00 : f32
    %33 = vector.broadcast %cst_10 : f32 to vector<8x64xf32>
    %cst_11 = arith.constant 0.000000e+00 : f32
    %34 = vector.broadcast %cst_11 : f32 to vector<8x64xf32>
    %35 = vector.extract_strided_slice %32 {offsets = [0, 0], sizes = [8, 256], strides = [1, 1]} : vector<64x256xf32> to vector<8x256xf32>
    %36 = vector.extract_strided_slice %32 {offsets = [56, 0], sizes = [8, 256], strides = [1, 1]} : vector<64x256xf32> to vector<8x256xf32>
    %37 = arith.select %18, %35, %36 : vector<8x256xi1>, vector<8x256xf32>
    %cst_12 = arith.constant dense<0.000000e+00> : vector<8x256xf32>
    %38 = tpu.matmul %33, %28, %cst_12 {dimension_numbers = #tpu.dot_dimension_numbers<[1], [0], [0], [1], [0, 0, 1, 1], [], []>} : vector<8x64xf32>, vector<64x256xf32>, vector<8x256xf32> -> vector<8x256xf32>
    %39 = arith.addf %37, %38 : vector<8x256xf32>
    %40 = math.tanh %39 : vector<8x256xf32>
    %41 = arith.negf %39 : vector<8x256xf32>
    %42 = math.exp %41 : vector<8x256xf32>
    %cst_13 = arith.constant 1.000000e+00 : f32
    %43 = vector.broadcast %cst_13 : f32 to vector<8x256xf32>
    %44 = arith.addf %43, %42 : vector<8x256xf32>
    %45 = arith.divf %43, %44 : vector<8x256xf32>
    %46 = arith.select %20, %40, %45 : vector<8x256xi1>, vector<8x256xf32>
    %47 = vector.extract_strided_slice %46 {offsets = [0, 0], sizes = [8, 64], strides = [1, 1]} : vector<8x256xf32> to vector<8x64xf32>
    %48 = vector.extract_strided_slice %46 {offsets = [0, 64], sizes = [8, 64], strides = [1, 1]} : vector<8x256xf32> to vector<8x64xf32>
    %49 = vector.extract_strided_slice %46 {offsets = [0, 128], sizes = [8, 64], strides = [1, 1]} : vector<8x256xf32> to vector<8x64xf32>
    %50 = vector.extract_strided_slice %46 {offsets = [0, 192], sizes = [8, 64], strides = [1, 1]} : vector<8x256xf32> to vector<8x64xf32>
    %51 = arith.mulf %48, %34 : vector<8x64xf32>
    %52 = arith.mulf %47, %50 : vector<8x64xf32>
    %53 = arith.addf %51, %52 : vector<8x64xf32>
    %54 = math.tanh %53 : vector<8x64xf32>
    %55 = arith.mulf %49, %54 : vector<8x64xf32>
    %56 = vector.extract_strided_slice %32 {offsets = [8, 0], sizes = [8, 256], strides = [1, 1]} : vector<64x256xf32> to vector<8x256xf32>
    %57 = vector.extract_strided_slice %32 {offsets = [48, 0], sizes = [8, 256], strides = [1, 1]} : vector<64x256xf32> to vector<8x256xf32>
    %58 = arith.select %18, %56, %57 : vector<8x256xi1>, vector<8x256xf32>
    %cst_14 = arith.constant dense<0.000000e+00> : vector<8x256xf32>
    %59 = tpu.matmul %55, %28, %cst_14 {dimension_numbers = #tpu.dot_dimension_numbers<[1], [0], [0], [1], [0, 0, 1, 1], [], []>} : vector<8x64xf32>, vector<64x256xf32>, vector<8x256xf32> -> vector<8x256xf32>
    %60 = arith.addf %58, %59 : vector<8x256xf32>
    %61 = math.tanh %60 : vector<8x256xf32>
    %62 = arith.negf %60 : vector<8x256xf32>
    %63 = math.exp %62 : vector<8x256xf32>
    %cst_15 = arith.constant 1.000000e+00 : f32
    %64 = vector.broadcast %cst_15 : f32 to vector<8x256xf32>
    %65 = arith.addf %64, %63 : vector<8x256xf32>
    %66 = arith.divf %64, %65 : vector<8x256xf32>
    %67 = arith.select %20, %61, %66 : vector<8x256xi1>, vector<8x256xf32>
    %68 = vector.extract_strided_slice %67 {offsets = [0, 0], sizes = [8, 64], strides = [1, 1]} : vector<8x256xf32> to vector<8x64xf32>
    %69 = vector.extract_strided_slice %67 {offsets = [0, 64], sizes = [8, 64], strides = [1, 1]} : vector<8x256xf32> to vector<8x64xf32>
    %70 = vector.extract_strided_slice %67 {offsets = [0, 128], sizes = [8, 64], strides = [1, 1]} : vector<8x256xf32> to vector<8x64xf32>
    %71 = vector.extract_strided_slice %67 {offsets = [0, 192], sizes = [8, 64], strides = [1, 1]} : vector<8x256xf32> to vector<8x64xf32>
    %72 = arith.mulf %69, %53 : vector<8x64xf32>
    %73 = arith.mulf %68, %71 : vector<8x64xf32>
    %74 = arith.addf %72, %73 : vector<8x64xf32>
    %75 = math.tanh %74 : vector<8x64xf32>
    %76 = arith.mulf %70, %75 : vector<8x64xf32>
    %77 = vector.extract_strided_slice %32 {offsets = [16, 0], sizes = [8, 256], strides = [1, 1]} : vector<64x256xf32> to vector<8x256xf32>
    %78 = vector.extract_strided_slice %32 {offsets = [40, 0], sizes = [8, 256], strides = [1, 1]} : vector<64x256xf32> to vector<8x256xf32>
    %79 = arith.select %18, %77, %78 : vector<8x256xi1>, vector<8x256xf32>
    %cst_16 = arith.constant dense<0.000000e+00> : vector<8x256xf32>
    %80 = tpu.matmul %76, %28, %cst_16 {dimension_numbers = #tpu.dot_dimension_numbers<[1], [0], [0], [1], [0, 0, 1, 1], [], []>} : vector<8x64xf32>, vector<64x256xf32>, vector<8x256xf32> -> vector<8x256xf32>
    %81 = arith.addf %79, %80 : vector<8x256xf32>
    %82 = math.tanh %81 : vector<8x256xf32>
    %83 = arith.negf %81 : vector<8x256xf32>
    %84 = math.exp %83 : vector<8x256xf32>
    %cst_17 = arith.constant 1.000000e+00 : f32
    %85 = vector.broadcast %cst_17 : f32 to vector<8x256xf32>
    %86 = arith.addf %85, %84 : vector<8x256xf32>
    %87 = arith.divf %85, %86 : vector<8x256xf32>
    %88 = arith.select %20, %82, %87 : vector<8x256xi1>, vector<8x256xf32>
    %89 = vector.extract_strided_slice %88 {offsets = [0, 0], sizes = [8, 64], strides = [1, 1]} : vector<8x256xf32> to vector<8x64xf32>
    %90 = vector.extract_strided_slice %88 {offsets = [0, 64], sizes = [8, 64], strides = [1, 1]} : vector<8x256xf32> to vector<8x64xf32>
    %91 = vector.extract_strided_slice %88 {offsets = [0, 128], sizes = [8, 64], strides = [1, 1]} : vector<8x256xf32> to vector<8x64xf32>
    %92 = vector.extract_strided_slice %88 {offsets = [0, 192], sizes = [8, 64], strides = [1, 1]} : vector<8x256xf32> to vector<8x64xf32>
    %93 = arith.mulf %90, %74 : vector<8x64xf32>
    %94 = arith.mulf %89, %92 : vector<8x64xf32>
    %95 = arith.addf %93, %94 : vector<8x64xf32>
    %96 = math.tanh %95 : vector<8x64xf32>
    %97 = arith.mulf %91, %96 : vector<8x64xf32>
    %98 = vector.extract_strided_slice %32 {offsets = [24, 0], sizes = [8, 256], strides = [1, 1]} : vector<64x256xf32> to vector<8x256xf32>
    %99 = vector.extract_strided_slice %32 {offsets = [32, 0], sizes = [8, 256], strides = [1, 1]} : vector<64x256xf32> to vector<8x256xf32>
    %100 = arith.select %18, %98, %99 : vector<8x256xi1>, vector<8x256xf32>
    %cst_18 = arith.constant dense<0.000000e+00> : vector<8x256xf32>
    %101 = tpu.matmul %97, %28, %cst_18 {dimension_numbers = #tpu.dot_dimension_numbers<[1], [0], [0], [1], [0, 0, 1, 1], [], []>} : vector<8x64xf32>, vector<64x256xf32>, vector<8x256xf32> -> vector<8x256xf32>
    %102 = arith.addf %100, %101 : vector<8x256xf32>
    %103 = math.tanh %102 : vector<8x256xf32>
    %104 = arith.negf %102 : vector<8x256xf32>
    %105 = math.exp %104 : vector<8x256xf32>
    %cst_19 = arith.constant 1.000000e+00 : f32
    %106 = vector.broadcast %cst_19 : f32 to vector<8x256xf32>
    %107 = arith.addf %106, %105 : vector<8x256xf32>
    %108 = arith.divf %106, %107 : vector<8x256xf32>
    %109 = arith.select %20, %103, %108 : vector<8x256xi1>, vector<8x256xf32>
    %110 = vector.extract_strided_slice %109 {offsets = [0, 0], sizes = [8, 64], strides = [1, 1]} : vector<8x256xf32> to vector<8x64xf32>
    %111 = vector.extract_strided_slice %109 {offsets = [0, 64], sizes = [8, 64], strides = [1, 1]} : vector<8x256xf32> to vector<8x64xf32>
    %112 = vector.extract_strided_slice %109 {offsets = [0, 128], sizes = [8, 64], strides = [1, 1]} : vector<8x256xf32> to vector<8x64xf32>
    %113 = vector.extract_strided_slice %109 {offsets = [0, 192], sizes = [8, 64], strides = [1, 1]} : vector<8x256xf32> to vector<8x64xf32>
    %114 = arith.mulf %111, %95 : vector<8x64xf32>
    %115 = arith.mulf %110, %113 : vector<8x64xf32>
    %116 = arith.addf %114, %115 : vector<8x64xf32>
    %117 = math.tanh %116 : vector<8x64xf32>
    %118 = arith.mulf %112, %117 : vector<8x64xf32>
    %119 = vector.extract_strided_slice %32 {offsets = [32, 0], sizes = [8, 256], strides = [1, 1]} : vector<64x256xf32> to vector<8x256xf32>
    %120 = vector.extract_strided_slice %32 {offsets = [24, 0], sizes = [8, 256], strides = [1, 1]} : vector<64x256xf32> to vector<8x256xf32>
    %121 = arith.select %18, %119, %120 : vector<8x256xi1>, vector<8x256xf32>
    %cst_20 = arith.constant dense<0.000000e+00> : vector<8x256xf32>
    %122 = tpu.matmul %118, %28, %cst_20 {dimension_numbers = #tpu.dot_dimension_numbers<[1], [0], [0], [1], [0, 0, 1, 1], [], []>} : vector<8x64xf32>, vector<64x256xf32>, vector<8x256xf32> -> vector<8x256xf32>
    %123 = arith.addf %121, %122 : vector<8x256xf32>
    %124 = math.tanh %123 : vector<8x256xf32>
    %125 = arith.negf %123 : vector<8x256xf32>
    %126 = math.exp %125 : vector<8x256xf32>
    %cst_21 = arith.constant 1.000000e+00 : f32
    %127 = vector.broadcast %cst_21 : f32 to vector<8x256xf32>
    %128 = arith.addf %127, %126 : vector<8x256xf32>
    %129 = arith.divf %127, %128 : vector<8x256xf32>
    %130 = arith.select %20, %124, %129 : vector<8x256xi1>, vector<8x256xf32>
    %131 = vector.extract_strided_slice %130 {offsets = [0, 0], sizes = [8, 64], strides = [1, 1]} : vector<8x256xf32> to vector<8x64xf32>
    %132 = vector.extract_strided_slice %130 {offsets = [0, 64], sizes = [8, 64], strides = [1, 1]} : vector<8x256xf32> to vector<8x64xf32>
    %133 = vector.extract_strided_slice %130 {offsets = [0, 128], sizes = [8, 64], strides = [1, 1]} : vector<8x256xf32> to vector<8x64xf32>
    %134 = vector.extract_strided_slice %130 {offsets = [0, 192], sizes = [8, 64], strides = [1, 1]} : vector<8x256xf32> to vector<8x64xf32>
    %135 = arith.mulf %132, %116 : vector<8x64xf32>
    %136 = arith.mulf %131, %134 : vector<8x64xf32>
    %137 = arith.addf %135, %136 : vector<8x64xf32>
    %138 = math.tanh %137 : vector<8x64xf32>
    %139 = arith.mulf %133, %138 : vector<8x64xf32>
    %140 = vector.extract_strided_slice %32 {offsets = [40, 0], sizes = [8, 256], strides = [1, 1]} : vector<64x256xf32> to vector<8x256xf32>
    %141 = vector.extract_strided_slice %32 {offsets = [16, 0], sizes = [8, 256], strides = [1, 1]} : vector<64x256xf32> to vector<8x256xf32>
    %142 = arith.select %18, %140, %141 : vector<8x256xi1>, vector<8x256xf32>
    %cst_22 = arith.constant dense<0.000000e+00> : vector<8x256xf32>
    %143 = tpu.matmul %139, %28, %cst_22 {dimension_numbers = #tpu.dot_dimension_numbers<[1], [0], [0], [1], [0, 0, 1, 1], [], []>} : vector<8x64xf32>, vector<64x256xf32>, vector<8x256xf32> -> vector<8x256xf32>
    %144 = arith.addf %142, %143 : vector<8x256xf32>
    %145 = math.tanh %144 : vector<8x256xf32>
    %146 = arith.negf %144 : vector<8x256xf32>
    %147 = math.exp %146 : vector<8x256xf32>
    %cst_23 = arith.constant 1.000000e+00 : f32
    %148 = vector.broadcast %cst_23 : f32 to vector<8x256xf32>
    %149 = arith.addf %148, %147 : vector<8x256xf32>
    %150 = arith.divf %148, %149 : vector<8x256xf32>
    %151 = arith.select %20, %145, %150 : vector<8x256xi1>, vector<8x256xf32>
    %152 = vector.extract_strided_slice %151 {offsets = [0, 0], sizes = [8, 64], strides = [1, 1]} : vector<8x256xf32> to vector<8x64xf32>
    %153 = vector.extract_strided_slice %151 {offsets = [0, 64], sizes = [8, 64], strides = [1, 1]} : vector<8x256xf32> to vector<8x64xf32>
    %154 = vector.extract_strided_slice %151 {offsets = [0, 128], sizes = [8, 64], strides = [1, 1]} : vector<8x256xf32> to vector<8x64xf32>
    %155 = vector.extract_strided_slice %151 {offsets = [0, 192], sizes = [8, 64], strides = [1, 1]} : vector<8x256xf32> to vector<8x64xf32>
    %156 = arith.mulf %153, %137 : vector<8x64xf32>
    %157 = arith.mulf %152, %155 : vector<8x64xf32>
    %158 = arith.addf %156, %157 : vector<8x64xf32>
    %159 = math.tanh %158 : vector<8x64xf32>
    %160 = arith.mulf %154, %159 : vector<8x64xf32>
    %161 = vector.extract_strided_slice %32 {offsets = [48, 0], sizes = [8, 256], strides = [1, 1]} : vector<64x256xf32> to vector<8x256xf32>
    %162 = vector.extract_strided_slice %32 {offsets = [8, 0], sizes = [8, 256], strides = [1, 1]} : vector<64x256xf32> to vector<8x256xf32>
    %163 = arith.select %18, %161, %162 : vector<8x256xi1>, vector<8x256xf32>
    %cst_24 = arith.constant dense<0.000000e+00> : vector<8x256xf32>
    %164 = tpu.matmul %160, %28, %cst_24 {dimension_numbers = #tpu.dot_dimension_numbers<[1], [0], [0], [1], [0, 0, 1, 1], [], []>} : vector<8x64xf32>, vector<64x256xf32>, vector<8x256xf32> -> vector<8x256xf32>
    %165 = arith.addf %163, %164 : vector<8x256xf32>
    %166 = math.tanh %165 : vector<8x256xf32>
    %167 = arith.negf %165 : vector<8x256xf32>
    %168 = math.exp %167 : vector<8x256xf32>
    %cst_25 = arith.constant 1.000000e+00 : f32
    %169 = vector.broadcast %cst_25 : f32 to vector<8x256xf32>
    %170 = arith.addf %169, %168 : vector<8x256xf32>
    %171 = arith.divf %169, %170 : vector<8x256xf32>
    %172 = arith.select %20, %166, %171 : vector<8x256xi1>, vector<8x256xf32>
    %173 = vector.extract_strided_slice %172 {offsets = [0, 0], sizes = [8, 64], strides = [1, 1]} : vector<8x256xf32> to vector<8x64xf32>
    %174 = vector.extract_strided_slice %172 {offsets = [0, 64], sizes = [8, 64], strides = [1, 1]} : vector<8x256xf32> to vector<8x64xf32>
    %175 = vector.extract_strided_slice %172 {offsets = [0, 128], sizes = [8, 64], strides = [1, 1]} : vector<8x256xf32> to vector<8x64xf32>
    %176 = vector.extract_strided_slice %172 {offsets = [0, 192], sizes = [8, 64], strides = [1, 1]} : vector<8x256xf32> to vector<8x64xf32>
    %177 = arith.mulf %174, %158 : vector<8x64xf32>
    %178 = arith.mulf %173, %176 : vector<8x64xf32>
    %179 = arith.addf %177, %178 : vector<8x64xf32>
    %180 = math.tanh %179 : vector<8x64xf32>
    %181 = arith.mulf %175, %180 : vector<8x64xf32>
    %182 = vector.extract_strided_slice %32 {offsets = [56, 0], sizes = [8, 256], strides = [1, 1]} : vector<64x256xf32> to vector<8x256xf32>
    %183 = vector.extract_strided_slice %32 {offsets = [0, 0], sizes = [8, 256], strides = [1, 1]} : vector<64x256xf32> to vector<8x256xf32>
    %184 = arith.select %18, %182, %183 : vector<8x256xi1>, vector<8x256xf32>
    %cst_26 = arith.constant dense<0.000000e+00> : vector<8x256xf32>
    %185 = tpu.matmul %181, %28, %cst_26 {dimension_numbers = #tpu.dot_dimension_numbers<[1], [0], [0], [1], [0, 0, 1, 1], [], []>} : vector<8x64xf32>, vector<64x256xf32>, vector<8x256xf32> -> vector<8x256xf32>
    %186 = arith.addf %184, %185 : vector<8x256xf32>
    %187 = math.tanh %186 : vector<8x256xf32>
    %188 = arith.negf %186 : vector<8x256xf32>
    %189 = math.exp %188 : vector<8x256xf32>
    %cst_27 = arith.constant 1.000000e+00 : f32
    %190 = vector.broadcast %cst_27 : f32 to vector<8x256xf32>
    %191 = arith.addf %190, %189 : vector<8x256xf32>
    %192 = arith.divf %190, %191 : vector<8x256xf32>
    %193 = arith.select %20, %187, %192 : vector<8x256xi1>, vector<8x256xf32>
    %194 = vector.extract_strided_slice %193 {offsets = [0, 0], sizes = [8, 64], strides = [1, 1]} : vector<8x256xf32> to vector<8x64xf32>
    %195 = vector.extract_strided_slice %193 {offsets = [0, 64], sizes = [8, 64], strides = [1, 1]} : vector<8x256xf32> to vector<8x64xf32>
    %196 = vector.extract_strided_slice %193 {offsets = [0, 128], sizes = [8, 64], strides = [1, 1]} : vector<8x256xf32> to vector<8x64xf32>
    %197 = vector.extract_strided_slice %193 {offsets = [0, 192], sizes = [8, 64], strides = [1, 1]} : vector<8x256xf32> to vector<8x64xf32>
    %198 = arith.mulf %195, %179 : vector<8x64xf32>
    %199 = arith.mulf %194, %197 : vector<8x64xf32>
    %200 = arith.addf %198, %199 : vector<8x64xf32>
    %201 = math.tanh %200 : vector<8x64xf32>
    %202 = arith.mulf %196, %201 : vector<8x64xf32>
    %203 = tpu.concatenate %55, %76, %97, %118, %139, %160, %181, %202 in 0 : vector<8x64xf32>, vector<8x64xf32>, vector<8x64xf32>, vector<8x64xf32>, vector<8x64xf32>, vector<8x64xf32>, vector<8x64xf32>, vector<8x64xf32> -> vector<64x64xf32>
    %c0_28 = arith.constant 0 : index
    %c0_29 = arith.constant 0 : index
    %204 = vector.load %arg3[%c0_28, %c0_29] : memref<1136x128xf32, #tpu.memory_space<vmem>>, vector<64x128xf32>
    %c64 = arith.constant 64 : index
    %c0_30 = arith.constant 0 : index
    %205 = vector.load %arg3[%c64, %c0_30] : memref<1136x128xf32, #tpu.memory_space<vmem>>, vector<64x128xf32>
    %c128 = arith.constant 128 : index
    %c0_31 = arith.constant 0 : index
    %206 = vector.load %arg3[%c128, %c0_31] : memref<1136x128xf32, #tpu.memory_space<vmem>>, vector<32x128xf32>
    %cst_32 = arith.constant dense<0.000000e+00> : vector<64x128xf32>
    %207 = tpu.matmul %203, %204, %cst_32 {dimension_numbers = #tpu.dot_dimension_numbers<[1], [0], [0], [1], [0, 0, 1, 1], [], []>} : vector<64x64xf32>, vector<64x128xf32>, vector<64x128xf32> -> vector<64x128xf32>
    %c1 = arith.constant 1 : index
    %c0_33 = arith.constant 0 : index
    %208 = vector.load %arg4[%c1, %c0_33] : memref<24x256xf32, #tpu.memory_space<vmem>>, vector<1x128xf32>
    %209 = vector.broadcast %208 : vector<1x128xf32> to vector<64x128xf32>
    %210 = arith.addf %207, %209 : vector<64x128xf32>
    %cst_34 = arith.constant dense<0.000000e+00> : vector<64x128xf32>
    %211 = tpu.matmul %203, %205, %cst_34 {dimension_numbers = #tpu.dot_dimension_numbers<[1], [0], [0], [1], [0, 0, 1, 1], [], []>} : vector<64x64xf32>, vector<64x128xf32>, vector<64x128xf32> -> vector<64x128xf32>
    %cst_35 = arith.constant 0.000000e+00 : f32
    %212 = vector.broadcast %cst_35 : f32 to vector<8x32xf32>
    %cst_36 = arith.constant 0.000000e+00 : f32
    %213 = vector.broadcast %cst_36 : f32 to vector<8x32xf32>
    %214 = vector.extract_strided_slice %210 {offsets = [0, 0], sizes = [8, 128], strides = [1, 1]} : vector<64x128xf32> to vector<8x128xf32>
    %215 = vector.extract_strided_slice %211 {offsets = [56, 0], sizes = [8, 128], strides = [1, 1]} : vector<64x128xf32> to vector<8x128xf32>
    %216 = arith.addf %214, %215 : vector<8x128xf32>
    %cst_37 = arith.constant dense<0.000000e+00> : vector<8x128xf32>
    %217 = tpu.matmul %212, %206, %cst_37 {dimension_numbers = #tpu.dot_dimension_numbers<[1], [0], [0], [1], [0, 0, 1, 1], [], []>} : vector<8x32xf32>, vector<32x128xf32>, vector<8x128xf32> -> vector<8x128xf32>
    %218 = arith.addf %216, %217 : vector<8x128xf32>
    %219 = math.tanh %218 : vector<8x128xf32>
    %220 = arith.negf %218 : vector<8x128xf32>
    %221 = math.exp %220 : vector<8x128xf32>
    %cst_38 = arith.constant 1.000000e+00 : f32
    %222 = vector.broadcast %cst_38 : f32 to vector<8x128xf32>
    %223 = arith.addf %222, %221 : vector<8x128xf32>
    %224 = arith.divf %222, %223 : vector<8x128xf32>
    %225 = arith.select %23, %219, %224 : vector<8x128xi1>, vector<8x128xf32>
    %226 = vector.extract_strided_slice %225 {offsets = [0, 0], sizes = [8, 32], strides = [1, 1]} : vector<8x128xf32> to vector<8x32xf32>
    %227 = vector.extract_strided_slice %225 {offsets = [0, 32], sizes = [8, 32], strides = [1, 1]} : vector<8x128xf32> to vector<8x32xf32>
    %228 = vector.extract_strided_slice %225 {offsets = [0, 64], sizes = [8, 32], strides = [1, 1]} : vector<8x128xf32> to vector<8x32xf32>
    %229 = vector.extract_strided_slice %225 {offsets = [0, 96], sizes = [8, 32], strides = [1, 1]} : vector<8x128xf32> to vector<8x32xf32>
    %230 = arith.mulf %227, %213 : vector<8x32xf32>
    %231 = arith.mulf %226, %229 : vector<8x32xf32>
    %232 = arith.addf %230, %231 : vector<8x32xf32>
    %233 = math.tanh %232 : vector<8x32xf32>
    %234 = arith.mulf %228, %233 : vector<8x32xf32>
    %235 = vector.extract_strided_slice %210 {offsets = [8, 0], sizes = [8, 128], strides = [1, 1]} : vector<64x128xf32> to vector<8x128xf32>
    %236 = vector.extract_strided_slice %211 {offsets = [48, 0], sizes = [8, 128], strides = [1, 1]} : vector<64x128xf32> to vector<8x128xf32>
    %237 = arith.addf %235, %236 : vector<8x128xf32>
    %cst_39 = arith.constant dense<0.000000e+00> : vector<8x128xf32>
    %238 = tpu.matmul %234, %206, %cst_39 {dimension_numbers = #tpu.dot_dimension_numbers<[1], [0], [0], [1], [0, 0, 1, 1], [], []>} : vector<8x32xf32>, vector<32x128xf32>, vector<8x128xf32> -> vector<8x128xf32>
    %239 = arith.addf %237, %238 : vector<8x128xf32>
    %240 = math.tanh %239 : vector<8x128xf32>
    %241 = arith.negf %239 : vector<8x128xf32>
    %242 = math.exp %241 : vector<8x128xf32>
    %cst_40 = arith.constant 1.000000e+00 : f32
    %243 = vector.broadcast %cst_40 : f32 to vector<8x128xf32>
    %244 = arith.addf %243, %242 : vector<8x128xf32>
    %245 = arith.divf %243, %244 : vector<8x128xf32>
    %246 = arith.select %23, %240, %245 : vector<8x128xi1>, vector<8x128xf32>
    %247 = vector.extract_strided_slice %246 {offsets = [0, 0], sizes = [8, 32], strides = [1, 1]} : vector<8x128xf32> to vector<8x32xf32>
    %248 = vector.extract_strided_slice %246 {offsets = [0, 32], sizes = [8, 32], strides = [1, 1]} : vector<8x128xf32> to vector<8x32xf32>
    %249 = vector.extract_strided_slice %246 {offsets = [0, 64], sizes = [8, 32], strides = [1, 1]} : vector<8x128xf32> to vector<8x32xf32>
    %250 = vector.extract_strided_slice %246 {offsets = [0, 96], sizes = [8, 32], strides = [1, 1]} : vector<8x128xf32> to vector<8x32xf32>
    %251 = arith.mulf %248, %232 : vector<8x32xf32>
    %252 = arith.mulf %247, %250 : vector<8x32xf32>
    %253 = arith.addf %251, %252 : vector<8x32xf32>
    %254 = math.tanh %253 : vector<8x32xf32>
    %255 = arith.mulf %249, %254 : vector<8x32xf32>
    %256 = vector.extract_strided_slice %210 {offsets = [16, 0], sizes = [8, 128], strides = [1, 1]} : vector<64x128xf32> to vector<8x128xf32>
    %257 = vector.extract_strided_slice %211 {offsets = [40, 0], sizes = [8, 128], strides = [1, 1]} : vector<64x128xf32> to vector<8x128xf32>
    %258 = arith.addf %256, %257 : vector<8x128xf32>
    %cst_41 = arith.constant dense<0.000000e+00> : vector<8x128xf32>
    %259 = tpu.matmul %255, %206, %cst_41 {dimension_numbers = #tpu.dot_dimension_numbers<[1], [0], [0], [1], [0, 0, 1, 1], [], []>} : vector<8x32xf32>, vector<32x128xf32>, vector<8x128xf32> -> vector<8x128xf32>
    %260 = arith.addf %258, %259 : vector<8x128xf32>
    %261 = math.tanh %260 : vector<8x128xf32>
    %262 = arith.negf %260 : vector<8x128xf32>
    %263 = math.exp %262 : vector<8x128xf32>
    %cst_42 = arith.constant 1.000000e+00 : f32
    %264 = vector.broadcast %cst_42 : f32 to vector<8x128xf32>
    %265 = arith.addf %264, %263 : vector<8x128xf32>
    %266 = arith.divf %264, %265 : vector<8x128xf32>
    %267 = arith.select %23, %261, %266 : vector<8x128xi1>, vector<8x128xf32>
    %268 = vector.extract_strided_slice %267 {offsets = [0, 0], sizes = [8, 32], strides = [1, 1]} : vector<8x128xf32> to vector<8x32xf32>
    %269 = vector.extract_strided_slice %267 {offsets = [0, 32], sizes = [8, 32], strides = [1, 1]} : vector<8x128xf32> to vector<8x32xf32>
    %270 = vector.extract_strided_slice %267 {offsets = [0, 64], sizes = [8, 32], strides = [1, 1]} : vector<8x128xf32> to vector<8x32xf32>
    %271 = vector.extract_strided_slice %267 {offsets = [0, 96], sizes = [8, 32], strides = [1, 1]} : vector<8x128xf32> to vector<8x32xf32>
    %272 = arith.mulf %269, %253 : vector<8x32xf32>
    %273 = arith.mulf %268, %271 : vector<8x32xf32>
    %274 = arith.addf %272, %273 : vector<8x32xf32>
    %275 = math.tanh %274 : vector<8x32xf32>
    %276 = arith.mulf %270, %275 : vector<8x32xf32>
    %277 = vector.extract_strided_slice %210 {offsets = [24, 0], sizes = [8, 128], strides = [1, 1]} : vector<64x128xf32> to vector<8x128xf32>
    %278 = vector.extract_strided_slice %211 {offsets = [32, 0], sizes = [8, 128], strides = [1, 1]} : vector<64x128xf32> to vector<8x128xf32>
    %279 = arith.addf %277, %278 : vector<8x128xf32>
    %cst_43 = arith.constant dense<0.000000e+00> : vector<8x128xf32>
    %280 = tpu.matmul %276, %206, %cst_43 {dimension_numbers = #tpu.dot_dimension_numbers<[1], [0], [0], [1], [0, 0, 1, 1], [], []>} : vector<8x32xf32>, vector<32x128xf32>, vector<8x128xf32> -> vector<8x128xf32>
    %281 = arith.addf %279, %280 : vector<8x128xf32>
    %282 = math.tanh %281 : vector<8x128xf32>
    %283 = arith.negf %281 : vector<8x128xf32>
    %284 = math.exp %283 : vector<8x128xf32>
    %cst_44 = arith.constant 1.000000e+00 : f32
    %285 = vector.broadcast %cst_44 : f32 to vector<8x128xf32>
    %286 = arith.addf %285, %284 : vector<8x128xf32>
    %287 = arith.divf %285, %286 : vector<8x128xf32>
    %288 = arith.select %23, %282, %287 : vector<8x128xi1>, vector<8x128xf32>
    %289 = vector.extract_strided_slice %288 {offsets = [0, 0], sizes = [8, 32], strides = [1, 1]} : vector<8x128xf32> to vector<8x32xf32>
    %290 = vector.extract_strided_slice %288 {offsets = [0, 32], sizes = [8, 32], strides = [1, 1]} : vector<8x128xf32> to vector<8x32xf32>
    %291 = vector.extract_strided_slice %288 {offsets = [0, 64], sizes = [8, 32], strides = [1, 1]} : vector<8x128xf32> to vector<8x32xf32>
    %292 = vector.extract_strided_slice %288 {offsets = [0, 96], sizes = [8, 32], strides = [1, 1]} : vector<8x128xf32> to vector<8x32xf32>
    %293 = arith.mulf %290, %274 : vector<8x32xf32>
    %294 = arith.mulf %289, %292 : vector<8x32xf32>
    %295 = arith.addf %293, %294 : vector<8x32xf32>
    %296 = math.tanh %295 : vector<8x32xf32>
    %297 = arith.mulf %291, %296 : vector<8x32xf32>
    %298 = vector.extract_strided_slice %210 {offsets = [32, 0], sizes = [8, 128], strides = [1, 1]} : vector<64x128xf32> to vector<8x128xf32>
    %299 = vector.extract_strided_slice %211 {offsets = [24, 0], sizes = [8, 128], strides = [1, 1]} : vector<64x128xf32> to vector<8x128xf32>
    %300 = arith.addf %298, %299 : vector<8x128xf32>
    %cst_45 = arith.constant dense<0.000000e+00> : vector<8x128xf32>
    %301 = tpu.matmul %297, %206, %cst_45 {dimension_numbers = #tpu.dot_dimension_numbers<[1], [0], [0], [1], [0, 0, 1, 1], [], []>} : vector<8x32xf32>, vector<32x128xf32>, vector<8x128xf32> -> vector<8x128xf32>
    %302 = arith.addf %300, %301 : vector<8x128xf32>
    %303 = math.tanh %302 : vector<8x128xf32>
    %304 = arith.negf %302 : vector<8x128xf32>
    %305 = math.exp %304 : vector<8x128xf32>
    %cst_46 = arith.constant 1.000000e+00 : f32
    %306 = vector.broadcast %cst_46 : f32 to vector<8x128xf32>
    %307 = arith.addf %306, %305 : vector<8x128xf32>
    %308 = arith.divf %306, %307 : vector<8x128xf32>
    %309 = arith.select %23, %303, %308 : vector<8x128xi1>, vector<8x128xf32>
    %310 = vector.extract_strided_slice %309 {offsets = [0, 0], sizes = [8, 32], strides = [1, 1]} : vector<8x128xf32> to vector<8x32xf32>
    %311 = vector.extract_strided_slice %309 {offsets = [0, 32], sizes = [8, 32], strides = [1, 1]} : vector<8x128xf32> to vector<8x32xf32>
    %312 = vector.extract_strided_slice %309 {offsets = [0, 64], sizes = [8, 32], strides = [1, 1]} : vector<8x128xf32> to vector<8x32xf32>
    %313 = vector.extract_strided_slice %309 {offsets = [0, 96], sizes = [8, 32], strides = [1, 1]} : vector<8x128xf32> to vector<8x32xf32>
    %314 = arith.mulf %311, %295 : vector<8x32xf32>
    %315 = arith.mulf %310, %313 : vector<8x32xf32>
    %316 = arith.addf %314, %315 : vector<8x32xf32>
    %317 = math.tanh %316 : vector<8x32xf32>
    %318 = arith.mulf %312, %317 : vector<8x32xf32>
    %319 = vector.extract_strided_slice %210 {offsets = [40, 0], sizes = [8, 128], strides = [1, 1]} : vector<64x128xf32> to vector<8x128xf32>
    %320 = vector.extract_strided_slice %211 {offsets = [16, 0], sizes = [8, 128], strides = [1, 1]} : vector<64x128xf32> to vector<8x128xf32>
    %321 = arith.addf %319, %320 : vector<8x128xf32>
    %cst_47 = arith.constant dense<0.000000e+00> : vector<8x128xf32>
    %322 = tpu.matmul %318, %206, %cst_47 {dimension_numbers = #tpu.dot_dimension_numbers<[1], [0], [0], [1], [0, 0, 1, 1], [], []>} : vector<8x32xf32>, vector<32x128xf32>, vector<8x128xf32> -> vector<8x128xf32>
    %323 = arith.addf %321, %322 : vector<8x128xf32>
    %324 = math.tanh %323 : vector<8x128xf32>
    %325 = arith.negf %323 : vector<8x128xf32>
    %326 = math.exp %325 : vector<8x128xf32>
    %cst_48 = arith.constant 1.000000e+00 : f32
    %327 = vector.broadcast %cst_48 : f32 to vector<8x128xf32>
    %328 = arith.addf %327, %326 : vector<8x128xf32>
    %329 = arith.divf %327, %328 : vector<8x128xf32>
    %330 = arith.select %23, %324, %329 : vector<8x128xi1>, vector<8x128xf32>
    %331 = vector.extract_strided_slice %330 {offsets = [0, 0], sizes = [8, 32], strides = [1, 1]} : vector<8x128xf32> to vector<8x32xf32>
    %332 = vector.extract_strided_slice %330 {offsets = [0, 32], sizes = [8, 32], strides = [1, 1]} : vector<8x128xf32> to vector<8x32xf32>
    %333 = vector.extract_strided_slice %330 {offsets = [0, 64], sizes = [8, 32], strides = [1, 1]} : vector<8x128xf32> to vector<8x32xf32>
    %334 = vector.extract_strided_slice %330 {offsets = [0, 96], sizes = [8, 32], strides = [1, 1]} : vector<8x128xf32> to vector<8x32xf32>
    %335 = arith.mulf %332, %316 : vector<8x32xf32>
    %336 = arith.mulf %331, %334 : vector<8x32xf32>
    %337 = arith.addf %335, %336 : vector<8x32xf32>
    %338 = math.tanh %337 : vector<8x32xf32>
    %339 = arith.mulf %333, %338 : vector<8x32xf32>
    %340 = vector.extract_strided_slice %210 {offsets = [48, 0], sizes = [8, 128], strides = [1, 1]} : vector<64x128xf32> to vector<8x128xf32>
    %341 = vector.extract_strided_slice %211 {offsets = [8, 0], sizes = [8, 128], strides = [1, 1]} : vector<64x128xf32> to vector<8x128xf32>
    %342 = arith.addf %340, %341 : vector<8x128xf32>
    %cst_49 = arith.constant dense<0.000000e+00> : vector<8x128xf32>
    %343 = tpu.matmul %339, %206, %cst_49 {dimension_numbers = #tpu.dot_dimension_numbers<[1], [0], [0], [1], [0, 0, 1, 1], [], []>} : vector<8x32xf32>, vector<32x128xf32>, vector<8x128xf32> -> vector<8x128xf32>
    %344 = arith.addf %342, %343 : vector<8x128xf32>
    %345 = math.tanh %344 : vector<8x128xf32>
    %346 = arith.negf %344 : vector<8x128xf32>
    %347 = math.exp %346 : vector<8x128xf32>
    %cst_50 = arith.constant 1.000000e+00 : f32
    %348 = vector.broadcast %cst_50 : f32 to vector<8x128xf32>
    %349 = arith.addf %348, %347 : vector<8x128xf32>
    %350 = arith.divf %348, %349 : vector<8x128xf32>
    %351 = arith.select %23, %345, %350 : vector<8x128xi1>, vector<8x128xf32>
    %352 = vector.extract_strided_slice %351 {offsets = [0, 0], sizes = [8, 32], strides = [1, 1]} : vector<8x128xf32> to vector<8x32xf32>
    %353 = vector.extract_strided_slice %351 {offsets = [0, 32], sizes = [8, 32], strides = [1, 1]} : vector<8x128xf32> to vector<8x32xf32>
    %354 = vector.extract_strided_slice %351 {offsets = [0, 64], sizes = [8, 32], strides = [1, 1]} : vector<8x128xf32> to vector<8x32xf32>
    %355 = vector.extract_strided_slice %351 {offsets = [0, 96], sizes = [8, 32], strides = [1, 1]} : vector<8x128xf32> to vector<8x32xf32>
    %356 = arith.mulf %353, %337 : vector<8x32xf32>
    %357 = arith.mulf %352, %355 : vector<8x32xf32>
    %358 = arith.addf %356, %357 : vector<8x32xf32>
    %359 = math.tanh %358 : vector<8x32xf32>
    %360 = arith.mulf %354, %359 : vector<8x32xf32>
    %361 = vector.extract_strided_slice %210 {offsets = [56, 0], sizes = [8, 128], strides = [1, 1]} : vector<64x128xf32> to vector<8x128xf32>
    %362 = vector.extract_strided_slice %211 {offsets = [0, 0], sizes = [8, 128], strides = [1, 1]} : vector<64x128xf32> to vector<8x128xf32>
    %363 = arith.addf %361, %362 : vector<8x128xf32>
    %cst_51 = arith.constant dense<0.000000e+00> : vector<8x128xf32>
    %364 = tpu.matmul %360, %206, %cst_51 {dimension_numbers = #tpu.dot_dimension_numbers<[1], [0], [0], [1], [0, 0, 1, 1], [], []>} : vector<8x32xf32>, vector<32x128xf32>, vector<8x128xf32> -> vector<8x128xf32>
    %365 = arith.addf %363, %364 : vector<8x128xf32>
    %366 = math.tanh %365 : vector<8x128xf32>
    %367 = arith.negf %365 : vector<8x128xf32>
    %368 = math.exp %367 : vector<8x128xf32>
    %cst_52 = arith.constant 1.000000e+00 : f32
    %369 = vector.broadcast %cst_52 : f32 to vector<8x128xf32>
    %370 = arith.addf %369, %368 : vector<8x128xf32>
    %371 = arith.divf %369, %370 : vector<8x128xf32>
    %372 = arith.select %23, %366, %371 : vector<8x128xi1>, vector<8x128xf32>
    %373 = vector.extract_strided_slice %372 {offsets = [0, 0], sizes = [8, 32], strides = [1, 1]} : vector<8x128xf32> to vector<8x32xf32>
    %374 = vector.extract_strided_slice %372 {offsets = [0, 32], sizes = [8, 32], strides = [1, 1]} : vector<8x128xf32> to vector<8x32xf32>
    %375 = vector.extract_strided_slice %372 {offsets = [0, 64], sizes = [8, 32], strides = [1, 1]} : vector<8x128xf32> to vector<8x32xf32>
    %376 = vector.extract_strided_slice %372 {offsets = [0, 96], sizes = [8, 32], strides = [1, 1]} : vector<8x128xf32> to vector<8x32xf32>
    %377 = arith.mulf %374, %358 : vector<8x32xf32>
    %378 = arith.mulf %373, %376 : vector<8x32xf32>
    %379 = arith.addf %377, %378 : vector<8x32xf32>
    %380 = math.tanh %379 : vector<8x32xf32>
    %381 = arith.mulf %375, %380 : vector<8x32xf32>
    %c160 = arith.constant 160 : index
    %c0_53 = arith.constant 0 : index
    %382 = vector.load %arg3[%c160, %c0_53] : memref<1136x128xf32, #tpu.memory_space<vmem>>, vector<64x128xf32>
    %c224 = arith.constant 224 : index
    %c0_54 = arith.constant 0 : index
    %383 = vector.load %arg3[%c224, %c0_54] : memref<1136x128xf32, #tpu.memory_space<vmem>>, vector<64x128xf32>
    %cst_55 = arith.constant dense<0.000000e+00> : vector<8x128xf32>
    %384 = tpu.matmul %202, %382, %cst_55 {dimension_numbers = #tpu.dot_dimension_numbers<[1], [0], [0], [1], [0, 0, 1, 1], [], []>} : vector<8x64xf32>, vector<64x128xf32>, vector<8x128xf32> -> vector<8x128xf32>
    %cst_56 = arith.constant dense<0.000000e+00> : vector<8x128xf32>
    %385 = tpu.matmul %55, %383, %cst_56 {dimension_numbers = #tpu.dot_dimension_numbers<[1], [0], [0], [1], [0, 0, 1, 1], [], []>} : vector<8x64xf32>, vector<64x128xf32>, vector<8x128xf32> -> vector<8x128xf32>
    %386 = arith.addf %384, %385 : vector<8x128xf32>
    %c2 = arith.constant 2 : index
    %c0_57 = arith.constant 0 : index
    %387 = vector.load %arg4[%c2, %c0_57] : memref<24x256xf32, #tpu.memory_space<vmem>>, vector<1x128xf32>
    %388 = vector.broadcast %387 : vector<1x128xf32> to vector<8x128xf32>
    %389 = arith.addf %386, %388 : vector<8x128xf32>
    %390 = math.tanh %389 : vector<8x128xf32>
    %391 = arith.negf %389 : vector<8x128xf32>
    %392 = math.exp %391 : vector<8x128xf32>
    %cst_58 = arith.constant 1.000000e+00 : f32
    %393 = vector.broadcast %cst_58 : f32 to vector<8x128xf32>
    %394 = arith.addf %393, %392 : vector<8x128xf32>
    %395 = arith.divf %393, %394 : vector<8x128xf32>
    %396 = arith.select %23, %390, %395 : vector<8x128xi1>, vector<8x128xf32>
    %397 = vector.extract_strided_slice %396 {offsets = [0, 0], sizes = [8, 32], strides = [1, 1]} : vector<8x128xf32> to vector<8x32xf32>
    %398 = vector.extract_strided_slice %396 {offsets = [0, 96], sizes = [8, 32], strides = [1, 1]} : vector<8x128xf32> to vector<8x32xf32>
    %399 = arith.mulf %397, %398 : vector<8x32xf32>
    %400 = vector.extract_strided_slice %396 {offsets = [0, 64], sizes = [8, 32], strides = [1, 1]} : vector<8x128xf32> to vector<8x32xf32>
    %401 = math.tanh %399 : vector<8x32xf32>
    %402 = arith.mulf %400, %401 : vector<8x32xf32>
    %c288 = arith.constant 288 : index
    %c0_59 = arith.constant 0 : index
    %403 = vector.load %arg3[%c288, %c0_59] : memref<1136x128xf32, #tpu.memory_space<vmem>>, vector<32x128xf32>
    %c320 = arith.constant 320 : index
    %c0_60 = arith.constant 0 : index
    %404 = vector.load %arg3[%c320, %c0_60] : memref<1136x128xf32, #tpu.memory_space<vmem>>, vector<32x128xf32>
    %cst_61 = arith.constant dense<0.000000e+00> : vector<8x128xf32>
    %405 = tpu.matmul %381, %403, %cst_61 {dimension_numbers = #tpu.dot_dimension_numbers<[1], [0], [0], [1], [0, 0, 1, 1], [], []>} : vector<8x32xf32>, vector<32x128xf32>, vector<8x128xf32> -> vector<8x128xf32>
    %cst_62 = arith.constant dense<0.000000e+00> : vector<8x128xf32>
    %406 = tpu.matmul %402, %404, %cst_62 {dimension_numbers = #tpu.dot_dimension_numbers<[1], [0], [0], [1], [0, 0, 1, 1], [], []>} : vector<8x32xf32>, vector<32x128xf32>, vector<8x128xf32> -> vector<8x128xf32>
    %407 = arith.addf %405, %406 : vector<8x128xf32>
    %c3 = arith.constant 3 : index
    %c0_63 = arith.constant 0 : index
    %408 = vector.load %arg4[%c3, %c0_63] : memref<24x256xf32, #tpu.memory_space<vmem>>, vector<1x128xf32>
    %409 = vector.broadcast %408 : vector<1x128xf32> to vector<8x128xf32>
    %410 = arith.addf %407, %409 : vector<8x128xf32>
    %c0_64 = arith.constant 0 : index
    %c0_65 = arith.constant 0 : index
    %411 = vector.load %arg1[%c0_64, %c0_65] : memref<8x8xf32, #tpu.memory_space<vmem>>, vector<8x8xf32>
    %cst_66 = arith.constant 0.000000e+00 : f32
    %412 = vector.broadcast %cst_66 : f32 to vector<8x8xf32>
    %c352 = arith.constant 352 : index
    %c0_67 = arith.constant 0 : index
    %413 = vector.load %arg3[%c352, %c0_67] : memref<1136x128xf32, #tpu.memory_space<vmem>>, vector<128x128xf32>
    %c480 = arith.constant 480 : index
    %c0_68 = arith.constant 0 : index
    %414 = vector.load %arg3[%c480, %c0_68] : memref<1136x128xf32, #tpu.memory_space<vmem>>, vector<8x128xf32>
    %c7 = arith.constant 7 : index
    %c0_69 = arith.constant 0 : index
    %415 = vector.load %arg4[%c7, %c0_69] : memref<24x256xf32, #tpu.memory_space<vmem>>, vector<1x8xf32>
    %c8_70 = arith.constant 8 : index
    %c0_71 = arith.constant 0 : index
    %416 = vector.load %arg4[%c8_70, %c0_71] : memref<24x256xf32, #tpu.memory_space<vmem>>, vector<1x8xf32>
    %c9 = arith.constant 9 : index
    %c0_72 = arith.constant 0 : index
    %417 = vector.load %arg4[%c9, %c0_72] : memref<24x256xf32, #tpu.memory_space<vmem>>, vector<1x8xf32>
    %c10 = arith.constant 10 : index
    %c0_73 = arith.constant 0 : index
    %418 = vector.load %arg4[%c10, %c0_73] : memref<24x256xf32, #tpu.memory_space<vmem>>, vector<1x8xf32>
    %c11 = arith.constant 11 : index
    %c0_74 = arith.constant 0 : index
    %419 = vector.load %arg4[%c11, %c0_74] : memref<24x256xf32, #tpu.memory_space<vmem>>, vector<1x8xf32>
    %c12 = arith.constant 12 : index
    %c0_75 = arith.constant 0 : index
    %420 = vector.load %arg4[%c12, %c0_75] : memref<24x256xf32, #tpu.memory_space<vmem>>, vector<1x8xf32>
    %421 = vector.broadcast %415 : vector<1x8xf32> to vector<8x8xf32>
    %422 = arith.mulf %411, %421 : vector<8x8xf32>
    %cst_76 = arith.constant dense<0.000000e+00> : vector<8x128xf32>
    %423 = tpu.matmul %410, %413, %cst_76 {dimension_numbers = #tpu.dot_dimension_numbers<[1], [0], [0], [1], [0, 0, 1, 1], [], []>} : vector<8x128xf32>, vector<128x128xf32>, vector<8x128xf32> -> vector<8x128xf32>
    %cst_77 = arith.constant dense<0.000000e+00> : vector<8x128xf32>
    %424 = tpu.matmul %422, %414, %cst_77 {dimension_numbers = #tpu.dot_dimension_numbers<[1], [0], [0], [1], [0, 0, 1, 1], [], []>} : vector<8x8xf32>, vector<8x128xf32>, vector<8x128xf32> -> vector<8x128xf32>
    %425 = arith.addf %423, %424 : vector<8x128xf32>
    %c4 = arith.constant 4 : index
    %c0_78 = arith.constant 0 : index
    %426 = vector.load %arg4[%c4, %c0_78] : memref<24x256xf32, #tpu.memory_space<vmem>>, vector<1x128xf32>
    %427 = vector.broadcast %426 : vector<1x128xf32> to vector<8x128xf32>
    %428 = arith.addf %425, %427 : vector<8x128xf32>
    %429 = math.tanh %428 : vector<8x128xf32>
    %cst_79 = arith.constant 0.000000e+00 : f32
    %430 = vector.broadcast %cst_79 : f32 to vector<8x128xf32>
    %431 = arith.maximumf %428, %430 : vector<8x128xf32>
    %432 = arith.select %25, %429, %431 : vector<8x128xi1>, vector<8x128xf32>
    %c488 = arith.constant 488 : index
    %c0_80 = arith.constant 0 : index
    %433 = vector.load %arg3[%c488, %c0_80] : memref<1136x128xf32, #tpu.memory_space<vmem>>, vector<128x128xf32>
    %cst_81 = arith.constant dense<0.000000e+00> : vector<8x128xf32>
    %434 = tpu.matmul %432, %433, %cst_81 {dimension_numbers = #tpu.dot_dimension_numbers<[1], [0], [0], [1], [0, 0, 1, 1], [], []>} : vector<8x128xf32>, vector<128x128xf32>, vector<8x128xf32> -> vector<8x128xf32>
    %c5 = arith.constant 5 : index
    %c0_82 = arith.constant 0 : index
    %435 = vector.load %arg4[%c5, %c0_82] : memref<24x256xf32, #tpu.memory_space<vmem>>, vector<1x128xf32>
    %436 = vector.broadcast %435 : vector<1x128xf32> to vector<8x128xf32>
    %437 = arith.addf %434, %436 : vector<8x128xf32>
    %438 = math.tanh %437 : vector<8x128xf32>
    %cst_83 = arith.constant 0.000000e+00 : f32
    %439 = vector.broadcast %cst_83 : f32 to vector<8x128xf32>
    %440 = arith.maximumf %437, %439 : vector<8x128xf32>
    %441 = arith.select %25, %438, %440 : vector<8x128xi1>, vector<8x128xf32>
    %c616 = arith.constant 616 : index
    %c0_84 = arith.constant 0 : index
    %442 = vector.load %arg3[%c616, %c0_84] : memref<1136x128xf32, #tpu.memory_space<vmem>>, vector<128x128xf32>
    %cst_85 = arith.constant dense<0.000000e+00> : vector<8x128xf32>
    %443 = tpu.matmul %441, %442, %cst_85 {dimension_numbers = #tpu.dot_dimension_numbers<[1], [0], [0], [1], [0, 0, 1, 1], [], []>} : vector<8x128xf32>, vector<128x128xf32>, vector<8x128xf32> -> vector<8x128xf32>
    %c6 = arith.constant 6 : index
    %c0_86 = arith.constant 0 : index
    %444 = vector.load %arg4[%c6, %c0_86] : memref<24x256xf32, #tpu.memory_space<vmem>>, vector<1x128xf32>
    %445 = vector.broadcast %444 : vector<1x128xf32> to vector<8x128xf32>
    %446 = arith.addf %443, %445 : vector<8x128xf32>
    %447 = vector.extract_strided_slice %446 {offsets = [0, 0], sizes = [8, 8], strides = [1, 1]} : vector<8x128xf32> to vector<8x8xf32>
    %448 = vector.extract_strided_slice %446 {offsets = [0, 8], sizes = [8, 8], strides = [1, 1]} : vector<8x128xf32> to vector<8x8xf32>
    %cst_87 = arith.constant 1.000000e+00 : f32
    %449 = vector.broadcast %cst_87 : f32 to vector<1x8xf32>
    %450 = arith.subf %449, %415 : vector<1x8xf32>
    %451 = arith.subf %411, %448 : vector<8x8xf32>
    %452 = vector.broadcast %450 : vector<1x8xf32> to vector<8x8xf32>
    %453 = arith.mulf %452, %451 : vector<8x8xf32>
    %cst_88 = arith.constant 0.000000e+00 : f32
    %454 = vector.broadcast %cst_88 : f32 to vector<8x8xf32>
    %455 = arith.subf %454, %447 : vector<8x8xf32>
    %456 = math.exp %455 : vector<8x8xf32>
    %457 = arith.mulf %453, %456 : vector<8x8xf32>
    %458 = arith.addf %422, %457 : vector<8x8xf32>
    %cst_89 = arith.constant 1.000000e+00 : f32
    %459 = vector.broadcast %cst_89 : f32 to vector<1x8xf32>
    %460 = arith.subf %459, %415 : vector<1x8xf32>
    %cst_90 = arith.constant 0.000000e+00 : f32
    %461 = vector.broadcast %cst_90 : f32 to vector<1x8xf32>
    %462 = arith.subf %461, %460 : vector<1x8xf32>
    %463 = vector.broadcast %462 : vector<1x8xf32> to vector<8x8xf32>
    %464 = arith.mulf %463, %447 : vector<8x8xf32>
    %465 = vector.broadcast %416 : vector<1x8xf32> to vector<8x8xf32>
    %466 = arith.subf %458, %465 : vector<8x8xf32>
    %467 = vector.broadcast %418 : vector<1x8xf32> to vector<8x8xf32>
    %468 = arith.mulf %467, %466 : vector<8x8xf32>
    %469 = vector.broadcast %417 : vector<1x8xf32> to vector<8x8xf32>
    %470 = arith.mulf %468, %469 : vector<8x8xf32>
    %471 = vector.broadcast %419 : vector<1x8xf32> to vector<8x8xf32>
    %472 = arith.addf %470, %471 : vector<8x8xf32>
    %473 = arith.addf %412, %464 : vector<8x8xf32>
    %474 = vector.broadcast %420 : vector<1x8xf32> to vector<8x8xf32>
    %475 = arith.addf %473, %474 : vector<8x8xf32>
    %c744 = arith.constant 744 : index
    %c0_91 = arith.constant 0 : index
    %476 = vector.load %arg3[%c744, %c0_91] : memref<1136x128xf32, #tpu.memory_space<vmem>>, vector<128x128xf32>
    %c872 = arith.constant 872 : index
    %c0_92 = arith.constant 0 : index
    %477 = vector.load %arg3[%c872, %c0_92] : memref<1136x128xf32, #tpu.memory_space<vmem>>, vector<8x128xf32>
    %c16 = arith.constant 16 : index
    %c0_93 = arith.constant 0 : index
    %478 = vector.load %arg4[%c16, %c0_93] : memref<24x256xf32, #tpu.memory_space<vmem>>, vector<1x8xf32>
    %c17 = arith.constant 17 : index
    %c0_94 = arith.constant 0 : index
    %479 = vector.load %arg4[%c17, %c0_94] : memref<24x256xf32, #tpu.memory_space<vmem>>, vector<1x8xf32>
    %c18 = arith.constant 18 : index
    %c0_95 = arith.constant 0 : index
    %480 = vector.load %arg4[%c18, %c0_95] : memref<24x256xf32, #tpu.memory_space<vmem>>, vector<1x8xf32>
    %c19 = arith.constant 19 : index
    %c0_96 = arith.constant 0 : index
    %481 = vector.load %arg4[%c19, %c0_96] : memref<24x256xf32, #tpu.memory_space<vmem>>, vector<1x8xf32>
    %c20 = arith.constant 20 : index
    %c0_97 = arith.constant 0 : index
    %482 = vector.load %arg4[%c20, %c0_97] : memref<24x256xf32, #tpu.memory_space<vmem>>, vector<1x8xf32>
    %c21 = arith.constant 21 : index
    %c0_98 = arith.constant 0 : index
    %483 = vector.load %arg4[%c21, %c0_98] : memref<24x256xf32, #tpu.memory_space<vmem>>, vector<1x8xf32>
    %484 = vector.broadcast %478 : vector<1x8xf32> to vector<8x8xf32>
    %485 = arith.mulf %472, %484 : vector<8x8xf32>
    %cst_99 = arith.constant dense<0.000000e+00> : vector<8x128xf32>
    %486 = tpu.matmul %410, %476, %cst_99 {dimension_numbers = #tpu.dot_dimension_numbers<[1], [0], [0], [1], [0, 0, 1, 1], [], []>} : vector<8x128xf32>, vector<128x128xf32>, vector<8x128xf32> -> vector<8x128xf32>
    %cst_100 = arith.constant dense<0.000000e+00> : vector<8x128xf32>
    %487 = tpu.matmul %485, %477, %cst_100 {dimension_numbers = #tpu.dot_dimension_numbers<[1], [0], [0], [1], [0, 0, 1, 1], [], []>} : vector<8x8xf32>, vector<8x128xf32>, vector<8x128xf32> -> vector<8x128xf32>
    %488 = arith.addf %486, %487 : vector<8x128xf32>
    %c13 = arith.constant 13 : index
    %c0_101 = arith.constant 0 : index
    %489 = vector.load %arg4[%c13, %c0_101] : memref<24x256xf32, #tpu.memory_space<vmem>>, vector<1x128xf32>
    %490 = vector.broadcast %489 : vector<1x128xf32> to vector<8x128xf32>
    %491 = arith.addf %488, %490 : vector<8x128xf32>
    %492 = math.tanh %491 : vector<8x128xf32>
    %cst_102 = arith.constant 0.000000e+00 : f32
    %493 = vector.broadcast %cst_102 : f32 to vector<8x128xf32>
    %494 = arith.maximumf %491, %493 : vector<8x128xf32>
    %495 = arith.select %25, %492, %494 : vector<8x128xi1>, vector<8x128xf32>
    %c880 = arith.constant 880 : index
    %c0_103 = arith.constant 0 : index
    %496 = vector.load %arg3[%c880, %c0_103] : memref<1136x128xf32, #tpu.memory_space<vmem>>, vector<128x128xf32>
    %cst_104 = arith.constant dense<0.000000e+00> : vector<8x128xf32>
    %497 = tpu.matmul %495, %496, %cst_104 {dimension_numbers = #tpu.dot_dimension_numbers<[1], [0], [0], [1], [0, 0, 1, 1], [], []>} : vector<8x128xf32>, vector<128x128xf32>, vector<8x128xf32> -> vector<8x128xf32>
    %c14 = arith.constant 14 : index
    %c0_105 = arith.constant 0 : index
    %498 = vector.load %arg4[%c14, %c0_105] : memref<24x256xf32, #tpu.memory_space<vmem>>, vector<1x128xf32>
    %499 = vector.broadcast %498 : vector<1x128xf32> to vector<8x128xf32>
    %500 = arith.addf %497, %499 : vector<8x128xf32>
    %501 = math.tanh %500 : vector<8x128xf32>
    %cst_106 = arith.constant 0.000000e+00 : f32
    %502 = vector.broadcast %cst_106 : f32 to vector<8x128xf32>
    %503 = arith.maximumf %500, %502 : vector<8x128xf32>
    %504 = arith.select %25, %501, %503 : vector<8x128xi1>, vector<8x128xf32>
    %c1008 = arith.constant 1008 : index
    %c0_107 = arith.constant 0 : index
    %505 = vector.load %arg3[%c1008, %c0_107] : memref<1136x128xf32, #tpu.memory_space<vmem>>, vector<128x128xf32>
    %cst_108 = arith.constant dense<0.000000e+00> : vector<8x128xf32>
    %506 = tpu.matmul %504, %505, %cst_108 {dimension_numbers = #tpu.dot_dimension_numbers<[1], [0], [0], [1], [0, 0, 1, 1], [], []>} : vector<8x128xf32>, vector<128x128xf32>, vector<8x128xf32> -> vector<8x128xf32>
    %c15 = arith.constant 15 : index
    %c0_109 = arith.constant 0 : index
    %507 = vector.load %arg4[%c15, %c0_109] : memref<24x256xf32, #tpu.memory_space<vmem>>, vector<1x128xf32>
    %508 = vector.broadcast %507 : vector<1x128xf32> to vector<8x128xf32>
    %509 = arith.addf %506, %508 : vector<8x128xf32>
    %510 = vector.extract_strided_slice %509 {offsets = [0, 0], sizes = [8, 8], strides = [1, 1]} : vector<8x128xf32> to vector<8x8xf32>
    %511 = vector.extract_strided_slice %509 {offsets = [0, 8], sizes = [8, 8], strides = [1, 1]} : vector<8x128xf32> to vector<8x8xf32>
    %cst_110 = arith.constant 1.000000e+00 : f32
    %512 = vector.broadcast %cst_110 : f32 to vector<1x8xf32>
    %513 = arith.subf %512, %478 : vector<1x8xf32>
    %514 = arith.subf %472, %511 : vector<8x8xf32>
    %515 = vector.broadcast %513 : vector<1x8xf32> to vector<8x8xf32>
    %516 = arith.mulf %515, %514 : vector<8x8xf32>
    %cst_111 = arith.constant 0.000000e+00 : f32
    %517 = vector.broadcast %cst_111 : f32 to vector<8x8xf32>
    %518 = arith.subf %517, %510 : vector<8x8xf32>
    %519 = math.exp %518 : vector<8x8xf32>
    %520 = arith.mulf %516, %519 : vector<8x8xf32>
    %521 = arith.addf %485, %520 : vector<8x8xf32>
    %cst_112 = arith.constant 1.000000e+00 : f32
    %522 = vector.broadcast %cst_112 : f32 to vector<1x8xf32>
    %523 = arith.subf %522, %478 : vector<1x8xf32>
    %cst_113 = arith.constant 0.000000e+00 : f32
    %524 = vector.broadcast %cst_113 : f32 to vector<1x8xf32>
    %525 = arith.subf %524, %523 : vector<1x8xf32>
    %526 = vector.broadcast %525 : vector<1x8xf32> to vector<8x8xf32>
    %527 = arith.mulf %526, %510 : vector<8x8xf32>
    %528 = vector.broadcast %479 : vector<1x8xf32> to vector<8x8xf32>
    %529 = arith.subf %521, %528 : vector<8x8xf32>
    %530 = vector.broadcast %481 : vector<1x8xf32> to vector<8x8xf32>
    %531 = arith.mulf %530, %529 : vector<8x8xf32>
    %532 = vector.broadcast %480 : vector<1x8xf32> to vector<8x8xf32>
    %533 = arith.mulf %531, %532 : vector<8x8xf32>
    %534 = vector.broadcast %482 : vector<1x8xf32> to vector<8x8xf32>
    %535 = arith.addf %533, %534 : vector<8x8xf32>
    %536 = arith.addf %475, %527 : vector<8x8xf32>
    %537 = vector.broadcast %483 : vector<1x8xf32> to vector<8x8xf32>
    %538 = arith.addf %536, %537 : vector<8x8xf32>
    %539 = tpu.concatenate %535, %538 in 1 : vector<8x8xf32>, vector<8x8xf32> -> vector<8x16xf32>
    %c0_114 = arith.constant 0 : index
    %c0_115 = arith.constant 0 : index
    %540 = vector.load %arg5[%c0_114, %c0_115] : memref<8x16xf32, #tpu.memory_space<vmem>>, vector<8x16xf32>
    tpu.vector_store %arg5[%c0_114, %c0_115], %539 {strides = array<i32>} : memref<8x16xf32, #tpu.memory_space<vmem>>, vector<8x16xf32>,
    return
  }
}

</mosaic_0001>

<llo_original>
// kernel: cnf_forward.1
$region0: #{cnf_forward.1}
  #allocation0 [shape = 'u32[]', space=smem, size = 0x4, offset = 0x4, fixed_abs, tag = 'smem constant byte address 0x4 - core index']
  #allocation1 [shape = 'u32[72,128]{1,0:T(1,128)}', space=vmem, size = 0x9000, scoped, tag = 'internal scratch']
  %s0 = inlined_call_operand.vmem [shape: f32[64,8], index: 0, kind: input, shape index: {}]
  %s1 = inlined_call_operand.vmem [shape: f32[8,8], index: 1, kind: input, shape index: {}]
  %s2 = inlined_call_operand.vmem [shape: f32[72,256], index: 2, kind: input, shape index: {}]
  %s3 = inlined_call_operand.hbm [shape: f32[1136,128], index: 3, kind: input, shape index: {}]
  %s4 = inlined_call_operand.vmem [shape: f32[24,256], index: 4, kind: input, shape index: {}]
  %s5 = inlined_call_operand.vmem [shape: f32[8,16], index: 5, kind: output, shape index: {}]
  %s6 = sld [smem:[#allocation0]]
  $region34: #{cnf_forward.1} parent=0
    _
  %s8 = ssub.s32 1, %s6
  %s9 = scalar_select 0, %s8, %s6
  $region1: #{cnf_forward.1} parent=0
    #allocation2 [shape = 'u8[581632]{0}', space=vmem, size = 0x8e000, scoped, tag = 'input window, operand 3, single buffered']
    #allocation3 [shape = 's32[1]{0}', space=sflag, size = 0x4, scoped, tag = 'scoped memory for cnf_forward.1']
    %10 = vsyncpa [#allocation3], 0
    // Predicated region
    $region2: #{cnf_forward.1} parent=1 // pred_check
      _
    $region3: #{cnf_forward.1} parent=1 // pred_check_branch
      %12 = sbr.rel (0) target = $region5
    $region4: #{cnf_forward.1} parent=1 // pred_region
      _
    $region5: #{cnf_forward.1} parent=1 // pred_fallthru
      _
    // Predicated region
    $region6: #{cnf_forward.1} parent=1 // pred_check
      _
    $region7: #{cnf_forward.1} parent=1 // pred_check_branch
      %14 = sbr.rel (0) target = $region9
    $region8: #{cnf_forward.1} parent=1 // pred_region
      _
    $region9: #{cnf_forward.1} parent=1 // pred_fallthru
      _
    // Predicated region
    $region10: #{cnf_forward.1} parent=1 // pred_check
      _
    $region11: #{cnf_forward.1} parent=1 // pred_check_branch
      %16 = sbr.rel (0) target = $region13
    $region12: #{cnf_forward.1} parent=1 // pred_region
      _
    $region13: #{cnf_forward.1} parent=1 // pred_fallthru
      _
    // Predicated region
    $region14: #{cnf_forward.1} parent=1 // pred_check
      _
    $region15: #{cnf_forward.1} parent=1 // pred_check_branch
      %18 = sbr.rel (0) target = $region17
    $region16: #{cnf_forward.1} parent=1 // pred_region
      %20 = vsyncadd [#allocation3], 0
      %s21 = sshll.u32 %s3, 4
      %s22 = int_to_ptr.hbm [resolvable:$true] %s21
      %s23 = sshll.u32 [#allocation2], 4
      %s24 = int_to_ptr.vmem [resolvable:$true] %s23
      %29 = dma.hbm_to_vmem [thread:$0]  %s22, 18176, %s24, [#allocation3], 128, 128, 8
    $region17: #{cnf_forward.1} parent=1 // pred_fallthru
      _
    // Predicated region
    $region18: #{cnf_forward.1} parent=1 // pred_check
      _
    $region19: #{cnf_forward.1} parent=1 // pred_check_branch
      %31 = sbr.rel (0) target = $region21
    $region20: #{cnf_forward.1} parent=1 // pred_region
      _
    $region21: #{cnf_forward.1} parent=1 // pred_fallthru
      _
    // Predicated region
    $region22: #{cnf_forward.1} parent=1 // pred_check
      _
    $region23: #{cnf_forward.1} parent=1 // pred_check_branch
      %33 = sbr.rel (0) target = $region25
    $region24: #{cnf_forward.1} parent=1 // pred_region
      %35 = dma.done [#allocation3], 18176
    $region25: #{cnf_forward.1} parent=1 // pred_fallthru
      _
    %v36 = vlaneseq
    %v37 = vand.u32 %v36, 127
    %v38 = vadd.s32 %v37, 128
    %vm39 = vcmp.lt.s32.totalorder %v37, 0
    %v40 = vsub.s32 0, %v37
    %v41 = vsel %vm39, %v40, %v37
    %v42 = vshrl.u32 %v41, 6
    %v43 = vand.u32 %v41, 63
    %v44 = vsub.s32 0, %v43
    %v45 = vsel %vm39, %v44, %v43
    %vm46 = vcmp.lt.s32.totalorder %v38, 0
    %v47 = vsub.s32 0, %v38
    %v48 = vsel %vm46, %v47, %v38
    %v49 = vshrl.u32 %v48, 6
    %v50 = vand.u32 %v48, 63
    %v51 = vsub.s32 0, %v50
    %v52 = vsel %vm46, %v51, %v50
    %vm53 = vcmp.ne.s32.totalorder %v45, 0
    %vm54 = vcmp.ne.s32.totalorder %v52, 0
    %vm55 = vcmp.lt.s32.totalorder %v45, 0
    %vm56 = vcmp.lt.s32.totalorder %v52, 0
    %vm57 = vmand %vm55, %vm53
    %vm58 = vmand %vm56, %vm54
    %v59 = vadd.s32 %v45, 64
    %v60 = vadd.s32 %v52, 64
    %v61 = vsel %vm57, %v59, %v45
    %v62 = vsel %vm58, %v60, %v52
    %vm63 = vcmp.lt.s32.totalorder %v61, 32
    %vm64 = vcmp.lt.s32.totalorder %v62, 32
    %vm65 = vcmp.ge.s32.totalorder %v37, 192
    %vm66 = vcmp.ge.s32.totalorder %v38, 192
    %vm67 = vcmp.ge.s32.totalorder %v37, 96
    %vm68 = vcmp.lt.s32.totalorder %v37, 32
    %v69 = vld [vmem:[%s0] sm:$0xff]
    %v70 = vld [vmem:[%s0 + $0x8] sm:$0xff]
    %v71 = vld [vmem:[%s0 + $0x10] sm:$0xff]
    %v72 = vld [vmem:[%s0 + $0x18] sm:$0xff]
    %v73 = vld [vmem:[%s0 + $0x20] sm:$0xff]
    %v74 = vld [vmem:[%s0 + $0x28] sm:$0xff]
    %v75 = vld [vmem:[%s0 + $0x30] sm:$0xff]
    %v76 = vld [vmem:[%s0 + $0x38] sm:$0xff]
    %v77 = vld [vmem:[%s2] sm:$0xff]
    %v78 = vld [vmem:[%s2 + $0x8] sm:$0xff]
    %v79 = vld [vmem:[%s2 + $0x10] sm:$0xff]
    %v80 = vld [vmem:[%s2 + $0x18] sm:$0xff]
    %v81 = vld [vmem:[%s2 + $0x20] sm:$0xff]
    %v82 = vld [vmem:[%s2 + $0x28] sm:$0xff]
    %v83 = vld [vmem:[%s2 + $0x30] sm:$0xff]
    %v84 = vld [vmem:[%s2 + $0x38] sm:$0xff]
    %v85 = vld [vmem:[%s2 + $0x40] sm:$0xff]
    %v86 = vld [vmem:[%s2 + $0x48] sm:$0xff]
    %v87 = vld [vmem:[%s2 + $0x50] sm:$0xff]
    %v88 = vld [vmem:[%s2 + $0x58] sm:$0xff]
    %v89 = vld [vmem:[%s2 + $0x60] sm:$0xff]
    %v90 = vld [vmem:[%s2 + $0x68] sm:$0xff]
    %v91 = vld [vmem:[%s2 + $0x70] sm:$0xff]
    %v92 = vld [vmem:[%s2 + $0x78] sm:$0xff]
    %v93 = vld [vmem:[%s2 + $0x80] sm:$0xff]
    %v94 = vld [vmem:[%s2 + $0x88] sm:$0xff]
    %v95 = vld [vmem:[%s4] ss:$8 sm:$0x3]
    %v97 = vperm.slane %v95, 0
    %v98 = vperm.slane %v95, 1
    %vm101 = vcmask 64512
    %v103 = vsel %vm101, %v69, 0
    %v106 = vsel %vm101, %v70, 0
    %v109 = vsel %vm101, %v71, 0
    %v112 = vsel %vm101, %v72, 0
    %v115 = vsel %vm101, %v73, 0
    %v118 = vsel %vm101, %v74, 0
    %v121 = vsel %vm101, %v75, 0
    %v124 = vsel %vm101, %v76, 0
    %126 = vmatpush.msra.mxu0 0.0
    %127 = vmatpush.msra.mxu0 0.0
    %128 = vmatpush.msra.mxu0 0.0
    %129 = vmatpush.msra.mxu0 0.0
    %130 = vmatpush.msra.mxu0 0.0
    %131 = vmatpush.msra.mxu0 0.0
    %132 = vmatpush.msra.mxu0 0.0
    %133 = vmatpush.msra.mxu0 0.0
    %134 = vmatpush.msra.mxu0 0.0
    %135 = vmatpush.msra.mxu0 0.0
    %136 = vmatpush.msra.mxu0 0.0
    %137 = vmatpush.msra.mxu0 0.0
    %138 = vmatpush.msra.mxu0 0.0
    %139 = vmatpush.msra.mxu0 0.0
    %140 = vmatpush.msra.mxu0 0.0
    %141 = vmatpush.msra.mxu0 %v77
    %142 = vmatmul.f32.gmra.mxu0 %v103
    %v143 = vpop.f32.mrf.mxu0
    %v144 = vadd.f32 %v97, %v143
    %145 = vmatmul.f32.gmra.mxu0 %v106
    %v146 = vpop.f32.mrf.mxu0
    %v147 = vadd.f32 %v97, %v146
    %148 = vmatmul.f32.gmra.mxu0 %v109
    %v149 = vpop.f32.mrf.mxu0
    %v150 = vadd.f32 %v97, %v149
    %151 = vmatmul.f32.gmra.mxu0 %v112
    %v152 = vpop.f32.mrf.mxu0
    %v153 = vadd.f32 %v97, %v152
    %154 = vmatmul.f32.gmra.mxu0 %v115
    %v155 = vpop.f32.mrf.mxu0
    %v156 = vadd.f32 %v97, %v155
    %157 = vmatmul.f32.gmra.mxu0 %v118
    %v158 = vpop.f32.mrf.mxu0
    %v159 = vadd.f32 %v97, %v158
    %160 = vmatmul.f32.gmra.mxu0 %v121
    %v161 = vpop.f32.mrf.mxu0
    %v162 = vadd.f32 %v97, %v161
    %163 = vmatmul.f32.gmra.mxu0 %v124
    %v164 = vpop.f32.mrf.mxu0
    %v165 = vadd.f32 %v97, %v164
    %166 = vdwg.mxu0
    %167 = vmatpush.msra.mxu0 0.0
    %168 = vmatpush.msra.mxu0 0.0
    %169 = vmatpush.msra.mxu0 0.0
    %170 = vmatpush.msra.mxu0 0.0
    %171 = vmatpush.msra.mxu0 0.0
    %172 = vmatpush.msra.mxu0 0.0
    %173 = vmatpush.msra.mxu0 0.0
    %174 = vmatpush.msra.mxu0 0.0
    %175 = vmatpush.msra.mxu0 0.0
    %176 = vmatpush.msra.mxu0 0.0
    %177 = vmatpush.msra.mxu0 0.0
    %178 = vmatpush.msra.mxu0 0.0
    %179 = vmatpush.msra.mxu0 0.0
    %180 = vmatpush.msra.mxu0 0.0
    %181 = vmatpush.msra.mxu0 0.0
    %182 = vmatpush.msra.mxu0 %v78
    %183 = vmatmul.f32.gmra.mxu0 %v103
    %v184 = vpop.f32.mrf.mxu0
    %v185 = vadd.f32 %v98, %v184
    %186 = vmatmul.f32.gmra.mxu0 %v106
    %v187 = vpop.f32.mrf.mxu0
    %v188 = vadd.f32 %v98, %v187
    %189 = vmatmul.f32.gmra.mxu0 %v109
    %v190 = vpop.f32.mrf.mxu0
    %v191 = vadd.f32 %v98, %v190
    %192 = vmatmul.f32.gmra.mxu0 %v112
    %v193 = vpop.f32.mrf.mxu0
    %v194 = vadd.f32 %v98, %v193
    %195 = vmatmul.f32.gmra.mxu0 %v115
    %v196 = vpop.f32.mrf.mxu0
    %v197 = vadd.f32 %v98, %v196
    %198 = vmatmul.f32.gmra.mxu0 %v118
    %v199 = vpop.f32.mrf.mxu0
    %v200 = vadd.f32 %v98, %v199
    %201 = vmatmul.f32.gmra.mxu0 %v121
    %v202 = vpop.f32.mrf.mxu0
    %v203 = vadd.f32 %v98, %v202
    %204 = vmatmul.f32.gmra.mxu0 %v124
    %v205 = vpop.f32.mrf.mxu0
    %v206 = vadd.f32 %v98, %v205
    %207 = vdwg.mxu0
    %v208 = vsel %vm63, %v144, %v165
    %v209 = vsel %vm64, %v185, %v206
    %vm210 = vcmask 523264
    %v212 = vsel %vm210, 0.0, 0
    %214 = vmatpush.msra.mxu0 0.0
    %215 = vmatpush.msra.mxu0 0.0
    %216 = vmatpush.msra.mxu0 0.0
    %217 = vmatpush.msra.mxu0 0.0
    %218 = vmatpush.msra.mxu0 0.0
    %219 = vmatpush.msra.mxu0 0.0
    %220 = vmatpush.msra.mxu0 0.0
    %221 = vmatpush.msra.mxu0 0.0
    %222 = vmatpush.msra.mxu0 %v93
    %223 = vmatpush.msra.mxu0 %v91
    %224 = vmatpush.msra.mxu0 %v89
    %225 = vmatpush.msra.mxu0 %v87
    %226 = vmatpush.msra.mxu0 %v85
    %227 = vmatpush.msra.mxu0 %v83
    %228 = vmatpush.msra.mxu0 %v81
    %229 = vmatpush.msra.mxu0 %v79
    %230 = vmatmul.f32.gmra.mxu0 %v212
    %v231 = vpop.f32.mrf.mxu0
    %v232 = vadd.f32 0.0, %v231
    %233 = vdwg.mxu0
    %234 = vmatpush.msra.mxu0 0.0
    %235 = vmatpush.msra.mxu0 0.0
    %236 = vmatpush.msra.mxu0 0.0
    %237 = vmatpush.msra.mxu0 0.0
    %238 = vmatpush.msra.mxu0 0.0
    %239 = vmatpush.msra.mxu0 0.0
    %240 = vmatpush.msra.mxu0 0.0
    %241 = vmatpush.msra.mxu0 0.0
    %242 = vmatpush.msra.mxu0 %v94
    %243 = vmatpush.msra.mxu0 %v92
    %244 = vmatpush.msra.mxu0 %v90
    %245 = vmatpush.msra.mxu0 %v88
    %246 = vmatpush.msra.mxu0 %v86
    %247 = vmatpush.msra.mxu0 %v84
    %248 = vmatpush.msra.mxu0 %v82
    %249 = vmatpush.msra.mxu0 %v80
    %250 = vmatmul.f32.gmra.mxu0 %v212
    %v251 = vpop.f32.mrf.mxu0
    %v252 = vadd.f32 0.0, %v251
    %253 = vdwg.mxu0
    %v254 = vadd.f32 %v208, %v232
    %v255 = vadd.f32 %v209, %v252
    %v256 = vtanh.pop %v254
    %v257 = vtanh.pop %v255
    %v258 = vxor.u32 %v254, 2147483648
    %v259 = vxor.u32 %v255, 2147483648
    %v260 = vmul.f32 %v258, 1.442695
    %v261 = vpow.pop %v260
    %v262 = vmul.f32 %v259, 1.442695
    %v263 = vpow.pop %v262
    %v264 = vadd.f32 %v261, 1.0
    %v265 = vadd.f32 %v263, 1.0
    %v266 = vrcp.pop %v264
    %v267 = vmul.f32 %v264, %v266
    %v268 = vsub.f32 1.0, %v267
    %v269 = vmul.f32 %v266, %v268
    %v270 = vadd.f32 %v266, %v269
    %vm271 = vweird.f32 %v264
    %vm272 = vweird.f32 %v266
    %vm273 = vmor %vm271, %vm272
    %v274 = vsel %vm273, %v266, %v270
    %v275 = vand.u32 2147483647, %v264
    %vm276 = vcmp.eq.f32.partialorder %v275, 8.507059e+37
    %v277 = vand.u32 %v264, 2147483648
    %v278 = vor.u32 1.1754944e-38, %v277
    %v279 = vsel %vm276, %v278, %v274
    %v280 = vmul.f32 1.0, %v279
    %v281 = vrcp.pop %v265
    %v282 = vmul.f32 %v265, %v281
    %v283 = vsub.f32 1.0, %v282
    %v284 = vmul.f32 %v281, %v283
    %v285 = vadd.f32 %v281, %v284
    %vm286 = vweird.f32 %v265
    %vm287 = vweird.f32 %v281
    %vm288 = vmor %vm286, %vm287
    %v289 = vsel %vm288, %v281, %v285
    %v290 = vand.u32 2147483647, %v265
    %vm291 = vcmp.eq.f32.partialorder %v290, 8.507059e+37
    %v292 = vand.u32 %v265, 2147483648
    %v293 = vor.u32 1.1754944e-38, %v292
    %v294 = vsel %vm291, %v293, %v289
    %v295 = vmul.f32 1.0, %v294
    %v296 = vsel %vm65, %v256, %v280
    %v297 = vsel %vm66, %v257, %v295
    %v298 = vmul.f32 %v296, 0.0
    %300 = vrot.lane.b32.xlu0 %v297, 64
    %v301 = vpop.permute.xlu0 %300
    %v303 = vmul.f32 %v296, %v301
    %305 = vrot.lane.b32.xlu0 %v303, 64
    %v306 = vpop.permute.xlu0 %305
    %v308 = vadd.f32 %v298, %v306
    %v309 = vtanh.pop %v308
    %311 = vrot.lane.b32.xlu0 %v309, 64
    %v312 = vpop.permute.xlu0 %311
    %v314 = vmul.f32 %v297, %v312
    %v315 = vsel %vm63, %v147, %v162
    %v316 = vsel %vm64, %v188, %v203
    %v318 = vsel %vm210, %v314, 0
    %320 = vmatpush.msra.mxu0 0.0
    %321 = vmatpush.msra.mxu0 0.0
    %322 = vmatpush.msra.mxu0 0.0
    %323 = vmatpush.msra.mxu0 0.0
    %324 = vmatpush.msra.mxu0 0.0
    %325 = vmatpush.msra.mxu0 0.0
    %326 = vmatpush.msra.mxu0 0.0
    %327 = vmatpush.msra.mxu0 0.0
    %328 = vmatpush.msra.mxu0 %v93
    %329 = vmatpush.msra.mxu0 %v91
    %330 = vmatpush.msra.mxu0 %v89
    %331 = vmatpush.msra.mxu0 %v87
    %332 = vmatpush.msra.mxu0 %v85
    %333 = vmatpush.msra.mxu0 %v83
    %334 = vmatpush.msra.mxu0 %v81
    %335 = vmatpush.msra.mxu0 %v79
    %336 = vmatmul.f32.gmra.mxu0 %v318
    %v337 = vpop.f32.mrf.mxu0
    %v338 = vadd.f32 0.0, %v337
    %339 = vdwg.mxu0
    %340 = vmatpush.msra.mxu0 0.0
    %341 = vmatpush.msra.mxu0 0.0
    %342 = vmatpush.msra.mxu0 0.0
    %343 = vmatpush.msra.mxu0 0.0
    %344 = vmatpush.msra.mxu0 0.0
    %345 = vmatpush.msra.mxu0 0.0
    %346 = vmatpush.msra.mxu0 0.0
    %347 = vmatpush.msra.mxu0 0.0
    %348 = vmatpush.msra.mxu0 %v94
    %349 = vmatpush.msra.mxu0 %v92
    %350 = vmatpush.msra.mxu0 %v90
    %351 = vmatpush.msra.mxu0 %v88
    %352 = vmatpush.msra.mxu0 %v86
    %353 = vmatpush.msra.mxu0 %v84
    %354 = vmatpush.msra.mxu0 %v82
    %355 = vmatpush.msra.mxu0 %v80
    %356 = vmatmul.f32.gmra.mxu0 %v318
    %v357 = vpop.f32.mrf.mxu0
    %v358 = vadd.f32 0.0, %v357
    %359 = vdwg.mxu0
    %v360 = vadd.f32 %v315, %v338
    %v361 = vadd.f32 %v316, %v358
    %v362 = vtanh.pop %v360
    %v363 = vtanh.pop %v361
    %v364 = vxor.u32 %v360, 2147483648
    %v365 = vxor.u32 %v361, 2147483648
    %v366 = vmul.f32 %v364, 1.442695
    %v367 = vpow.pop %v366
    %v368 = vmul.f32 %v365, 1.442695
    %v369 = vpow.pop %v368
    %v370 = vadd.f32 %v367, 1.0
    %v371 = vadd.f32 %v369, 1.0
    %v372 = vrcp.pop %v370
    %v373 = vmul.f32 %v370, %v372
    %v374 = vsub.f32 1.0, %v373
    %v375 = vmul.f32 %v372, %v374
    %v376 = vadd.f32 %v372, %v375
    %vm377 = vweird.f32 %v370
    %vm378 = vweird.f32 %v372
    %vm379 = vmor %vm377, %vm378
    %v380 = vsel %vm379, %v372, %v376
    %v381 = vand.u32 2147483647, %v370
    %vm382 = vcmp.eq.f32.partialorder %v381, 8.507059e+37
    %v383 = vand.u32 %v370, 2147483648
    %v384 = vor.u32 1.1754944e-38, %v383
    %v385 = vsel %vm382, %v384, %v380
    %v386 = vmul.f32 1.0, %v385
    %v387 = vrcp.pop %v371
    %v388 = vmul.f32 %v371, %v387
    %v389 = vsub.f32 1.0, %v388
    %v390 = vmul.f32 %v387, %v389
    %v391 = vadd.f32 %v387, %v390
    %vm392 = vweird.f32 %v371
    %vm393 = vweird.f32 %v387
    %vm394 = vmor %vm392, %vm393
    %v395 = vsel %vm394, %v387, %v391
    %v396 = vand.u32 2147483647, %v371
    %vm397 = vcmp.eq.f32.partialorder %v396, 8.507059e+37
    %v398 = vand.u32 %v371, 2147483648
    %v399 = vor.u32 1.1754944e-38, %v398
    %v400 = vsel %vm397, %v399, %v395
    %v401 = vmul.f32 1.0, %v400
    %v402 = vsel %vm65, %v362, %v386
    %v403 = vsel %vm66, %v363, %v401
    %v404 = vmul.f32 %v402, %v308
    %406 = vrot.lane.b32.xlu0 %v403, 64
    %v407 = vpop.permute.xlu0 %406
    %v409 = vmul.f32 %v402, %v407
    %411 = vrot.lane.b32.xlu0 %v409, 64
    %v412 = vpop.permute.xlu0 %411
    %v414 = vadd.f32 %v404, %v412
    %v415 = vtanh.pop %v414
    %417 = vrot.lane.b32.xlu0 %v415, 64
    %v418 = vpop.permute.xlu0 %417
    %v420 = vmul.f32 %v403, %v418
    %v421 = vsel %vm63, %v150, %v159
    %v422 = vsel %vm64, %v191, %v200
    %v424 = vsel %vm210, %v420, 0
    %426 = vmatpush.msra.mxu0 0.0
    %427 = vmatpush.msra.mxu0 0.0
    %428 = vmatpush.msra.mxu0 0.0
    %429 = vmatpush.msra.mxu0 0.0
    %430 = vmatpush.msra.mxu0 0.0
    %431 = vmatpush.msra.mxu0 0.0
    %432 = vmatpush.msra.mxu0 0.0
    %433 = vmatpush.msra.mxu0 0.0
    %434 = vmatpush.msra.mxu0 %v93
    %435 = vmatpush.msra.mxu0 %v91
    %436 = vmatpush.msra.mxu0 %v89
    %437 = vmatpush.msra.mxu0 %v87
    %438 = vmatpush.msra.mxu0 %v85
    %439 = vmatpush.msra.mxu0 %v83
    %440 = vmatpush.msra.mxu0 %v81
    %441 = vmatpush.msra.mxu0 %v79
    %442 = vmatmul.f32.gmra.mxu0 %v424
    %v443 = vpop.f32.mrf.mxu0
    %v444 = vadd.f32 0.0, %v443
    %445 = vdwg.mxu0
    %446 = vmatpush.msra.mxu0 0.0
    %447 = vmatpush.msra.mxu0 0.0
    %448 = vmatpush.msra.mxu0 0.0
    %449 = vmatpush.msra.mxu0 0.0
    %450 = vmatpush.msra.mxu0 0.0
    %451 = vmatpush.msra.mxu0 0.0
    %452 = vmatpush.msra.mxu0 0.0
    %453 = vmatpush.msra.mxu0 0.0
    %454 = vmatpush.msra.mxu0 %v94
    %455 = vmatpush.msra.mxu0 %v92
    %456 = vmatpush.msra.mxu0 %v90
    %457 = vmatpush.msra.mxu0 %v88
    %458 = vmatpush.msra.mxu0 %v86
    %459 = vmatpush.msra.mxu0 %v84
    %460 = vmatpush.msra.mxu0 %v82
    %461 = vmatpush.msra.mxu0 %v80
    %462 = vmatmul.f32.gmra.mxu0 %v424
    %v463 = vpop.f32.mrf.mxu0
    %v464 = vadd.f32 0.0, %v463
    %465 = vdwg.mxu0
    %v466 = vadd.f32 %v421, %v444
    %v467 = vadd.f32 %v422, %v464
    %v468 = vtanh.pop %v466
    %v469 = vtanh.pop %v467
    %v470 = vxor.u32 %v466, 2147483648
    %v471 = vxor.u32 %v467, 2147483648
    %v472 = vmul.f32 %v470, 1.442695
    %v473 = vpow.pop %v472
    %v474 = vmul.f32 %v471, 1.442695
    %v475 = vpow.pop %v474
    %v476 = vadd.f32 %v473, 1.0
    %v477 = vadd.f32 %v475, 1.0
    %v478 = vrcp.pop %v476
    %v479 = vmul.f32 %v476, %v478
    %v480 = vsub.f32 1.0, %v479
    %v481 = vmul.f32 %v478, %v480
    %v482 = vadd.f32 %v478, %v481
    %vm483 = vweird.f32 %v476
    %vm484 = vweird.f32 %v478
    %vm485 = vmor %vm483, %vm484
    %v486 = vsel %vm485, %v478, %v482
    %v487 = vand.u32 2147483647, %v476
    %vm488 = vcmp.eq.f32.partialorder %v487, 8.507059e+37
    %v489 = vand.u32 %v476, 2147483648
    %v490 = vor.u32 1.1754944e-38, %v489
    %v491 = vsel %vm488, %v490, %v486
    %v492 = vmul.f32 1.0, %v491
    %v493 = vrcp.pop %v477
    %v494 = vmul.f32 %v477, %v493
    %v495 = vsub.f32 1.0, %v494
    %v496 = vmul.f32 %v493, %v495
    %v497 = vadd.f32 %v493, %v496
    %vm498 = vweird.f32 %v477
    %vm499 = vweird.f32 %v493
    %vm500 = vmor %vm498, %vm499
    %v501 = vsel %vm500, %v493, %v497
    %v502 = vand.u32 2147483647, %v477
    %vm503 = vcmp.eq.f32.partialorder %v502, 8.507059e+37
    %v504 = vand.u32 %v477, 2147483648
    %v505 = vor.u32 1.1754944e-38, %v504
    %v506 = vsel %vm503, %v505, %v501
    %v507 = vmul.f32 1.0, %v506
    %v508 = vsel %vm65, %v468, %v492
    %v509 = vsel %vm66, %v469, %v507
    %v510 = vmul.f32 %v508, %v414
    %512 = vrot.lane.b32.xlu0 %v509, 64
    %v513 = vpop.permute.xlu0 %512
    %v515 = vmul.f32 %v508, %v513
    %517 = vrot.lane.b32.xlu0 %v515, 64
    %v518 = vpop.permute.xlu0 %517
    %v520 = vadd.f32 %v510, %v518
    %v521 = vtanh.pop %v520
    %523 = vrot.lane.b32.xlu0 %v521, 64
    %v524 = vpop.permute.xlu0 %523
    %v526 = vmul.f32 %v509, %v524
    %v527 = vsel %vm63, %v153, %v156
    %v528 = vsel %vm64, %v194, %v197
    %v530 = vsel %vm210, %v526, 0
    %532 = vmatpush.msra.mxu0 0.0
    %533 = vmatpush.msra.mxu0 0.0
    %534 = vmatpush.msra.mxu0 0.0
    %535 = vmatpush.msra.mxu0 0.0
    %536 = vmatpush.msra.mxu0 0.0
    %537 = vmatpush.msra.mxu0 0.0
    %538 = vmatpush.msra.mxu0 0.0
    %539 = vmatpush.msra.mxu0 0.0
    %540 = vmatpush.msra.mxu0 %v93
    %541 = vmatpush.msra.mxu0 %v91
    %542 = vmatpush.msra.mxu0 %v89
    %543 = vmatpush.msra.mxu0 %v87
    %544 = vmatpush.msra.mxu0 %v85
    %545 = vmatpush.msra.mxu0 %v83
    %546 = vmatpush.msra.mxu0 %v81
    %547 = vmatpush.msra.mxu0 %v79
    %548 = vmatmul.f32.gmra.mxu0 %v530
    %v549 = vpop.f32.mrf.mxu0
    %v550 = vadd.f32 0.0, %v549
    %551 = vdwg.mxu0
    %552 = vmatpush.msra.mxu0 0.0
    %553 = vmatpush.msra.mxu0 0.0
    %554 = vmatpush.msra.mxu0 0.0
    %555 = vmatpush.msra.mxu0 0.0
    %556 = vmatpush.msra.mxu0 0.0
    %557 = vmatpush.msra.mxu0 0.0
    %558 = vmatpush.msra.mxu0 0.0
    %559 = vmatpush.msra.mxu0 0.0
    %560 = vmatpush.msra.mxu0 %v94
    %561 = vmatpush.msra.mxu0 %v92
    %562 = vmatpush.msra.mxu0 %v90
    %563 = vmatpush.msra.mxu0 %v88
    %564 = vmatpush.msra.mxu0 %v86
    %565 = vmatpush.msra.mxu0 %v84
    %566 = vmatpush.msra.mxu0 %v82
    %567 = vmatpush.msra.mxu0 %v80
    %568 = vmatmul.f32.gmra.mxu0 %v530
    %v569 = vpop.f32.mrf.mxu0
    %v570 = vadd.f32 0.0, %v569
    %571 = vdwg.mxu0
    %v572 = vadd.f32 %v527, %v550
    %v573 = vadd.f32 %v528, %v570
    %v574 = vtanh.pop %v572
    %v575 = vtanh.pop %v573
    %v576 = vxor.u32 %v572, 2147483648
    %v577 = vxor.u32 %v573, 2147483648
    %v578 = vmul.f32 %v576, 1.442695
    %v579 = vpow.pop %v578
    %v580 = vmul.f32 %v577, 1.442695
    %v581 = vpow.pop %v580
    %v582 = vadd.f32 %v579, 1.0
    %v583 = vadd.f32 %v581, 1.0
    %v584 = vrcp.pop %v582
    %v585 = vmul.f32 %v582, %v584
    %v586 = vsub.f32 1.0, %v585
    %v587 = vmul.f32 %v584, %v586
    %v588 = vadd.f32 %v584, %v587
    %vm589 = vweird.f32 %v582
    %vm590 = vweird.f32 %v584
    %vm591 = vmor %vm589, %vm590
    %v592 = vsel %vm591, %v584, %v588
    %v593 = vand.u32 2147483647, %v582
    %vm594 = vcmp.eq.f32.partialorder %v593, 8.507059e+37
    %v595 = vand.u32 %v582, 2147483648
    %v596 = vor.u32 1.1754944e-38, %v595
    %v597 = vsel %vm594, %v596, %v592
    %v598 = vmul.f32 1.0, %v597
    %v599 = vrcp.pop %v583
    %v600 = vmul.f32 %v583, %v599
    %v601 = vsub.f32 1.0, %v600
    %v602 = vmul.f32 %v599, %v601
    %v603 = vadd.f32 %v599, %v602
    %vm604 = vweird.f32 %v583
    %vm605 = vweird.f32 %v599
    %vm606 = vmor %vm604, %vm605
    %v607 = vsel %vm606, %v599, %v603
    %v608 = vand.u32 2147483647, %v583
    %vm609 = vcmp.eq.f32.partialorder %v608, 8.507059e+37
    %v610 = vand.u32 %v583, 2147483648
    %v611 = vor.u32 1.1754944e-38, %v610
    %v612 = vsel %vm609, %v611, %v607
    %v613 = vmul.f32 1.0, %v612
    %v614 = vsel %vm65, %v574, %v598
    %v615 = vsel %vm66, %v575, %v613
    %v616 = vmul.f32 %v614, %v520
    %618 = vrot.lane.b32.xlu0 %v615, 64
    %v619 = vpop.permute.xlu0 %618
    %v621 = vmul.f32 %v614, %v619
    %623 = vrot.lane.b32.xlu0 %v621, 64
    %v624 = vpop.permute.xlu0 %623
    %v626 = vadd.f32 %v616, %v624
    %v627 = vtanh.pop %v626
    %629 = vrot.lane.b32.xlu0 %v627, 64
    %v630 = vpop.permute.xlu0 %629
    %v632 = vmul.f32 %v615, %v630
    %v633 = vsel %vm63, %v156, %v153
    %v634 = vsel %vm64, %v197, %v194
    %v636 = vsel %vm210, %v632, 0
    %638 = vmatpush.msra.mxu0 0.0
    %639 = vmatpush.msra.mxu0 0.0
    %640 = vmatpush.msra.mxu0 0.0
    %641 = vmatpush.msra.mxu0 0.0
    %642 = vmatpush.msra.mxu0 0.0
    %643 = vmatpush.msra.mxu0 0.0
    %644 = vmatpush.msra.mxu0 0.0
    %645 = vmatpush.msra.mxu0 0.0
    %646 = vmatpush.msra.mxu0 %v93
    %647 = vmatpush.msra.mxu0 %v91
    %648 = vmatpush.msra.mxu0 %v89
    %649 = vmatpush.msra.mxu0 %v87
    %650 = vmatpush.msra.mxu0 %v85
    %651 = vmatpush.msra.mxu0 %v83
    %652 = vmatpush.msra.mxu0 %v81
    %653 = vmatpush.msra.mxu0 %v79
    %654 = vmatmul.f32.gmra.mxu0 %v636
    %v655 = vpop.f32.mrf.mxu0
    %v656 = vadd.f32 0.0, %v655
    %657 = vdwg.mxu0
    %658 = vmatpush.msra.mxu0 0.0
    %659 = vmatpush.msra.mxu0 0.0
    %660 = vmatpush.msra.mxu0 0.0
    %661 = vmatpush.msra.mxu0 0.0
    %662 = vmatpush.msra.mxu0 0.0
    %663 = vmatpush.msra.mxu0 0.0
    %664 = vmatpush.msra.mxu0 0.0
    %665 = vmatpush.msra.mxu0 0.0
    %666 = vmatpush.msra.mxu0 %v94
    %667 = vmatpush.msra.mxu0 %v92
    %668 = vmatpush.msra.mxu0 %v90
    %669 = vmatpush.msra.mxu0 %v88
    %670 = vmatpush.msra.mxu0 %v86
    %671 = vmatpush.msra.mxu0 %v84
    %672 = vmatpush.msra.mxu0 %v82
    %673 = vmatpush.msra.mxu0 %v80
    %674 = vmatmul.f32.gmra.mxu0 %v636
    %v675 = vpop.f32.mrf.mxu0
    %v676 = vadd.f32 0.0, %v675
    %677 = vdwg.mxu0
    %v678 = vadd.f32 %v633, %v656
    %v679 = vadd.f32 %v634, %v676
    %v680 = vtanh.pop %v678
    %v681 = vtanh.pop %v679
    %v682 = vxor.u32 %v678, 2147483648
    %v683 = vxor.u32 %v679, 2147483648
    %v684 = vmul.f32 %v682, 1.442695
    %v685 = vpow.pop %v684
    %v686 = vmul.f32 %v683, 1.442695
    %v687 = vpow.pop %v686
    %v688 = vadd.f32 %v685, 1.0
    %v689 = vadd.f32 %v687, 1.0
    %v690 = vrcp.pop %v688
    %v691 = vmul.f32 %v688, %v690
    %v692 = vsub.f32 1.0, %v691
    %v693 = vmul.f32 %v690, %v692
    %v694 = vadd.f32 %v690, %v693
    %vm695 = vweird.f32 %v688
    %vm696 = vweird.f32 %v690
    %vm697 = vmor %vm695, %vm696
    %v698 = vsel %vm697, %v690, %v694
    %v699 = vand.u32 2147483647, %v688
    %vm700 = vcmp.eq.f32.partialorder %v699, 8.507059e+37
    %v701 = vand.u32 %v688, 2147483648
    %v702 = vor.u32 1.1754944e-38, %v701
    %v703 = vsel %vm700, %v702, %v698
    %v704 = vmul.f32 1.0, %v703
    %v705 = vrcp.pop %v689
    %v706 = vmul.f32 %v689, %v705
    %v707 = vsub.f32 1.0, %v706
    %v708 = vmul.f32 %v705, %v707
    %v709 = vadd.f32 %v705, %v708
    %vm710 = vweird.f32 %v689
    %vm711 = vweird.f32 %v705
    %vm712 = vmor %vm710, %vm711
    %v713 = vsel %vm712, %v705, %v709
    %v714 = vand.u32 2147483647, %v689
    %vm715 = vcmp.eq.f32.partialorder %v714, 8.507059e+37
    %v716 = vand.u32 %v689, 2147483648
    %v717 = vor.u32 1.1754944e-38, %v716
    %v718 = vsel %vm715, %v717, %v713
    %v719 = vmul.f32 1.0, %v718
    %v720 = vsel %vm65, %v680, %v704
    %v721 = vsel %vm66, %v681, %v719
    %v722 = vmul.f32 %v720, %v626
    %724 = vrot.lane.b32.xlu0 %v721, 64
    %v725 = vpop.permute.xlu0 %724
    %v727 = vmul.f32 %v720, %v725
    %729 = vrot.lane.b32.xlu0 %v727, 64
    %v730 = vpop.permute.xlu0 %729
    %v732 = vadd.f32 %v722, %v730
    %v733 = vtanh.pop %v732
    %735 = vrot.lane.b32.xlu0 %v733, 64
    %v736 = vpop.permute.xlu0 %735
    %v738 = vmul.f32 %v721, %v736
    %v739 = vsel %vm63, %v159, %v150
    %v740 = vsel %vm64, %v200, %v191
    %v742 = vsel %vm210, %v738, 0
    %744 = vmatpush.msra.mxu0 0.0
    %745 = vmatpush.msra.mxu0 0.0
    %746 = vmatpush.msra.mxu0 0.0
    %747 = vmatpush.msra.mxu0 0.0
    %748 = vmatpush.msra.mxu0 0.0
    %749 = vmatpush.msra.mxu0 0.0
    %750 = vmatpush.msra.mxu0 0.0
    %751 = vmatpush.msra.mxu0 0.0
    %752 = vmatpush.msra.mxu0 %v93
    %753 = vmatpush.msra.mxu0 %v91
    %754 = vmatpush.msra.mxu0 %v89
    %755 = vmatpush.msra.mxu0 %v87
    %756 = vmatpush.msra.mxu0 %v85
    %757 = vmatpush.msra.mxu0 %v83
    %758 = vmatpush.msra.mxu0 %v81
    %759 = vmatpush.msra.mxu0 %v79
    %760 = vmatmul.f32.gmra.mxu0 %v742
    %v761 = vpop.f32.mrf.mxu0
    %v762 = vadd.f32 0.0, %v761
    %763 = vdwg.mxu0
    %764 = vmatpush.msra.mxu0 0.0
    %765 = vmatpush.msra.mxu0 0.0
    %766 = vmatpush.msra.mxu0 0.0
    %767 = vmatpush.msra.mxu0 0.0
    %768 = vmatpush.msra.mxu0 0.0
    %769 = vmatpush.msra.mxu0 0.0
    %770 = vmatpush.msra.mxu0 0.0
    %771 = vmatpush.msra.mxu0 0.0
    %772 = vmatpush.msra.mxu0 %v94
    %773 = vmatpush.msra.mxu0 %v92
    %774 = vmatpush.msra.mxu0 %v90
    %775 = vmatpush.msra.mxu0 %v88
    %776 = vmatpush.msra.mxu0 %v86
    %777 = vmatpush.msra.mxu0 %v84
    %778 = vmatpush.msra.mxu0 %v82
    %779 = vmatpush.msra.mxu0 %v80
    %780 = vmatmul.f32.gmra.mxu0 %v742
    %v781 = vpop.f32.mrf.mxu0
    %v782 = vadd.f32 0.0, %v781
    %783 = vdwg.mxu0
    %v784 = vadd.f32 %v739, %v762
    %v785 = vadd.f32 %v740, %v782
    %v786 = vtanh.pop %v784
    %v787 = vtanh.pop %v785
    %v788 = vxor.u32 %v784, 2147483648
    %v789 = vxor.u32 %v785, 2147483648
    %v790 = vmul.f32 %v788, 1.442695
    %v791 = vpow.pop %v790
    %v792 = vmul.f32 %v789, 1.442695
    %v793 = vpow.pop %v792
    %v794 = vadd.f32 %v791, 1.0
    %v795 = vadd.f32 %v793, 1.0
    %v796 = vrcp.pop %v794
    %v797 = vmul.f32 %v794, %v796
    %v798 = vsub.f32 1.0, %v797
    %v799 = vmul.f32 %v796, %v798
    %v800 = vadd.f32 %v796, %v799
    %vm801 = vweird.f32 %v794
    %vm802 = vweird.f32 %v796
    %vm803 = vmor %vm801, %vm802
    %v804 = vsel %vm803, %v796, %v800
    %v805 = vand.u32 2147483647, %v794
    %vm806 = vcmp.eq.f32.partialorder %v805, 8.507059e+37
    %v807 = vand.u32 %v794, 2147483648
    %v808 = vor.u32 1.1754944e-38, %v807
    %v809 = vsel %vm806, %v808, %v804
    %v810 = vmul.f32 1.0, %v809
    %v811 = vrcp.pop %v795
    %v812 = vmul.f32 %v795, %v811
    %v813 = vsub.f32 1.0, %v812
    %v814 = vmul.f32 %v811, %v813
    %v815 = vadd.f32 %v811, %v814
    %vm816 = vweird.f32 %v795
    %vm817 = vweird.f32 %v811
    %vm818 = vmor %vm816, %vm817
    %v819 = vsel %vm818, %v811, %v815
    %v820 = vand.u32 2147483647, %v795
    %vm821 = vcmp.eq.f32.partialorder %v820, 8.507059e+37
    %v822 = vand.u32 %v795, 2147483648
    %v823 = vor.u32 1.1754944e-38, %v822
    %v824 = vsel %vm821, %v823, %v819
    %v825 = vmul.f32 1.0, %v824
    %v826 = vsel %vm65, %v786, %v810
    %v827 = vsel %vm66, %v787, %v825
    %v828 = vmul.f32 %v826, %v732
    %830 = vrot.lane.b32.xlu0 %v827, 64
    %v831 = vpop.permute.xlu0 %830
    %v833 = vmul.f32 %v826, %v831
    %835 = vrot.lane.b32.xlu0 %v833, 64
    %v836 = vpop.permute.xlu0 %835
    %v838 = vadd.f32 %v828, %v836
    %v839 = vtanh.pop %v838
    %841 = vrot.lane.b32.xlu0 %v839, 64
    %v842 = vpop.permute.xlu0 %841
    %v844 = vmul.f32 %v827, %v842
    %v845 = vsel %vm63, %v162, %v147
    %v846 = vsel %vm64, %v203, %v188
    %v848 = vsel %vm210, %v844, 0
    %850 = vmatpush.msra.mxu0 0.0
    %851 = vmatpush.msra.mxu0 0.0
    %852 = vmatpush.msra.mxu0 0.0
    %853 = vmatpush.msra.mxu0 0.0
    %854 = vmatpush.msra.mxu0 0.0
    %855 = vmatpush.msra.mxu0 0.0
    %856 = vmatpush.msra.mxu0 0.0
    %857 = vmatpush.msra.mxu0 0.0
    %858 = vmatpush.msra.mxu0 %v93
    %859 = vmatpush.msra.mxu0 %v91
    %860 = vmatpush.msra.mxu0 %v89
    %861 = vmatpush.msra.mxu0 %v87
    %862 = vmatpush.msra.mxu0 %v85
    %863 = vmatpush.msra.mxu0 %v83
    %864 = vmatpush.msra.mxu0 %v81
    %865 = vmatpush.msra.mxu0 %v79
    %866 = vmatmul.f32.gmra.mxu0 %v848
    %v867 = vpop.f32.mrf.mxu0
    %v868 = vadd.f32 0.0, %v867
    %869 = vdwg.mxu0
    %870 = vmatpush.msra.mxu0 0.0
    %871 = vmatpush.msra.mxu0 0.0
    %872 = vmatpush.msra.mxu0 0.0
    %873 = vmatpush.msra.mxu0 0.0
    %874 = vmatpush.msra.mxu0 0.0
    %875 = vmatpush.msra.mxu0 0.0
    %876 = vmatpush.msra.mxu0 0.0
    %877 = vmatpush.msra.mxu0 0.0
    %878 = vmatpush.msra.mxu0 %v94
    %879 = vmatpush.msra.mxu0 %v92
    %880 = vmatpush.msra.mxu0 %v90
    %881 = vmatpush.msra.mxu0 %v88
    %882 = vmatpush.msra.mxu0 %v86
    %883 = vmatpush.msra.mxu0 %v84
    %884 = vmatpush.msra.mxu0 %v82
    %885 = vmatpush.msra.mxu0 %v80
    %886 = vmatmul.f32.gmra.mxu0 %v848
    %v887 = vpop.f32.mrf.mxu0
    %v888 = vadd.f32 0.0, %v887
    %889 = vdwg.mxu0
    %v890 = vadd.f32 %v845, %v868
    %v891 = vadd.f32 %v846, %v888
    %v892 = vtanh.pop %v890
    %v893 = vtanh.pop %v891
    %v894 = vxor.u32 %v890, 2147483648
    %v895 = vxor.u32 %v891, 2147483648
    %v896 = vmul.f32 %v894, 1.442695
    %v897 = vpow.pop %v896
    %v898 = vmul.f32 %v895, 1.442695
    %v899 = vpow.pop %v898
    %v900 = vadd.f32 %v897, 1.0
    %v901 = vadd.f32 %v899, 1.0
    %v902 = vrcp.pop %v900
    %v903 = vmul.f32 %v900, %v902
    %v904 = vsub.f32 1.0, %v903
    %v905 = vmul.f32 %v902, %v904
    %v906 = vadd.f32 %v902, %v905
    %vm907 = vweird.f32 %v900
    %vm908 = vweird.f32 %v902
    %vm909 = vmor %vm907, %vm908
    %v910 = vsel %vm909, %v902, %v906
    %v911 = vand.u32 2147483647, %v900
    %vm912 = vcmp.eq.f32.partialorder %v911, 8.507059e+37
    %v913 = vand.u32 %v900, 2147483648
    %v914 = vor.u32 1.1754944e-38, %v913
    %v915 = vsel %vm912, %v914, %v910
    %v916 = vmul.f32 1.0, %v915
    %v917 = vrcp.pop %v901
    %v918 = vmul.f32 %v901, %v917
    %v919 = vsub.f32 1.0, %v918
    %v920 = vmul.f32 %v917, %v919
    %v921 = vadd.f32 %v917, %v920
    %vm922 = vweird.f32 %v901
    %vm923 = vweird.f32 %v917
    %vm924 = vmor %vm922, %vm923
    %v925 = vsel %vm924, %v917, %v921
    %v926 = vand.u32 2147483647, %v901
    %vm927 = vcmp.eq.f32.partialorder %v926, 8.507059e+37
    %v928 = vand.u32 %v901, 2147483648
    %v929 = vor.u32 1.1754944e-38, %v928
    %v930 = vsel %vm927, %v929, %v925
    %v931 = vmul.f32 1.0, %v930
    %v932 = vsel %vm65, %v892, %v916
    %v933 = vsel %vm66, %v893, %v931
    %v934 = vmul.f32 %v932, %v838
    %936 = vrot.lane.b32.xlu0 %v933, 64
    %v937 = vpop.permute.xlu0 %936
    %v939 = vmul.f32 %v932, %v937
    %941 = vrot.lane.b32.xlu0 %v939, 64
    %v942 = vpop.permute.xlu0 %941
    %v944 = vadd.f32 %v934, %v942
    %v945 = vtanh.pop %v944
    %947 = vrot.lane.b32.xlu0 %v945, 64
    %v948 = vpop.permute.xlu0 %947
    %v950 = vmul.f32 %v933, %v948
    %v951 = vsel %vm63, %v165, %v144
    %v952 = vsel %vm64, %v206, %v185
    %v954 = vsel %vm210, %v950, 0
    %956 = vmatpush.msra.mxu0 0.0
    %957 = vmatpush.msra.mxu0 0.0
    %958 = vmatpush.msra.mxu0 0.0
    %959 = vmatpush.msra.mxu0 0.0
    %960 = vmatpush.msra.mxu0 0.0
    %961 = vmatpush.msra.mxu0 0.0
    %962 = vmatpush.msra.mxu0 0.0
    %963 = vmatpush.msra.mxu0 0.0
    %964 = vmatpush.msra.mxu0 %v93
    %965 = vmatpush.msra.mxu0 %v91
    %966 = vmatpush.msra.mxu0 %v89
    %967 = vmatpush.msra.mxu0 %v87
    %968 = vmatpush.msra.mxu0 %v85
    %969 = vmatpush.msra.mxu0 %v83
    %970 = vmatpush.msra.mxu0 %v81
    %971 = vmatpush.msra.mxu0 %v79
    %972 = vmatmul.f32.gmra.mxu0 %v954
    %v973 = vpop.f32.mrf.mxu0
    %v974 = vadd.f32 0.0, %v973
    %975 = vdwg.mxu0
    %976 = vmatpush.msra.mxu0 0.0
    %977 = vmatpush.msra.mxu0 0.0
    %978 = vmatpush.msra.mxu0 0.0
    %979 = vmatpush.msra.mxu0 0.0
    %980 = vmatpush.msra.mxu0 0.0
    %981 = vmatpush.msra.mxu0 0.0
    %982 = vmatpush.msra.mxu0 0.0
    %983 = vmatpush.msra.mxu0 0.0
    %984 = vmatpush.msra.mxu0 %v94
    %985 = vmatpush.msra.mxu0 %v92
    %986 = vmatpush.msra.mxu0 %v90
    %987 = vmatpush.msra.mxu0 %v88
    %988 = vmatpush.msra.mxu0 %v86
    %989 = vmatpush.msra.mxu0 %v84
    %990 = vmatpush.msra.mxu0 %v82
    %991 = vmatpush.msra.mxu0 %v80
    %992 = vmatmul.f32.gmra.mxu0 %v954
    %v993 = vpop.f32.mrf.mxu0
    %v994 = vadd.f32 0.0, %v993
    %995 = vdwg.mxu0
    %v996 = vadd.f32 %v951, %v974
    %v997 = vadd.f32 %v952, %v994
    %v998 = vtanh.pop %v996
    %v999 = vtanh.pop %v997
    %v1000 = vxor.u32 %v996, 2147483648
    %v1001 = vxor.u32 %v997, 2147483648
    %v1002 = vmul.f32 %v1000, 1.442695
    %v1003 = vpow.pop %v1002
    %v1004 = vmul.f32 %v1001, 1.442695
    %v1005 = vpow.pop %v1004
    %v1006 = vadd.f32 %v1003, 1.0
    %v1007 = vadd.f32 %v1005, 1.0
    %v1008 = vrcp.pop %v1006
    %v1009 = vmul.f32 %v1006, %v1008
    %v1010 = vsub.f32 1.0, %v1009
    %v1011 = vmul.f32 %v1008, %v1010
    %v1012 = vadd.f32 %v1008, %v1011
    %vm1013 = vweird.f32 %v1006
    %vm1014 = vweird.f32 %v1008
    %vm1015 = vmor %vm1013, %vm1014
    %v1016 = vsel %vm1015, %v1008, %v1012
    %v1017 = vand.u32 2147483647, %v1006
    %vm1018 = vcmp.eq.f32.partialorder %v1017, 8.507059e+37
    %v1019 = vand.u32 %v1006, 2147483648
    %v1020 = vor.u32 1.1754944e-38, %v1019
    %v1021 = vsel %vm1018, %v1020, %v1016
    %v1022 = vmul.f32 1.0, %v1021
    %v1023 = vrcp.pop %v1007
    %v1024 = vmul.f32 %v1007, %v1023
    %v1025 = vsub.f32 1.0, %v1024
    %v1026 = vmul.f32 %v1023, %v1025
    %v1027 = vadd.f32 %v1023, %v1026
    %vm1028 = vweird.f32 %v1007
    %vm1029 = vweird.f32 %v1023
    %vm1030 = vmor %vm1028, %vm1029
    %v1031 = vsel %vm1030, %v1023, %v1027
    %v1032 = vand.u32 2147483647, %v1007
    %vm1033 = vcmp.eq.f32.partialorder %v1032, 8.507059e+37
    %v1034 = vand.u32 %v1007, 2147483648
    %v1035 = vor.u32 1.1754944e-38, %v1034
    %v1036 = vsel %vm1033, %v1035, %v1031
    %v1037 = vmul.f32 1.0, %v1036
    %v1038 = vsel %vm65, %v998, %v1022
    %v1039 = vsel %vm66, %v999, %v1037
    %v1040 = vmul.f32 %v1038, %v944
    %1042 = vrot.lane.b32.xlu0 %v1039, 64
    %v1043 = vpop.permute.xlu0 %1042
    %v1045 = vmul.f32 %v1038, %v1043
    %1047 = vrot.lane.b32.xlu0 %v1045, 64
    %v1048 = vpop.permute.xlu0 %1047
    %v1050 = vadd.f32 %v1040, %v1048
    %v1051 = vtanh.pop %v1050
    %1053 = vrot.lane.b32.xlu0 %v1051, 64
    %v1054 = vpop.permute.xlu0 %1053
    %v1056 = vmul.f32 %v1039, %v1054
    %v1057 = vld [vmem:[#allocation2] sm:$0xff]
    %v1058 = vld [vmem:[#allocation2 + $0x8] sm:$0xff]
    %v1059 = vld [vmem:[#allocation2 + $0x10] sm:$0xff]
    %v1060 = vld [vmem:[#allocation2 + $0x18] sm:$0xff]
    %v1061 = vld [vmem:[#allocation2 + $0x20] sm:$0xff]
    %v1062 = vld [vmem:[#allocation2 + $0x28] sm:$0xff]
    %v1063 = vld [vmem:[#allocation2 + $0x30] sm:$0xff]
    %v1064 = vld [vmem:[#allocation2 + $0x38] sm:$0xff]
    %v1065 = vld [vmem:[#allocation2 + $0x40] sm:$0xff]
    %v1066 = vld [vmem:[#allocation2 + $0x48] sm:$0xff]
    %v1067 = vld [vmem:[#allocation2 + $0x50] sm:$0xff]
    %v1068 = vld [vmem:[#allocation2 + $0x58] sm:$0xff]
    %v1069 = vld [vmem:[#allocation2 + $0x60] sm:$0xff]
    %v1070 = vld [vmem:[#allocation2 + $0x68] sm:$0xff]
    %v1071 = vld [vmem:[#allocation2 + $0x70] sm:$0xff]
    %v1072 = vld [vmem:[#allocation2 + $0x78] sm:$0xff]
    %v1073 = vld [vmem:[#allocation2 + $0x80] sm:$0xff]
    %v1074 = vld [vmem:[#allocation2 + $0x88] sm:$0xff]
    %v1075 = vld [vmem:[#allocation2 + $0x90] sm:$0xff]
    %v1076 = vld [vmem:[#allocation2 + $0x98] sm:$0xff]
    %v1077 = vld [vmem:[%s4 + $0x1] ss:$0 sm:$0xff]
    %v1079 = vsel %vm210, %v1056, 0
    %1081 = vmatpush.msra.mxu0 0.0
    %1082 = vmatpush.msra.mxu0 0.0
    %1083 = vmatpush.msra.mxu0 0.0
    %1084 = vmatpush.msra.mxu0 0.0
    %1085 = vmatpush.msra.mxu0 0.0
    %1086 = vmatpush.msra.mxu0 0.0
    %1087 = vmatpush.msra.mxu0 0.0
    %1088 = vmatpush.msra.mxu0 0.0
    %1089 = vmatpush.msra.mxu0 %v1064
    %1090 = vmatpush.msra.mxu0 %v1063
    %1091 = vmatpush.msra.mxu0 %v1062
    %1092 = vmatpush.msra.mxu0 %v1061
    %1093 = vmatpush.msra.mxu0 %v1060
    %1094 = vmatpush.msra.mxu0 %v1059
    %1095 = vmatpush.msra.mxu0 %v1058
    %1096 = vmatpush.msra.mxu0 %v1057
    %1097 = vmatmul.f32.gmra.mxu0 %v318
    %v1098 = vpop.f32.mrf.mxu0
    %v1099 = vadd.f32 %v1077, %v1098
    %1100 = vmatmul.f32.gmra.mxu0 %v424
    %v1101 = vpop.f32.mrf.mxu0
    %v1102 = vadd.f32 %v1077, %v1101
    %1103 = vmatmul.f32.gmra.mxu0 %v530
    %v1104 = vpop.f32.mrf.mxu0
    %v1105 = vadd.f32 %v1077, %v1104
    %1106 = vmatmul.f32.gmra.mxu0 %v636
    %v1107 = vpop.f32.mrf.mxu0
    %v1108 = vadd.f32 %v1077, %v1107
    %1109 = vmatmul.f32.gmra.mxu0 %v742
    %v1110 = vpop.f32.mrf.mxu0
    %v1111 = vadd.f32 %v1077, %v1110
    %1112 = vmatmul.f32.gmra.mxu0 %v848
    %v1113 = vpop.f32.mrf.mxu0
    %v1114 = vadd.f32 %v1077, %v1113
    %1115 = vmatmul.f32.gmra.mxu0 %v954
    %v1116 = vpop.f32.mrf.mxu0
    %v1117 = vadd.f32 %v1077, %v1116
    %1118 = vmatmul.f32.gmra.mxu0 %v1079
    %v1119 = vpop.f32.mrf.mxu0
    %v1120 = vadd.f32 %v1077, %v1119
    %1121 = vdwg.mxu0
    %1122 = vmatpush.msra.mxu0 0.0
    %1123 = vmatpush.msra.mxu0 0.0
    %1124 = vmatpush.msra.mxu0 0.0
    %1125 = vmatpush.msra.mxu0 0.0
    %1126 = vmatpush.msra.mxu0 0.0
    %1127 = vmatpush.msra.mxu0 0.0
    %1128 = vmatpush.msra.mxu0 0.0
    %1129 = vmatpush.msra.mxu0 0.0
    %1130 = vmatpush.msra.mxu0 %v1072
    %1131 = vmatpush.msra.mxu0 %v1071
    %1132 = vmatpush.msra.mxu0 %v1070
    %1133 = vmatpush.msra.mxu0 %v1069
    %1134 = vmatpush.msra.mxu0 %v1068
    %1135 = vmatpush.msra.mxu0 %v1067
    %1136 = vmatpush.msra.mxu0 %v1066
    %1137 = vmatpush.msra.mxu0 %v1065
    %1138 = vmatmul.f32.gmra.mxu0 %v318
    %v1139 = vpop.f32.mrf.mxu0
    %v1140 = vadd.f32 0.0, %v1139
    %1141 = vmatmul.f32.gmra.mxu0 %v424
    %v1142 = vpop.f32.mrf.mxu0
    %v1143 = vadd.f32 0.0, %v1142
    %1144 = vmatmul.f32.gmra.mxu0 %v530
    %v1145 = vpop.f32.mrf.mxu0
    %v1146 = vadd.f32 0.0, %v1145
    %1147 = vmatmul.f32.gmra.mxu0 %v636
    %v1148 = vpop.f32.mrf.mxu0
    %v1149 = vadd.f32 0.0, %v1148
    %1150 = vmatmul.f32.gmra.mxu0 %v742
    %v1151 = vpop.f32.mrf.mxu0
    %v1152 = vadd.f32 0.0, %v1151
    %1153 = vmatmul.f32.gmra.mxu0 %v848
    %v1154 = vpop.f32.mrf.mxu0
    %v1155 = vadd.f32 0.0, %v1154
    %1156 = vmatmul.f32.gmra.mxu0 %v954
    %v1157 = vpop.f32.mrf.mxu0
    %v1158 = vadd.f32 0.0, %v1157
    %1159 = vmatmul.f32.gmra.mxu0 %v1079
    %v1160 = vpop.f32.mrf.mxu0
    %v1161 = vadd.f32 0.0, %v1160
    %1162 = vdwg.mxu0
    %v1163 = vadd.f32 %v1099, %v1161
    %vm1164 = vcmask 261120
    %v1165 = vsel %vm1164, 0.0, 0
    %1167 = vmatpush.msra.mxu0 0.0
    %1168 = vmatpush.msra.mxu0 0.0
    %1169 = vmatpush.msra.mxu0 0.0
    %1170 = vmatpush.msra.mxu0 0.0
    %1171 = vmatpush.msra.mxu0 0.0
    %1172 = vmatpush.msra.mxu0 0.0
    %1173 = vmatpush.msra.mxu0 0.0
    %1174 = vmatpush.msra.mxu0 0.0
    %1175 = vmatpush.msra.mxu0 0.0
    %1176 = vmatpush.msra.mxu0 0.0
    %1177 = vmatpush.msra.mxu0 0.0
    %1178 = vmatpush.msra.mxu0 0.0
    %1179 = vmatpush.msra.mxu0 %v1076
    %1180 = vmatpush.msra.mxu0 %v1075
    %1181 = vmatpush.msra.mxu0 %v1074
    %1182 = vmatpush.msra.mxu0 %v1073
    %1183 = vmatmul.f32.gmra.mxu0 %v1165
    %v1184 = vpop.f32.mrf.mxu0
    %v1185 = vadd.f32 0.0, %v1184
    %1186 = vdwg.mxu0
    %v1187 = vadd.f32 %v1163, %v1185
    %v1188 = vtanh.pop %v1187
    %v1189 = vxor.u32 %v1187, 2147483648
    %v1190 = vmul.f32 %v1189, 1.442695
    %v1191 = vpow.pop %v1190
    %v1192 = vadd.f32 %v1191, 1.0
    %v1193 = vrcp.pop %v1192
    %v1194 = vmul.f32 %v1192, %v1193
    %v1195 = vsub.f32 1.0, %v1194
    %v1196 = vmul.f32 %v1193, %v1195
    %v1197 = vadd.f32 %v1193, %v1196
    %vm1198 = vweird.f32 %v1192
    %vm1199 = vweird.f32 %v1193
    %vm1200 = vmor %vm1198, %vm1199
    %v1201 = vsel %vm1200, %v1193, %v1197
    %v1202 = vand.u32 2147483647, %v1192
    %vm1203 = vcmp.eq.f32.partialorder %v1202, 8.507059e+37
    %v1204 = vand.u32 %v1192, 2147483648
    %v1205 = vor.u32 1.1754944e-38, %v1204
    %v1206 = vsel %vm1203, %v1205, %v1201
    %v1207 = vmul.f32 1.0, %v1206
    %v1208 = vsel %vm67, %v1188, %v1207
    %v1209 = vmul.f32 %v1208, 0.0
    %1211 = vrot.lane.b32.xlu0 %v1208, 32
    %v1212 = vpop.permute.xlu0 %1211
    %v1214 = vmul.f32 %v1208, %v1212
    %1216 = vrot.lane.b32.xlu0 %v1214, 32
    %v1217 = vpop.permute.xlu0 %1216
    %v1219 = vadd.f32 %v1209, %v1217
    %v1220 = vtanh.pop %v1219
    %1222 = vrot.lane.b32.xlu0 %v1220, 32
    %v1223 = vpop.permute.xlu0 %1222
    %v1225 = vmul.f32 %v1208, %v1223
    %v1226 = vadd.f32 %v1102, %v1158
    %1228 = vrot.lane.b32.xlu0 %v1225, 64
    %v1229 = vpop.permute.xlu0 %1228
    %v1230 = vsel %vm1164, %v1229, 0
    %1232 = vmatpush.msra.mxu0 0.0
    %1233 = vmatpush.msra.mxu0 0.0
    %1234 = vmatpush.msra.mxu0 0.0
    %1235 = vmatpush.msra.mxu0 0.0
    %1236 = vmatpush.msra.mxu0 0.0
    %1237 = vmatpush.msra.mxu0 0.0
    %1238 = vmatpush.msra.mxu0 0.0
    %1239 = vmatpush.msra.mxu0 0.0
    %1240 = vmatpush.msra.mxu0 0.0
    %1241 = vmatpush.msra.mxu0 0.0
    %1242 = vmatpush.msra.mxu0 0.0
    %1243 = vmatpush.msra.mxu0 0.0
    %1244 = vmatpush.msra.mxu0 %v1076
    %1245 = vmatpush.msra.mxu0 %v1075
    %1246 = vmatpush.msra.mxu0 %v1074
    %1247 = vmatpush.msra.mxu0 %v1073
    %1248 = vmatmul.f32.gmra.mxu0 %v1230
    %v1249 = vpop.f32.mrf.mxu0
    %v1250 = vadd.f32 0.0, %v1249
    %1251 = vdwg.mxu0
    %v1252 = vadd.f32 %v1226, %v1250
    %v1253 = vtanh.pop %v1252
    %v1254 = vxor.u32 %v1252, 2147483648
    %v1255 = vmul.f32 %v1254, 1.442695
    %v1256 = vpow.pop %v1255
    %v1257 = vadd.f32 %v1256, 1.0
    %v1258 = vrcp.pop %v1257
    %v1259 = vmul.f32 %v1257, %v1258
    %v1260 = vsub.f32 1.0, %v1259
    %v1261 = vmul.f32 %v1258, %v1260
    %v1262 = vadd.f32 %v1258, %v1261
    %vm1263 = vweird.f32 %v1257
    %vm1264 = vweird.f32 %v1258
    %vm1265 = vmor %vm1263, %vm1264
    %v1266 = vsel %vm1265, %v1258, %v1262
    %v1267 = vand.u32 2147483647, %v1257
    %vm1268 = vcmp.eq.f32.partialorder %v1267, 8.507059e+37
    %v1269 = vand.u32 %v1257, 2147483648
    %v1270 = vor.u32 1.1754944e-38, %v1269
    %v1271 = vsel %vm1268, %v1270, %v1266
    %v1272 = vmul.f32 1.0, %v1271
    %v1273 = vsel %vm67, %v1253, %v1272
    %v1274 = vmul.f32 %v1273, %v1219
    %1276 = vrot.lane.b32.xlu0 %v1273, 32
    %v1277 = vpop.permute.xlu0 %1276
    %v1279 = vmul.f32 %v1273, %v1277
    %1281 = vrot.lane.b32.xlu0 %v1279, 32
    %v1282 = vpop.permute.xlu0 %1281
    %v1284 = vadd.f32 %v1274, %v1282
    %v1285 = vtanh.pop %v1284
    %1287 = vrot.lane.b32.xlu0 %v1285, 32
    %v1288 = vpop.permute.xlu0 %1287
    %v1290 = vmul.f32 %v1273, %v1288
    %v1291 = vadd.f32 %v1105, %v1155
    %1293 = vrot.lane.b32.xlu0 %v1290, 64
    %v1294 = vpop.permute.xlu0 %1293
    %v1295 = vsel %vm1164, %v1294, 0
    %1297 = vmatpush.msra.mxu0 0.0
    %1298 = vmatpush.msra.mxu0 0.0
    %1299 = vmatpush.msra.mxu0 0.0
    %1300 = vmatpush.msra.mxu0 0.0
    %1301 = vmatpush.msra.mxu0 0.0
    %1302 = vmatpush.msra.mxu0 0.0
    %1303 = vmatpush.msra.mxu0 0.0
    %1304 = vmatpush.msra.mxu0 0.0
    %1305 = vmatpush.msra.mxu0 0.0
    %1306 = vmatpush.msra.mxu0 0.0
    %1307 = vmatpush.msra.mxu0 0.0
    %1308 = vmatpush.msra.mxu0 0.0
    %1309 = vmatpush.msra.mxu0 %v1076
    %1310 = vmatpush.msra.mxu0 %v1075
    %1311 = vmatpush.msra.mxu0 %v1074
    %1312 = vmatpush.msra.mxu0 %v1073
    %1313 = vmatmul.f32.gmra.mxu0 %v1295
    %v1314 = vpop.f32.mrf.mxu0
    %v1315 = vadd.f32 0.0, %v1314
    %1316 = vdwg.mxu0
    %v1317 = vadd.f32 %v1291, %v1315
    %v1318 = vtanh.pop %v1317
    %v1319 = vxor.u32 %v1317, 2147483648
    %v1320 = vmul.f32 %v1319, 1.442695
    %v1321 = vpow.pop %v1320
    %v1322 = vadd.f32 %v1321, 1.0
    %v1323 = vrcp.pop %v1322
    %v1324 = vmul.f32 %v1322, %v1323
    %v1325 = vsub.f32 1.0, %v1324
    %v1326 = vmul.f32 %v1323, %v1325
    %v1327 = vadd.f32 %v1323, %v1326
    %vm1328 = vweird.f32 %v1322
    %vm1329 = vweird.f32 %v1323
    %vm1330 = vmor %vm1328, %vm1329
    %v1331 = vsel %vm1330, %v1323, %v1327
    %v1332 = vand.u32 2147483647, %v1322
    %vm1333 = vcmp.eq.f32.partialorder %v1332, 8.507059e+37
    %v1334 = vand.u32 %v1322, 2147483648
    %v1335 = vor.u32 1.1754944e-38, %v1334
    %v1336 = vsel %vm1333, %v1335, %v1331
    %v1337 = vmul.f32 1.0, %v1336
    %v1338 = vsel %vm67, %v1318, %v1337
    %v1339 = vmul.f32 %v1338, %v1284
    %1341 = vrot.lane.b32.xlu0 %v1338, 32
    %v1342 = vpop.permute.xlu0 %1341
    %v1344 = vmul.f32 %v1338, %v1342
    %1346 = vrot.lane.b32.xlu0 %v1344, 32
    %v1347 = vpop.permute.xlu0 %1346
    %v1349 = vadd.f32 %v1339, %v1347
    %v1350 = vtanh.pop %v1349
    %1352 = vrot.lane.b32.xlu0 %v1350, 32
    %v1353 = vpop.permute.xlu0 %1352
    %v1355 = vmul.f32 %v1338, %v1353
    %v1356 = vadd.f32 %v1108, %v1152
    %1358 = vrot.lane.b32.xlu0 %v1355, 64
    %v1359 = vpop.permute.xlu0 %1358
    %v1360 = vsel %vm1164, %v1359, 0
    %1362 = vmatpush.msra.mxu0 0.0
    %1363 = vmatpush.msra.mxu0 0.0
    %1364 = vmatpush.msra.mxu0 0.0
    %1365 = vmatpush.msra.mxu0 0.0
    %1366 = vmatpush.msra.mxu0 0.0
    %1367 = vmatpush.msra.mxu0 0.0
    %1368 = vmatpush.msra.mxu0 0.0
    %1369 = vmatpush.msra.mxu0 0.0
    %1370 = vmatpush.msra.mxu0 0.0
    %1371 = vmatpush.msra.mxu0 0.0
    %1372 = vmatpush.msra.mxu0 0.0
    %1373 = vmatpush.msra.mxu0 0.0
    %1374 = vmatpush.msra.mxu0 %v1076
    %1375 = vmatpush.msra.mxu0 %v1075
    %1376 = vmatpush.msra.mxu0 %v1074
    %1377 = vmatpush.msra.mxu0 %v1073
    %1378 = vmatmul.f32.gmra.mxu0 %v1360
    %v1379 = vpop.f32.mrf.mxu0
    %v1380 = vadd.f32 0.0, %v1379
    %1381 = vdwg.mxu0
    %v1382 = vadd.f32 %v1356, %v1380
    %v1383 = vtanh.pop %v1382
    %v1384 = vxor.u32 %v1382, 2147483648
    %v1385 = vmul.f32 %v1384, 1.442695
    %v1386 = vpow.pop %v1385
    %v1387 = vadd.f32 %v1386, 1.0
    %v1388 = vrcp.pop %v1387
    %v1389 = vmul.f32 %v1387, %v1388
    %v1390 = vsub.f32 1.0, %v1389
    %v1391 = vmul.f32 %v1388, %v1390
    %v1392 = vadd.f32 %v1388, %v1391
    %vm1393 = vweird.f32 %v1387
    %vm1394 = vweird.f32 %v1388
    %vm1395 = vmor %vm1393, %vm1394
    %v1396 = vsel %vm1395, %v1388, %v1392
    %v1397 = vand.u32 2147483647, %v1387
    %vm1398 = vcmp.eq.f32.partialorder %v1397, 8.507059e+37
    %v1399 = vand.u32 %v1387, 2147483648
    %v1400 = vor.u32 1.1754944e-38, %v1399
    %v1401 = vsel %vm1398, %v1400, %v1396
    %v1402 = vmul.f32 1.0, %v1401
    %v1403 = vsel %vm67, %v1383, %v1402
    %v1404 = vmul.f32 %v1403, %v1349
    %1406 = vrot.lane.b32.xlu0 %v1403, 32
    %v1407 = vpop.permute.xlu0 %1406
    %v1409 = vmul.f32 %v1403, %v1407
    %1411 = vrot.lane.b32.xlu0 %v1409, 32
    %v1412 = vpop.permute.xlu0 %1411
    %v1414 = vadd.f32 %v1404, %v1412
    %v1415 = vtanh.pop %v1414
    %1417 = vrot.lane.b32.xlu0 %v1415, 32
    %v1418 = vpop.permute.xlu0 %1417
    %v1420 = vmul.f32 %v1403, %v1418
    %v1421 = vadd.f32 %v1111, %v1149
    %1423 = vrot.lane.b32.xlu0 %v1420, 64
    %v1424 = vpop.permute.xlu0 %1423
    %v1425 = vsel %vm1164, %v1424, 0
    %1427 = vmatpush.msra.mxu0 0.0
    %1428 = vmatpush.msra.mxu0 0.0
    %1429 = vmatpush.msra.mxu0 0.0
    %1430 = vmatpush.msra.mxu0 0.0
    %1431 = vmatpush.msra.mxu0 0.0
    %1432 = vmatpush.msra.mxu0 0.0
    %1433 = vmatpush.msra.mxu0 0.0
    %1434 = vmatpush.msra.mxu0 0.0
    %1435 = vmatpush.msra.mxu0 0.0
    %1436 = vmatpush.msra.mxu0 0.0
    %1437 = vmatpush.msra.mxu0 0.0
    %1438 = vmatpush.msra.mxu0 0.0
    %1439 = vmatpush.msra.mxu0 %v1076
    %1440 = vmatpush.msra.mxu0 %v1075
    %1441 = vmatpush.msra.mxu0 %v1074
    %1442 = vmatpush.msra.mxu0 %v1073
    %1443 = vmatmul.f32.gmra.mxu0 %v1425
    %v1444 = vpop.f32.mrf.mxu0
    %v1445 = vadd.f32 0.0, %v1444
    %1446 = vdwg.mxu0
    %v1447 = vadd.f32 %v1421, %v1445
    %v1448 = vtanh.pop %v1447
    %v1449 = vxor.u32 %v1447, 2147483648
    %v1450 = vmul.f32 %v1449, 1.442695
    %v1451 = vpow.pop %v1450
    %v1452 = vadd.f32 %v1451, 1.0
    %v1453 = vrcp.pop %v1452
    %v1454 = vmul.f32 %v1452, %v1453
    %v1455 = vsub.f32 1.0, %v1454
    %v1456 = vmul.f32 %v1453, %v1455
    %v1457 = vadd.f32 %v1453, %v1456
    %vm1458 = vweird.f32 %v1452
    %vm1459 = vweird.f32 %v1453
    %vm1460 = vmor %vm1458, %vm1459
    %v1461 = vsel %vm1460, %v1453, %v1457
    %v1462 = vand.u32 2147483647, %v1452
    %vm1463 = vcmp.eq.f32.partialorder %v1462, 8.507059e+37
    %v1464 = vand.u32 %v1452, 2147483648
    %v1465 = vor.u32 1.1754944e-38, %v1464
    %v1466 = vsel %vm1463, %v1465, %v1461
    %v1467 = vmul.f32 1.0, %v1466
    %v1468 = vsel %vm67, %v1448, %v1467
    %v1469 = vmul.f32 %v1468, %v1414
    %1471 = vrot.lane.b32.xlu0 %v1468, 32
    %v1472 = vpop.permute.xlu0 %1471
    %v1474 = vmul.f32 %v1468, %v1472
    %1476 = vrot.lane.b32.xlu0 %v1474, 32
    %v1477 = vpop.permute.xlu0 %1476
    %v1479 = vadd.f32 %v1469, %v1477
    %v1480 = vtanh.pop %v1479
    %1482 = vrot.lane.b32.xlu0 %v1480, 32
    %v1483 = vpop.permute.xlu0 %1482
    %v1485 = vmul.f32 %v1468, %v1483
    %v1486 = vadd.f32 %v1114, %v1146
    %1488 = vrot.lane.b32.xlu0 %v1485, 64
    %v1489 = vpop.permute.xlu0 %1488
    %v1490 = vsel %vm1164, %v1489, 0
    %1492 = vmatpush.msra.mxu0 0.0
    %1493 = vmatpush.msra.mxu0 0.0
    %1494 = vmatpush.msra.mxu0 0.0
    %1495 = vmatpush.msra.mxu0 0.0
    %1496 = vmatpush.msra.mxu0 0.0
    %1497 = vmatpush.msra.mxu0 0.0
    %1498 = vmatpush.msra.mxu0 0.0
    %1499 = vmatpush.msra.mxu0 0.0
    %1500 = vmatpush.msra.mxu0 0.0
    %1501 = vmatpush.msra.mxu0 0.0
    %1502 = vmatpush.msra.mxu0 0.0
    %1503 = vmatpush.msra.mxu0 0.0
    %1504 = vmatpush.msra.mxu0 %v1076
    %1505 = vmatpush.msra.mxu0 %v1075
    %1506 = vmatpush.msra.mxu0 %v1074
    %1507 = vmatpush.msra.mxu0 %v1073
    %1508 = vmatmul.f32.gmra.mxu0 %v1490
    %v1509 = vpop.f32.mrf.mxu0
    %v1510 = vadd.f32 0.0, %v1509
    %1511 = vdwg.mxu0
    %v1512 = vadd.f32 %v1486, %v1510
    %v1513 = vtanh.pop %v1512
    %v1514 = vxor.u32 %v1512, 2147483648
    %v1515 = vmul.f32 %v1514, 1.442695
    %v1516 = vpow.pop %v1515
    %v1517 = vadd.f32 %v1516, 1.0
    %v1518 = vrcp.pop %v1517
    %v1519 = vmul.f32 %v1517, %v1518
    %v1520 = vsub.f32 1.0, %v1519
    %v1521 = vmul.f32 %v1518, %v1520
    %v1522 = vadd.f32 %v1518, %v1521
    %vm1523 = vweird.f32 %v1517
    %vm1524 = vweird.f32 %v1518
    %vm1525 = vmor %vm1523, %vm1524
    %v1526 = vsel %vm1525, %v1518, %v1522
    %v1527 = vand.u32 2147483647, %v1517
    %vm1528 = vcmp.eq.f32.partialorder %v1527, 8.507059e+37
    %v1529 = vand.u32 %v1517, 2147483648
    %v1530 = vor.u32 1.1754944e-38, %v1529
    %v1531 = vsel %vm1528, %v1530, %v1526
    %v1532 = vmul.f32 1.0, %v1531
    %v1533 = vsel %vm67, %v1513, %v1532
    %v1534 = vmul.f32 %v1533, %v1479
    %1536 = vrot.lane.b32.xlu0 %v1533, 32
    %v1537 = vpop.permute.xlu0 %1536
    %v1539 = vmul.f32 %v1533, %v1537
    %1541 = vrot.lane.b32.xlu0 %v1539, 32
    %v1542 = vpop.permute.xlu0 %1541
    %v1544 = vadd.f32 %v1534, %v1542
    %v1545 = vtanh.pop %v1544
    %1547 = vrot.lane.b32.xlu0 %v1545, 32
    %v1548 = vpop.permute.xlu0 %1547
    %v1550 = vmul.f32 %v1533, %v1548
    %v1551 = vadd.f32 %v1117, %v1143
    %1553 = vrot.lane.b32.xlu0 %v1550, 64
    %v1554 = vpop.permute.xlu0 %1553
    %v1555 = vsel %vm1164, %v1554, 0
    %1557 = vmatpush.msra.mxu0 0.0
    %1558 = vmatpush.msra.mxu0 0.0
    %1559 = vmatpush.msra.mxu0 0.0
    %1560 = vmatpush.msra.mxu0 0.0
    %1561 = vmatpush.msra.mxu0 0.0
    %1562 = vmatpush.msra.mxu0 0.0
    %1563 = vmatpush.msra.mxu0 0.0
    %1564 = vmatpush.msra.mxu0 0.0
    %1565 = vmatpush.msra.mxu0 0.0
    %1566 = vmatpush.msra.mxu0 0.0
    %1567 = vmatpush.msra.mxu0 0.0
    %1568 = vmatpush.msra.mxu0 0.0
    %1569 = vmatpush.msra.mxu0 %v1076
    %1570 = vmatpush.msra.mxu0 %v1075
    %1571 = vmatpush.msra.mxu0 %v1074
    %1572 = vmatpush.msra.mxu0 %v1073
    %1573 = vmatmul.f32.gmra.mxu0 %v1555
    %v1574 = vpop.f32.mrf.mxu0
    %v1575 = vadd.f32 0.0, %v1574
    %1576 = vdwg.mxu0
    %v1577 = vadd.f32 %v1551, %v1575
    %v1578 = vtanh.pop %v1577
    %v1579 = vxor.u32 %v1577, 2147483648
    %v1580 = vmul.f32 %v1579, 1.442695
    %v1581 = vpow.pop %v1580
    %v1582 = vadd.f32 %v1581, 1.0
    %v1583 = vrcp.pop %v1582
    %v1584 = vmul.f32 %v1582, %v1583
    %v1585 = vsub.f32 1.0, %v1584
    %v1586 = vmul.f32 %v1583, %v1585
    %v1587 = vadd.f32 %v1583, %v1586
    %vm1588 = vweird.f32 %v1582
    %vm1589 = vweird.f32 %v1583
    %vm1590 = vmor %vm1588, %vm1589
    %v1591 = vsel %vm1590, %v1583, %v1587
    %v1592 = vand.u32 2147483647, %v1582
    %vm1593 = vcmp.eq.f32.partialorder %v1592, 8.507059e+37
    %v1594 = vand.u32 %v1582, 2147483648
    %v1595 = vor.u32 1.1754944e-38, %v1594
    %v1596 = vsel %vm1593, %v1595, %v1591
    %v1597 = vmul.f32 1.0, %v1596
    %v1598 = vsel %vm67, %v1578, %v1597
    %v1599 = vmul.f32 %v1598, %v1544
    %1601 = vrot.lane.b32.xlu0 %v1598, 32
    %v1602 = vpop.permute.xlu0 %1601
    %v1604 = vmul.f32 %v1598, %v1602
    %1606 = vrot.lane.b32.xlu0 %v1604, 32
    %v1607 = vpop.permute.xlu0 %1606
    %v1609 = vadd.f32 %v1599, %v1607
    %v1610 = vtanh.pop %v1609
    %1612 = vrot.lane.b32.xlu0 %v1610, 32
    %v1613 = vpop.permute.xlu0 %1612
    %v1615 = vmul.f32 %v1598, %v1613
    %v1616 = vadd.f32 %v1120, %v1140
    %1618 = vrot.lane.b32.xlu0 %v1615, 64
    %v1619 = vpop.permute.xlu0 %1618
    %v1620 = vsel %vm1164, %v1619, 0
    %1622 = vmatpush.msra.mxu0 0.0
    %1623 = vmatpush.msra.mxu0 0.0
    %1624 = vmatpush.msra.mxu0 0.0
    %1625 = vmatpush.msra.mxu0 0.0
    %1626 = vmatpush.msra.mxu0 0.0
    %1627 = vmatpush.msra.mxu0 0.0
    %1628 = vmatpush.msra.mxu0 0.0
    %1629 = vmatpush.msra.mxu0 0.0
    %1630 = vmatpush.msra.mxu0 0.0
    %1631 = vmatpush.msra.mxu0 0.0
    %1632 = vmatpush.msra.mxu0 0.0
    %1633 = vmatpush.msra.mxu0 0.0
    %1634 = vmatpush.msra.mxu0 %v1076
    %1635 = vmatpush.msra.mxu0 %v1075
    %1636 = vmatpush.msra.mxu0 %v1074
    %1637 = vmatpush.msra.mxu0 %v1073
    %1638 = vmatmul.f32.gmra.mxu0 %v1620
    %v1639 = vpop.f32.mrf.mxu0
    %v1640 = vadd.f32 0.0, %v1639
    %1641 = vdwg.mxu0
    %v1642 = vadd.f32 %v1616, %v1640
    %v1643 = vtanh.pop %v1642
    %v1644 = vxor.u32 %v1642, 2147483648
    %v1645 = vmul.f32 %v1644, 1.442695
    %v1646 = vpow.pop %v1645
    %v1647 = vadd.f32 %v1646, 1.0
    %v1648 = vrcp.pop %v1647
    %v1649 = vmul.f32 %v1647, %v1648
    %v1650 = vsub.f32 1.0, %v1649
    %v1651 = vmul.f32 %v1648, %v1650
    %v1652 = vadd.f32 %v1648, %v1651
    %vm1653 = vweird.f32 %v1647
    %vm1654 = vweird.f32 %v1648
    %vm1655 = vmor %vm1653, %vm1654
    %v1656 = vsel %vm1655, %v1648, %v1652
    %v1657 = vand.u32 2147483647, %v1647
    %vm1658 = vcmp.eq.f32.partialorder %v1657, 8.507059e+37
    %v1659 = vand.u32 %v1647, 2147483648
    %v1660 = vor.u32 1.1754944e-38, %v1659
    %v1661 = vsel %vm1658, %v1660, %v1656
    %v1662 = vmul.f32 1.0, %v1661
    %v1663 = vsel %vm67, %v1643, %v1662
    %v1664 = vmul.f32 %v1663, %v1609
    %1666 = vrot.lane.b32.xlu0 %v1663, 32
    %v1667 = vpop.permute.xlu0 %1666
    %v1669 = vmul.f32 %v1663, %v1667
    %1671 = vrot.lane.b32.xlu0 %v1669, 32
    %v1672 = vpop.permute.xlu0 %1671
    %v1674 = vadd.f32 %v1664, %v1672
    %v1675 = vtanh.pop %v1674
    %1677 = vrot.lane.b32.xlu0 %v1675, 32
    %v1678 = vpop.permute.xlu0 %1677
    %v1680 = vmul.f32 %v1663, %v1678
    %v1681 = vld [vmem:[#allocation2 + $0xa0] sm:$0xff]
    %v1682 = vld [vmem:[#allocation2 + $0xa8] sm:$0xff]
    %v1683 = vld [vmem:[#allocation2 + $0xb0] sm:$0xff]
    %v1684 = vld [vmem:[#allocation2 + $0xb8] sm:$0xff]
    %v1685 = vld [vmem:[#allocation2 + $0xc0] sm:$0xff]
    %v1686 = vld [vmem:[#allocation2 + $0xc8] sm:$0xff]
    %v1687 = vld [vmem:[#allocation2 + $0xd0] sm:$0xff]
    %v1688 = vld [vmem:[#allocation2 + $0xd8] sm:$0xff]
    %v1689 = vld [vmem:[#allocation2 + $0xe0] sm:$0xff]
    %v1690 = vld [vmem:[#allocation2 + $0xe8] sm:$0xff]
    %v1691 = vld [vmem:[#allocation2 + $0xf0] sm:$0xff]
    %v1692 = vld [vmem:[#allocation2 + $0xf8] sm:$0xff]
    %v1693 = vld [vmem:[#allocation2 + $0x100] sm:$0xff]
    %v1694 = vld [vmem:[#allocation2 + $0x108] sm:$0xff]
    %v1695 = vld [vmem:[#allocation2 + $0x110] sm:$0xff]
    %v1696 = vld [vmem:[#allocation2 + $0x118] sm:$0xff]
    %1697 = vmatpush.msra.mxu0 0.0
    %1698 = vmatpush.msra.mxu0 0.0
    %1699 = vmatpush.msra.mxu0 0.0
    %1700 = vmatpush.msra.mxu0 0.0
    %1701 = vmatpush.msra.mxu0 0.0
    %1702 = vmatpush.msra.mxu0 0.0
    %1703 = vmatpush.msra.mxu0 0.0
    %1704 = vmatpush.msra.mxu0 0.0
    %1705 = vmatpush.msra.mxu0 %v1696
    %1706 = vmatpush.msra.mxu0 %v1695
    %1707 = vmatpush.msra.mxu0 %v1694
    %1708 = vmatpush.msra.mxu0 %v1693
    %1709 = vmatpush.msra.mxu0 %v1692
    %1710 = vmatpush.msra.mxu0 %v1691
    %1711 = vmatpush.msra.mxu0 %v1690
    %1712 = vmatpush.msra.mxu0 %v1689
    %1713 = vmatmul.f32.gmra.mxu0 %v318
    %v1714 = vpop.f32.mrf.mxu0
    %v1715 = vadd.f32 0.0, %v1714
    %1716 = vdwg.mxu0
    %1717 = vmatpush.msra.mxu0 0.0
    %1718 = vmatpush.msra.mxu0 0.0
    %1719 = vmatpush.msra.mxu0 0.0
    %1720 = vmatpush.msra.mxu0 0.0
    %1721 = vmatpush.msra.mxu0 0.0
    %1722 = vmatpush.msra.mxu0 0.0
    %1723 = vmatpush.msra.mxu0 0.0
    %1724 = vmatpush.msra.mxu0 0.0
    %1725 = vmatpush.msra.mxu0 %v1688
    %1726 = vmatpush.msra.mxu0 %v1687
    %1727 = vmatpush.msra.mxu0 %v1686
    %1728 = vmatpush.msra.mxu0 %v1685
    %1729 = vmatpush.msra.mxu0 %v1684
    %1730 = vmatpush.msra.mxu0 %v1683
    %1731 = vmatpush.msra.mxu0 %v1682
    %1732 = vmatpush.msra.mxu0 %v1681
    %1733 = vmatmul.f32.gmra.mxu0 %v1079
    %v1734 = vpop.f32.mrf.mxu0
    %v1735 = vadd.f32 %v1715, %v1734
    %1736 = vdwg.mxu0
    %v1737 = vld [vmem:[%s4 + $0x2] ss:$0 sm:$0xff]
    %v1738 = vadd.f32 %v1735, %v1737
    %v1739 = vtanh.pop %v1738
    %v1740 = vxor.u32 %v1738, 2147483648
    %v1741 = vmul.f32 %v1740, 1.442695
    %v1742 = vpow.pop %v1741
    %v1743 = vadd.f32 %v1742, 1.0
    %v1744 = vrcp.pop %v1743
    %v1745 = vmul.f32 %v1743, %v1744
    %v1746 = vsub.f32 1.0, %v1745
    %v1747 = vmul.f32 %v1744, %v1746
    %v1748 = vadd.f32 %v1744, %v1747
    %vm1749 = vweird.f32 %v1743
    %vm1750 = vweird.f32 %v1744
    %vm1751 = vmor %vm1749, %vm1750
    %v1752 = vsel %vm1751, %v1744, %v1748
    %v1753 = vand.u32 2147483647, %v1743
    %vm1754 = vcmp.eq.f32.partialorder %v1753, 8.507059e+37
    %v1755 = vand.u32 %v1743, 2147483648
    %v1756 = vor.u32 1.1754944e-38, %v1755
    %v1757 = vsel %vm1754, %v1756, %v1752
    %v1758 = vmul.f32 1.0, %v1757
    %v1759 = vsel %vm67, %v1739, %v1758
    %1761 = vrot.lane.b32.xlu0 %v1759, 32
    %v1762 = vpop.permute.xlu0 %1761
    %v1764 = vmul.f32 %v1759, %v1762
    %v1765 = vtanh.pop %v1764
    %1767 = vrot.lane.b32.xlu0 %v1765, 64
    %v1768 = vpop.permute.xlu0 %1767
    %v1770 = vmul.f32 %v1759, %v1768
    %v1771 = vld [vmem:[#allocation2 + $0x120] sm:$0xff]
    %v1772 = vld [vmem:[#allocation2 + $0x128] sm:$0xff]
    %v1773 = vld [vmem:[#allocation2 + $0x130] sm:$0xff]
    %v1774 = vld [vmem:[#allocation2 + $0x138] sm:$0xff]
    %v1775 = vld [vmem:[#allocation2 + $0x140] sm:$0xff]
    %v1776 = vld [vmem:[#allocation2 + $0x148] sm:$0xff]
    %v1777 = vld [vmem:[#allocation2 + $0x150] sm:$0xff]
    %v1778 = vld [vmem:[#allocation2 + $0x158] sm:$0xff]
    %1780 = vrot.lane.b32.xlu0 %v1770, 64
    %v1781 = vpop.permute.xlu0 %1780
    %v1782 = vsel %vm1164, %v1781, 0
    %1784 = vmatpush.msra.mxu0 0.0
    %1785 = vmatpush.msra.mxu0 0.0
    %1786 = vmatpush.msra.mxu0 0.0
    %1787 = vmatpush.msra.mxu0 0.0
    %1788 = vmatpush.msra.mxu0 0.0
    %1789 = vmatpush.msra.mxu0 0.0
    %1790 = vmatpush.msra.mxu0 0.0
    %1791 = vmatpush.msra.mxu0 0.0
    %1792 = vmatpush.msra.mxu0 0.0
    %1793 = vmatpush.msra.mxu0 0.0
    %1794 = vmatpush.msra.mxu0 0.0
    %1795 = vmatpush.msra.mxu0 0.0
    %1796 = vmatpush.msra.mxu0 %v1778
    %1797 = vmatpush.msra.mxu0 %v1777
    %1798 = vmatpush.msra.mxu0 %v1776
    %1799 = vmatpush.msra.mxu0 %v1775
    %1800 = vmatmul.f32.gmra.mxu0 %v1782
    %v1801 = vpop.f32.mrf.mxu0
    %v1802 = vadd.f32 0.0, %v1801
    %1803 = vdwg.mxu0
    %1805 = vrot.lane.b32.xlu0 %v1680, 64
    %v1806 = vpop.permute.xlu0 %1805
    %v1807 = vsel %vm1164, %v1806, 0
    %1809 = vmatpush.msra.mxu0 0.0
    %1810 = vmatpush.msra.mxu0 0.0
    %1811 = vmatpush.msra.mxu0 0.0
    %1812 = vmatpush.msra.mxu0 0.0
    %1813 = vmatpush.msra.mxu0 0.0
    %1814 = vmatpush.msra.mxu0 0.0
    %1815 = vmatpush.msra.mxu0 0.0
    %1816 = vmatpush.msra.mxu0 0.0
    %1817 = vmatpush.msra.mxu0 0.0
    %1818 = vmatpush.msra.mxu0 0.0
    %1819 = vmatpush.msra.mxu0 0.0
    %1820 = vmatpush.msra.mxu0 0.0
    %1821 = vmatpush.msra.mxu0 %v1774
    %1822 = vmatpush.msra.mxu0 %v1773
    %1823 = vmatpush.msra.mxu0 %v1772
    %1824 = vmatpush.msra.mxu0 %v1771
    %1825 = vmatmul.f32.gmra.mxu0 %v1807
    %v1826 = vpop.f32.mrf.mxu0
    %v1827 = vadd.f32 %v1802, %v1826
    %1828 = vdwg.mxu0
    %v1829 = vld [vmem:[%s4 + $0x3] ss:$0 sm:$0xff]
    %v1830 = vadd.f32 %v1827, %v1829
    %v1831 = vld [vmem:[%s1] sm:$0xff]
    %v1832 = vld [vmem:[#allocation2 + $0x160] sm:$0xff]
    %v1833 = vld [vmem:[#allocation2 + $0x168] sm:$0xff]
    %v1834 = vld [vmem:[#allocation2 + $0x170] sm:$0xff]
    %v1835 = vld [vmem:[#allocation2 + $0x178] sm:$0xff]
    %v1836 = vld [vmem:[#allocation2 + $0x180] sm:$0xff]
    %v1837 = vld [vmem:[#allocation2 + $0x188] sm:$0xff]
    %v1838 = vld [vmem:[#allocation2 + $0x190] sm:$0xff]
    %v1839 = vld [vmem:[#allocation2 + $0x198] sm:$0xff]
    %v1840 = vld [vmem:[#allocation2 + $0x1a0] sm:$0xff]
    %v1841 = vld [vmem:[#allocation2 + $0x1a8] sm:$0xff]
    %v1842 = vld [vmem:[#allocation2 + $0x1b0] sm:$0xff]
    %v1843 = vld [vmem:[#allocation2 + $0x1b8] sm:$0xff]
    %v1844 = vld [vmem:[#allocation2 + $0x1c0] sm:$0xff]
    %v1845 = vld [vmem:[#allocation2 + $0x1c8] sm:$0xff]
    %v1846 = vld [vmem:[#allocation2 + $0x1d0] sm:$0xff]
    %v1847 = vld [vmem:[#allocation2 + $0x1d8] sm:$0xff]
    %v1848 = vld [vmem:[#allocation2 + $0x1e0] sm:$0xff]
    %v1849 = vld [vmem:[%s4 + $0x7] ss:$0 sm:$0xff]
    %v1850 = vld [vmem:[%s4 + $0x10] ss:$0 sm:$0xff]
    %v1851 = vld [vmem:[%s4 + $0x11] ss:$0 sm:$0xff]
    %v1852 = vld [vmem:[%s4 + $0x12] ss:$0 sm:$0xff]
    %v1853 = vld [vmem:[%s4 + $0x13] ss:$0 sm:$0xff]
    %v1854 = vld [vmem:[%s4 + $0x14] ss:$0 sm:$0xff]
    %v1855 = vmul.f32 %v1831, %v1849
    %v1857 = vsel %vm101, %v1855, 0
    %1859 = vmatpush.msra.mxu0 0.0
    %1860 = vmatpush.msra.mxu0 0.0
    %1861 = vmatpush.msra.mxu0 0.0
    %1862 = vmatpush.msra.mxu0 0.0
    %1863 = vmatpush.msra.mxu0 0.0
    %1864 = vmatpush.msra.mxu0 0.0
    %1865 = vmatpush.msra.mxu0 0.0
    %1866 = vmatpush.msra.mxu0 0.0
    %1867 = vmatpush.msra.mxu0 0.0
    %1868 = vmatpush.msra.mxu0 0.0
    %1869 = vmatpush.msra.mxu0 0.0
    %1870 = vmatpush.msra.mxu0 0.0
    %1871 = vmatpush.msra.mxu0 0.0
    %1872 = vmatpush.msra.mxu0 0.0
    %1873 = vmatpush.msra.mxu0 0.0
    %1874 = vmatpush.msra.mxu0 %v1848
    %1875 = vmatmul.f32.gmra.mxu0 %v1857
    %v1876 = vpop.f32.mrf.mxu0
    %v1877 = vadd.f32 0.0, %v1876
    %1878 = vdwg.mxu0
    %1879 = vmatpush.msra.mxu0 %v1847
    %1880 = vmatpush.msra.mxu0 %v1846
    %1881 = vmatpush.msra.mxu0 %v1845
    %1882 = vmatpush.msra.mxu0 %v1844
    %1883 = vmatpush.msra.mxu0 %v1843
    %1884 = vmatpush.msra.mxu0 %v1842
    %1885 = vmatpush.msra.mxu0 %v1841
    %1886 = vmatpush.msra.mxu0 %v1840
    %1887 = vmatpush.msra.mxu0 %v1839
    %1888 = vmatpush.msra.mxu0 %v1838
    %1889 = vmatpush.msra.mxu0 %v1837
    %1890 = vmatpush.msra.mxu0 %v1836
    %1891 = vmatpush.msra.mxu0 %v1835
    %1892 = vmatpush.msra.mxu0 %v1834
    %1893 = vmatpush.msra.mxu0 %v1833
    %1894 = vmatpush.msra.mxu0 %v1832
    %1895 = vmatmul.f32.gmra.mxu0 %v1830
    %v1896 = vpop.f32.mrf.mxu0
    %v1897 = vadd.f32 %v1877, %v1896
    %1898 = vdwg.mxu0
    %v1899 = vld [vmem:[%s4 + $0x4] ss:$0 sm:$0xff]
    %v1900 = vadd.f32 %v1897, %v1899
    %v1901 = vtanh.pop %v1900
    %v1902 = vmax.f32 %v1900, 0.0
    %v1903 = vsel %vm68, %v1901, %v1902
    %v1904 = vld [vmem:[#allocation2 + $0x1e8] sm:$0xff]
    %v1905 = vld [vmem:[#allocation2 + $0x1f0] sm:$0xff]
    %v1906 = vld [vmem:[#allocation2 + $0x1f8] sm:$0xff]
    %v1907 = vld [vmem:[#allocation2 + $0x200] sm:$0xff]
    %v1908 = vld [vmem:[#allocation2 + $0x208] sm:$0xff]
    %v1909 = vld [vmem:[#allocation2 + $0x210] sm:$0xff]
    %v1910 = vld [vmem:[#allocation2 + $0x218] sm:$0xff]
    %v1911 = vld [vmem:[#allocation2 + $0x220] sm:$0xff]
    %v1912 = vld [vmem:[#allocation2 + $0x228] sm:$0xff]
    %v1913 = vld [vmem:[#allocation2 + $0x230] sm:$0xff]
    %v1914 = vld [vmem:[#allocation2 + $0x238] sm:$0xff]
    %v1915 = vld [vmem:[#allocation2 + $0x240] sm:$0xff]
    %v1916 = vld [vmem:[#allocation2 + $0x248] sm:$0xff]
    %v1917 = vld [vmem:[#allocation2 + $0x250] sm:$0xff]
    %v1918 = vld [vmem:[#allocation2 + $0x258] sm:$0xff]
    %v1919 = vld [vmem:[#allocation2 + $0x260] sm:$0xff]
    %v1920 = vld [vmem:[%s4 + $0x5] ss:$0 sm:$0xff]
    %1921 = vmatpush.msra.mxu0 %v1919
    %1922 = vmatpush.msra.mxu0 %v1918
    %1923 = vmatpush.msra.mxu0 %v1917
    %1924 = vmatpush.msra.mxu0 %v1916
    %1925 = vmatpush.msra.mxu0 %v1915
    %1926 = vmatpush.msra.mxu0 %v1914
    %1927 = vmatpush.msra.mxu0 %v1913
    %1928 = vmatpush.msra.mxu0 %v1912
    %1929 = vmatpush.msra.mxu0 %v1911
    %1930 = vmatpush.msra.mxu0 %v1910
    %1931 = vmatpush.msra.mxu0 %v1909
    %1932 = vmatpush.msra.mxu0 %v1908
    %1933 = vmatpush.msra.mxu0 %v1907
    %1934 = vmatpush.msra.mxu0 %v1906
    %1935 = vmatpush.msra.mxu0 %v1905
    %1936 = vmatpush.msra.mxu0 %v1904
    %1937 = vmatmul.f32.gmra.mxu0 %v1903
    %v1938 = vpop.f32.mrf.mxu0
    %v1939 = vadd.f32 %v1920, %v1938
    %1940 = vdwg.mxu0
    %v1941 = vtanh.pop %v1939
    %v1942 = vmax.f32 %v1939, 0.0
    %v1943 = vsel %vm68, %v1941, %v1942
    %v1944 = vld [vmem:[#allocation2 + $0x268] sm:$0xff]
    %v1945 = vld [vmem:[#allocation2 + $0x270] sm:$0xff]
    %v1946 = vld [vmem:[#allocation2 + $0x278] sm:$0xff]
    %v1947 = vld [vmem:[#allocation2 + $0x280] sm:$0xff]
    %v1948 = vld [vmem:[#allocation2 + $0x288] sm:$0xff]
    %v1949 = vld [vmem:[#allocation2 + $0x290] sm:$0xff]
    %v1950 = vld [vmem:[#allocation2 + $0x298] sm:$0xff]
    %v1951 = vld [vmem:[#allocation2 + $0x2a0] sm:$0xff]
    %v1952 = vld [vmem:[#allocation2 + $0x2a8] sm:$0xff]
    %v1953 = vld [vmem:[#allocation2 + $0x2b0] sm:$0xff]
    %v1954 = vld [vmem:[#allocation2 + $0x2b8] sm:$0xff]
    %v1955 = vld [vmem:[#allocation2 + $0x2c0] sm:$0xff]
    %v1956 = vld [vmem:[#allocation2 + $0x2c8] sm:$0xff]
    %v1957 = vld [vmem:[#allocation2 + $0x2d0] sm:$0xff]
    %v1958 = vld [vmem:[#allocation2 + $0x2d8] sm:$0xff]
    %v1959 = vld [vmem:[#allocation2 + $0x2e0] sm:$0xff]
    %v1960 = vld [vmem:[%s4 + $0x6] ss:$0 sm:$0xff]
    %1961 = vmatpush.msra.mxu0 %v1959
    %1962 = vmatpush.msra.mxu0 %v1958
    %1963 = vmatpush.msra.mxu0 %v1957
    %1964 = vmatpush.msra.mxu0 %v1956
    %1965 = vmatpush.msra.mxu0 %v1955
    %1966 = vmatpush.msra.mxu0 %v1954
    %1967 = vmatpush.msra.mxu0 %v1953
    %1968 = vmatpush.msra.mxu0 %v1952
    %1969 = vmatpush.msra.mxu0 %v1951
    %1970 = vmatpush.msra.mxu0 %v1950
    %1971 = vmatpush.msra.mxu0 %v1949
    %1972 = vmatpush.msra.mxu0 %v1948
    %1973 = vmatpush.msra.mxu0 %v1947
    %1974 = vmatpush.msra.mxu0 %v1946
    %1975 = vmatpush.msra.mxu0 %v1945
    %1976 = vmatpush.msra.mxu0 %v1944
    %1977 = vmatmul.f32.gmra.mxu0 %v1943
    %v1978 = vpop.f32.mrf.mxu0
    %v1979 = vadd.f32 %v1960, %v1978
    %1980 = vdwg.mxu0
    %v1981 = vsub.f32 1.0, %v1849
    %1983 = vrot.lane.b32.xlu0 %v1979, 120
    %v1984 = vpop.permute.xlu0 %1983
    %v1986 = vsub.f32 %v1831, %v1984
    %v1987 = vmul.f32 %v1981, %v1986
    %v1988 = vsub.f32 0.0, %v1979
    %v1989 = vmul.f32 %v1988, 1.442695
    %v1990 = vpow.pop %v1989
    %v1991 = vmul.f32 %v1987, %v1990
    %v1992 = vadd.f32 %v1855, %v1991
    %v1993 = vsub.f32 0.0, %v1981
    %v1994 = vmul.f32 %v1993, %v1979
    %v1995 = vsub.f32 %v1992, %v1850
    %v1996 = vmul.f32 %v1852, %v1995
    %v1997 = vmul.f32 %v1996, %v1851
    %v1998 = vadd.f32 %v1997, %v1853
    %v1999 = vadd.f32 %v1994, 0.0
    %v2000 = vadd.f32 %v1999, %v1854
    %v2001 = vld [vmem:[#allocation2 + $0x2e8] sm:$0xff]
    %v2002 = vld [vmem:[#allocation2 + $0x2f0] sm:$0xff]
    %v2003 = vld [vmem:[#allocation2 + $0x2f8] sm:$0xff]
    %v2004 = vld [vmem:[#allocation2 + $0x300] sm:$0xff]
    %v2005 = vld [vmem:[#allocation2 + $0x308] sm:$0xff]
    %v2006 = vld [vmem:[#allocation2 + $0x310] sm:$0xff]
    %v2007 = vld [vmem:[#allocation2 + $0x318] sm:$0xff]
    %v2008 = vld [vmem:[#allocation2 + $0x320] sm:$0xff]
    %v2009 = vld [vmem:[#allocation2 + $0x328] sm:$0xff]
    %v2010 = vld [vmem:[#allocation2 + $0x330] sm:$0xff]
    %v2011 = vld [vmem:[#allocation2 + $0x338] sm:$0xff]
    %v2012 = vld [vmem:[#allocation2 + $0x340] sm:$0xff]
    %v2013 = vld [vmem:[#allocation2 + $0x348] sm:$0xff]
    %v2014 = vld [vmem:[#allocation2 + $0x350] sm:$0xff]
    %v2015 = vld [vmem:[#allocation2 + $0x358] sm:$0xff]
    %v2016 = vld [vmem:[#allocation2 + $0x360] sm:$0xff]
    %v2017 = vld [vmem:[#allocation2 + $0x368] sm:$0xff]
    %v2018 = vld [vmem:[%s4 + $0x20] ss:$0 sm:$0xff]
    %v2019 = vld [vmem:[%s4 + $0x21] ss:$0 sm:$0xff]
    %v2020 = vld [vmem:[%s4 + $0x22] ss:$0 sm:$0xff]
    %v2021 = vld [vmem:[%s4 + $0x23] ss:$0 sm:$0xff]
    %v2022 = vld [vmem:[%s4 + $0x24] ss:$0 sm:$0xff]
    %v2023 = vld [vmem:[%s4 + $0x25] ss:$0 sm:$0xff]
    %v2024 = vmul.f32 %v1998, %v2018
    %v2026 = vsel %vm101, %v2024, 0
    %2028 = vmatpush.msra.mxu0 0.0
    %2029 = vmatpush.msra.mxu0 0.0
    %2030 = vmatpush.msra.mxu0 0.0
    %2031 = vmatpush.msra.mxu0 0.0
    %2032 = vmatpush.msra.mxu0 0.0
    %2033 = vmatpush.msra.mxu0 0.0
    %2034 = vmatpush.msra.mxu0 0.0
    %2035 = vmatpush.msra.mxu0 0.0
    %2036 = vmatpush.msra.mxu0 0.0
    %2037 = vmatpush.msra.mxu0 0.0
    %2038 = vmatpush.msra.mxu0 0.0
    %2039 = vmatpush.msra.mxu0 0.0
    %2040 = vmatpush.msra.mxu0 0.0
    %2041 = vmatpush.msra.mxu0 0.0
    %2042 = vmatpush.msra.mxu0 0.0
    %2043 = vmatpush.msra.mxu0 %v2017
    %2044 = vmatmul.f32.gmra.mxu0 %v2026
    %v2045 = vpop.f32.mrf.mxu0
    %v2046 = vadd.f32 0.0, %v2045
    %2047 = vdwg.mxu0
    %2048 = vmatpush.msra.mxu0 %v2016
    %2049 = vmatpush.msra.mxu0 %v2015
    %2050 = vmatpush.msra.mxu0 %v2014
    %2051 = vmatpush.msra.mxu0 %v2013
    %2052 = vmatpush.msra.mxu0 %v2012
    %2053 = vmatpush.msra.mxu0 %v2011
    %2054 = vmatpush.msra.mxu0 %v2010
    %2055 = vmatpush.msra.mxu0 %v2009
    %2056 = vmatpush.msra.mxu0 %v2008
    %2057 = vmatpush.msra.mxu0 %v2007
    %2058 = vmatpush.msra.mxu0 %v2006
    %2059 = vmatpush.msra.mxu0 %v2005
    %2060 = vmatpush.msra.mxu0 %v2004
    %2061 = vmatpush.msra.mxu0 %v2003
    %2062 = vmatpush.msra.mxu0 %v2002
    %2063 = vmatpush.msra.mxu0 %v2001
    %2064 = vmatmul.f32.gmra.mxu0 %v1830
    %v2065 = vpop.f32.mrf.mxu0
    %v2066 = vadd.f32 %v2046, %v2065
    %2067 = vdwg.mxu0
    %v2068 = vld [vmem:[%s4 + $0x15] ss:$0 sm:$0xff]
    %v2069 = vadd.f32 %v2066, %v2068
    %v2070 = vtanh.pop %v2069
    %v2071 = vmax.f32 %v2069, 0.0
    %v2072 = vsel %vm68, %v2070, %v2071
    %v2073 = vld [vmem:[#allocation2 + $0x370] sm:$0xff]
    %v2074 = vld [vmem:[#allocation2 + $0x378] sm:$0xff]
    %v2075 = vld [vmem:[#allocation2 + $0x380] sm:$0xff]
    %v2076 = vld [vmem:[#allocation2 + $0x388] sm:$0xff]
    %v2077 = vld [vmem:[#allocation2 + $0x390] sm:$0xff]
    %v2078 = vld [vmem:[#allocation2 + $0x398] sm:$0xff]
    %v2079 = vld [vmem:[#allocation2 + $0x3a0] sm:$0xff]
    %v2080 = vld [vmem:[#allocation2 + $0x3a8] sm:$0xff]
    %v2081 = vld [vmem:[#allocation2 + $0x3b0] sm:$0xff]
    %v2082 = vld [vmem:[#allocation2 + $0x3b8] sm:$0xff]
    %v2083 = vld [vmem:[#allocation2 + $0x3c0] sm:$0xff]
    %v2084 = vld [vmem:[#allocation2 + $0x3c8] sm:$0xff]
    %v2085 = vld [vmem:[#allocation2 + $0x3d0] sm:$0xff]
    %v2086 = vld [vmem:[#allocation2 + $0x3d8] sm:$0xff]
    %v2087 = vld [vmem:[#allocation2 + $0x3e0] sm:$0xff]
    %v2088 = vld [vmem:[#allocation2 + $0x3e8] sm:$0xff]
    %v2089 = vld [vmem:[%s4 + $0x16] ss:$0 sm:$0xff]
    %2090 = vmatpush.msra.mxu0 %v2088
    %2091 = vmatpush.msra.mxu0 %v2087
    %2092 = vmatpush.msra.mxu0 %v2086
    %2093 = vmatpush.msra.mxu0 %v2085
    %2094 = vmatpush.msra.mxu0 %v2084
    %2095 = vmatpush.msra.mxu0 %v2083
    %2096 = vmatpush.msra.mxu0 %v2082
    %2097 = vmatpush.msra.mxu0 %v2081
    %2098 = vmatpush.msra.mxu0 %v2080
    %2099 = vmatpush.msra.mxu0 %v2079
    %2100 = vmatpush.msra.mxu0 %v2078
    %2101 = vmatpush.msra.mxu0 %v2077
    %2102 = vmatpush.msra.mxu0 %v2076
    %2103 = vmatpush.msra.mxu0 %v2075
    %2104 = vmatpush.msra.mxu0 %v2074
    %2105 = vmatpush.msra.mxu0 %v2073
    %2106 = vmatmul.f32.gmra.mxu0 %v2072
    %v2107 = vpop.f32.mrf.mxu0
    %v2108 = vadd.f32 %v2089, %v2107
    %2109 = vdwg.mxu0
    %v2110 = vtanh.pop %v2108
    %v2111 = vmax.f32 %v2108, 0.0
    %v2112 = vsel %vm68, %v2110, %v2111
    %v2113 = vld [vmem:[#allocation2 + $0x3f0] sm:$0xff]
    %v2114 = vld [vmem:[#allocation2 + $0x3f8] sm:$0xff]
    %v2115 = vld [vmem:[#allocation2 + $0x400] sm:$0xff]
    %v2116 = vld [vmem:[#allocation2 + $0x408] sm:$0xff]
    %v2117 = vld [vmem:[#allocation2 + $0x410] sm:$0xff]
    %v2118 = vld [vmem:[#allocation2 + $0x418] sm:$0xff]
    %v2119 = vld [vmem:[#allocation2 + $0x420] sm:$0xff]
    %v2120 = vld [vmem:[#allocation2 + $0x428] sm:$0xff]
    %v2121 = vld [vmem:[#allocation2 + $0x430] sm:$0xff]
    %v2122 = vld [vmem:[#allocation2 + $0x438] sm:$0xff]
    %v2123 = vld [vmem:[#allocation2 + $0x440] sm:$0xff]
    %v2124 = vld [vmem:[#allocation2 + $0x448] sm:$0xff]
    %v2125 = vld [vmem:[#allocation2 + $0x450] sm:$0xff]
    %v2126 = vld [vmem:[#allocation2 + $0x458] sm:$0xff]
    %v2127 = vld [vmem:[#allocation2 + $0x460] sm:$0xff]
    %v2128 = vld [vmem:[#allocation2 + $0x468] sm:$0xff]
    %v2129 = vld [vmem:[%s4 + $0x17] ss:$0 sm:$0xff]
    %2130 = vmatpush.msra.mxu0 %v2128
    %2131 = vmatpush.msra.mxu0 %v2127
    %2132 = vmatpush.msra.mxu0 %v2126
    %2133 = vmatpush.msra.mxu0 %v2125
    %2134 = vmatpush.msra.mxu0 %v2124
    %2135 = vmatpush.msra.mxu0 %v2123
    %2136 = vmatpush.msra.mxu0 %v2122
    %2137 = vmatpush.msra.mxu0 %v2121
    %2138 = vmatpush.msra.mxu0 %v2120
    %2139 = vmatpush.msra.mxu0 %v2119
    %2140 = vmatpush.msra.mxu0 %v2118
    %2141 = vmatpush.msra.mxu0 %v2117
    %2142 = vmatpush.msra.mxu0 %v2116
    %2143 = vmatpush.msra.mxu0 %v2115
    %2144 = vmatpush.msra.mxu0 %v2114
    %2145 = vmatpush.msra.mxu0 %v2113
    %2146 = vmatmul.f32.gmra.mxu0 %v2112
    %v2147 = vpop.f32.mrf.mxu0
    %v2148 = vadd.f32 %v2129, %v2147
    %2149 = vdwg.mxu0
    %v2150 = vsub.f32 1.0, %v2018
    %2152 = vrot.lane.b32.xlu0 %v2148, 120
    %v2153 = vpop.permute.xlu0 %2152
    %v2155 = vsub.f32 %v1998, %v2153
    %v2156 = vmul.f32 %v2150, %v2155
    %v2157 = vsub.f32 0.0, %v2148
    %v2158 = vmul.f32 %v2157, 1.442695
    %v2159 = vpow.pop %v2158
    %v2160 = vmul.f32 %v2156, %v2159
    %v2161 = vadd.f32 %v2024, %v2160
    %v2162 = vsub.f32 0.0, %v2150
    %v2163 = vmul.f32 %v2162, %v2148
    %v2164 = vsub.f32 %v2161, %v2019
    %v2165 = vmul.f32 %v2021, %v2164
    %v2166 = vmul.f32 %v2165, %v2020
    %v2167 = vadd.f32 %v2166, %v2022
    %v2168 = vadd.f32 %v2000, %v2163
    %v2169 = vadd.f32 %v2168, %v2023
    %2171 = vrot.lane.b32.xlu0 %v2169, 8
    %v2172 = vpop.permute.xlu0 %2171
    %v2174 = vsel %vm101, %v2167, %v2172
    %vm2175 = vcmask 130048
    %2176 = vst.msk [vmem:[%s5] sm:$0xff] %vm2175, %v2174
    // Predicated region
    $region26: #{cnf_forward.1} parent=1 // pred_check
      _
    $region27: #{cnf_forward.1} parent=1 // pred_check_branch
      %2178 = sbr.rel (0) target = $region29
    $region28: #{cnf_forward.1} parent=1 // pred_region
      _
    $region29: #{cnf_forward.1} parent=1 // pred_fallthru
      _
    // Predicated region
    $region30: #{cnf_forward.1} parent=1 // pred_check
      _
    $region31: #{cnf_forward.1} parent=1 // pred_check_branch
      %2180 = sbr.rel (0) target = $region33
    $region32: #{cnf_forward.1} parent=1 // pred_region
      _
    $region33: #{cnf_forward.1} parent=1 // pred_fallthru
      _
    %2181 = vsyncpa [#allocation3], 1

</llo_original>
